<compile_context>
chip_gen: v7x
topology: tpu7x:2x2x1
jax: 0.10.0
libtpu: 0.0.40
codegen_flags: <defaults>
</compile_context>

<pallas_src>
import functools

import jax
import jax.numpy as jnp
from jax import lax
from jax.experimental import pallas as pl
from jax.experimental.pallas import tpu as pltpu

VMEM = pl.BlockSpec(memory_space=pltpu.MemorySpace.VMEM)
LANES = 128


# ----------------------------- fused kernel ---------------------------------
def fused_forward_kernel(
    q_ids_ref,                                   # [T*B, 1] int32, time-major
    v_ref,                                       # [B*N, Dv] f32
    table_ref,                                   # [V, E]
    wih_r_ref, wih_z_ref, wih_n_ref,             # [E, H] each
    whh_r_ref, whh_z_ref, whh_n_ref,             # [H, H] each
    bih_r_ref, bih_z_ref, bih_n_ref,             # [1, H] each
    bhh_r_ref, bhh_z_ref, bhh_n_ref,             # [1, H] each
    vfc_w_ref, vfc_b_ref,                        # [Dv, H], [1, H]
    rel_wv_ref, rel_wq_ref, rel_b_ref,           # [H, H], [H, H], [1, H]
    vatt_wq_ref, vatt_wo_ref,                    # [H, H] each
    ratt_wq_ref, ratt_wo_ref,                    # [H, H] each
    cls_w1a_ref, cls_w1b_ref, cls_b1_ref,        # [H, H], [H, H], [1, H]
    cls_w2_ref, cls_b2_ref,                      # [H, 128], [1, 128]
    out_ref,                                     # [B, 128] f32 (lane-dense)
    *, B, T, N, V):
    E = table_ref.shape[1]
    H = whh_r_ref.shape[0]
    TB = T * B

    f32 = jnp.float32
    dot = functools.partial(jnp.dot, preferred_element_type=f32)

    # ---- w_emb = self.w_emb(q): one-hot @ table (lookup stays in VMEM) -------
    ids = q_ids_ref[...]                                                # [TB, 1]
    onehot = (ids == lax.broadcasted_iota(jnp.int32, (TB, V), 1)).astype(f32)
    x_all = dot(onehot, table_ref[...])                                 # [TB, E]

    # ---- q_emb = self.q_emb(w_emb): GRU, final hidden ------------------------
    # Input projections hoisted out of the recurrence (one matmul per gate).
    gi_r = dot(x_all, wih_r_ref[...]) + bih_r_ref[...]                  # [TB, H]
    gi_z = dot(x_all, wih_z_ref[...]) + bih_z_ref[...]
    gi_n = dot(x_all, wih_n_ref[...]) + bih_n_ref[...]

    whh_r, whh_z, whh_n = whh_r_ref[...], whh_z_ref[...], whh_n_ref[...]
    bhh_r, bhh_z, bhh_n = bhh_r_ref[...], bhh_z_ref[...], bhh_n_ref[...]

    h = jnp.zeros((B, H), f32)
    for t in range(T):                         # fully unrolled (T is small/static)
        lo = t * B
        gh_r = dot(h, whh_r) + bhh_r
        gh_z = dot(h, whh_z) + bhh_z
        gh_n = dot(h, whh_n) + bhh_n
        r = jax.nn.sigmoid(gi_r[lo:lo + B] + gh_r)
        z = jax.nn.sigmoid(gi_z[lo:lo + B] + gh_z)
        n = jnp.tanh(gi_n[lo:lo + B] + r * gh_n)
        h = (1.0 - z) * n + z * h
    q_emb = h                                                           # [B, H]

    # ---- v_emb = self.v_fc(v): Linear + ReLU, 2-D lane-dense layout ----------
    v_emb2d = jnp.maximum(dot(v_ref[...], vfc_w_ref[...]) + vfc_b_ref[...], 0.0)  # [B*N, H]

    # ---- r_emb = self.r_emb(v_emb, q_emb): tanh(vW_v + qW_q + b) -------------
    qp_rel = dot(q_emb, rel_wq_ref[...]) + rel_b_ref[...]               # [B, H]
    vp2d = dot(v_emb2d, rel_wv_ref[...])                                # [B*N, H]
    v_emb = v_emb2d.reshape(B, N, H)                                    # tile-aligned reshape
    r_emb = jnp.tanh(vp2d.reshape(B, N, H) + qp_rel[:, None, :])        # [B, N, H]

    # ---- attention over frames (weights are dead downstream: not emitted) ----
    def attend(feat, wq_ref, wo_ref):
        qp = dot(q_emb, wq_ref[...])                                    # [B, H]
        scores = jnp.einsum('bqh,bnh->bqn', qp[:, None, :], feat,
                            preferred_element_type=f32)                 # [B, 1, N]
        scores = scores - jnp.max(scores, axis=-1, keepdims=True)
        e = jnp.exp(scores)
        w = e * pl.reciprocal(jnp.sum(e, axis=-1, keepdims=True), approx=True)
        ctx = jnp.einsum('bqn,bnh->bqh', w, feat,
                         preferred_element_type=f32)                    # [B, 1, H]
        return dot(ctx[:, 0, :], wo_ref[...])                           # [B, H]

    vatt = attend(v_emb, vatt_wq_ref, vatt_wo_ref)
    ratt = attend(r_emb, ratt_wq_ref, ratt_wo_ref)

    # ---- classifier on concat(joint, q_emb) via split-W1 (no concat op) ------
    joint = vatt + q_emb + ratt                                         # [B, H]
    h1 = dot(joint, cls_w1a_ref[...]) + dot(q_emb, cls_w1b_ref[...]) + cls_b1_ref[...]
    h1 = jnp.maximum(h1, 0.0)
    out_ref[...] = dot(h1, cls_w2_ref[...]) + cls_b2_ref[...]           # [B, 128]


# ----------------------------- wrapper ---------------------------------------
def base_model_forward(params, v, q):
    B, N, Dv = v.shape
    _, T = q.shape
    V, E = params["w_emb_table"].shape
    H = params["gru_whh_r"].shape[0]

    # Tiny host-side reshapes of the raw inputs (ids / features only).
    q_tm = q.T.reshape(T * B, 1).astype(jnp.int32)     # time-major token ids
    v2d = v.reshape(B * N, Dv)

    # Pad the 1-wide classifier head to 128 lanes so stores are unmasked.
    cls_w2p = jnp.pad(params["cls_w2"], ((0, 0), (0, LANES - params["cls_w2"].shape[1])))
    cls_b2p = jnp.pad(params["cls_b2"], ((0, 0), (0, LANES - params["cls_b2"].shape[1])))

    args = (
        q_tm, v2d, params["w_emb_table"],
        params["gru_wih_r"], params["gru_wih_z"], params["gru_wih_n"],
        params["gru_whh_r"], params["gru_whh_z"], params["gru_whh_n"],
        params["gru_bih_r"], params["gru_bih_z"], params["gru_bih_n"],
        params["gru_bhh_r"], params["gru_bhh_z"], params["gru_bhh_n"],
        params["vfc_w"], params["vfc_b"],
        params["rel_wv"], params["rel_wq"], params["rel_b"],
        params["vatt_wq"], params["vatt_wo"],
        params["ratt_wq"], params["ratt_wo"],
        params["cls_w1a"], params["cls_w1b"], params["cls_b1"],
        cls_w2p, cls_b2p,
    )

    kernel = functools.partial(fused_forward_kernel, B=B, T=T, N=N, V=V)
    out = pl.pallas_call(
        kernel,
        out_shape=jax.ShapeDtypeStruct((B, LANES), jnp.float32),
        in_specs=[VMEM] * len(args),
        out_specs=VMEM,
    )(*args)
    return out[:, 0]                                   # [B] logits (torch.squeeze)


# ----------------------------- params -----------------------------------------
def init_params(key, V, E, H, Dv):
    ks = jax.random.split(key, 27)

    def w(k, shape, scale=0.1):
        return (scale * jax.random.normal(k, shape)).astype(jnp.float32)

    return dict(
        w_emb_table=w(ks[0], (V, E)),
        # GRU stored per-gate (r, z, n) to avoid lane-offset slicing of a 3H tile.
        gru_wih_r=w(ks[1], (E, H)), gru_wih_z=w(ks[2], (E, H)), gru_wih_n=w(ks[3], (E, H)),
        gru_whh_r=w(ks[4], (H, H)), gru_whh_z=w(ks[5], (H, H)), gru_whh_n=w(ks[6], (H, H)),
        gru_bih_r=w(ks[7], (1, H)), gru_bih_z=w(ks[8], (1, H)), gru_bih_n=w(ks[9], (1, H)),
        gru_bhh_r=w(ks[10], (1, H)), gru_bhh_z=w(ks[11], (1, H)), gru_bhh_n=w(ks[12], (1, H)),
        vfc_w=w(ks[13], (Dv, H)), vfc_b=w(ks[14], (1, H)),
        rel_wv=w(ks[15], (H, H)), rel_wq=w(ks[16], (H, H)), rel_b=w(ks[17], (1, H)),
        vatt_wq=w(ks[18], (H, H)), vatt_wo=w(ks[19], (H, H)),
        ratt_wq=w(ks[20], (H, H)), ratt_wo=w(ks[21], (H, H)),
        # Classifier W1 is stored pre-split: rows 0..H-1 act on joint_proj,
        # rows H..2H-1 act on q_emb (equivalent to a [2H,H] W1 on the concat).
        cls_w1a=w(ks[22], (H, H)), cls_w1b=w(ks[23], (H, H)), cls_b1=w(ks[24], (1, H)),
        cls_w2=w(ks[25], (H, 1)), cls_b2=w(ks[26], (1, 1)),
    )


if __name__ == "__main__":
    B, T, E, H, N, Dv, V = 2, 8, 32, 32, 16, 64, 50
    key = jax.random.PRNGKey(0)
    kp, kv, kq = jax.random.split(key, 3)

    params = init_params(kp, V, E, H, Dv)
    v = jax.random.normal(kv, (B, N, Dv), dtype=jnp.float32)      # video features [B, N, Dv]
    q = jax.random.randint(kq, (B, T), 0, V, dtype=jnp.int32)     # question token ids [B, T]

    logits = jax.jit(base_model_forward)(params, v, q)
    jax.block_until_ready(logits)
    assert logits.shape == (B,), logits.shape
    print("KERNEL_OK")
</pallas_src>

<mosaic_0001>
module attributes {stable_mosaic.version = 11 : i64} {
  func.func @fused_forward_kernel(%arg0: memref<16x1xi32, #tpu.memory_space<vmem>>, %arg1: memref<32x64xf32, #tpu.memory_space<vmem>>, %arg2: memref<50x32xf32, #tpu.memory_space<vmem>>, %arg3: memref<32x32xf32, #tpu.memory_space<vmem>>, %arg4: memref<32x32xf32, #tpu.memory_space<vmem>>, %arg5: memref<32x32xf32, #tpu.memory_space<vmem>>, %arg6: memref<32x32xf32, #tpu.memory_space<vmem>>, %arg7: memref<32x32xf32, #tpu.memory_space<vmem>>, %arg8: memref<32x32xf32, #tpu.memory_space<vmem>>, %arg9: memref<1x32xf32, #tpu.memory_space<vmem>>, %arg10: memref<1x32xf32, #tpu.memory_space<vmem>>, %arg11: memref<1x32xf32, #tpu.memory_space<vmem>>, %arg12: memref<1x32xf32, #tpu.memory_space<vmem>>, %arg13: memref<1x32xf32, #tpu.memory_space<vmem>>, %arg14: memref<1x32xf32, #tpu.memory_space<vmem>>, %arg15: memref<64x32xf32, #tpu.memory_space<vmem>>, %arg16: memref<1x32xf32, #tpu.memory_space<vmem>>, %arg17: memref<32x32xf32, #tpu.memory_space<vmem>>, %arg18: memref<32x32xf32, #tpu.memory_space<vmem>>, %arg19: memref<1x32xf32, #tpu.memory_space<vmem>>, %arg20: memref<32x32xf32, #tpu.memory_space<vmem>>, %arg21: memref<32x32xf32, #tpu.memory_space<vmem>>, %arg22: memref<32x32xf32, #tpu.memory_space<vmem>>, %arg23: memref<32x32xf32, #tpu.memory_space<vmem>>, %arg24: memref<32x32xf32, #tpu.memory_space<vmem>>, %arg25: memref<32x32xf32, #tpu.memory_space<vmem>>, %arg26: memref<1x32xf32, #tpu.memory_space<vmem>>, %arg27: memref<32x128xf32, #tpu.memory_space<vmem>>, %arg28: memref<1x128xf32, #tpu.memory_space<vmem>>, %arg29: memref<2x128xf32, #tpu.memory_space<vmem>>) attributes {dimension_semantics = [], scalar_prefetch = 0 : i64, scratch_operands = 0 : i64, tpu.core_type = #tpu.core_type<tc>} {
    %c0 = arith.constant 0 : index
    %c0_0 = arith.constant 0 : index
    %0 = vector.load %arg0[%c0, %c0_0] : memref<16x1xi32, #tpu.memory_space<vmem>>, vector<16x1xi32>
    %1 = tpu.iota {dimensions = array<i32: 1>} : vector<16x50xi32>
    %2 = vector.broadcast %0 : vector<16x1xi32> to vector<16x50xi32>
    %3 = arith.cmpi eq, %2, %1 : vector<16x50xi32>
    %4 = arith.extui %3 : vector<16x50xi1> to vector<16x50xi32>
    %5 = arith.sitofp %4 : vector<16x50xi32> to vector<16x50xf32>
    %c0_1 = arith.constant 0 : index
    %c0_2 = arith.constant 0 : index
    %6 = vector.load %arg2[%c0_1, %c0_2] : memref<50x32xf32, #tpu.memory_space<vmem>>, vector<50x32xf32>
    %cst = arith.constant dense<0.000000e+00> : vector<16x32xf32>
    %7 = tpu.matmul %5, %6, %cst {dimension_numbers = #tpu.dot_dimension_numbers<[1], [0], [0], [1], [0, 0, 1, 1], [], []>} : vector<16x50xf32>, vector<50x32xf32>, vector<16x32xf32> -> vector<16x32xf32>
    %c0_3 = arith.constant 0 : index
    %c0_4 = arith.constant 0 : index
    %8 = vector.load %arg3[%c0_3, %c0_4] : memref<32x32xf32, #tpu.memory_space<vmem>>, vector<32x32xf32>
    %cst_5 = arith.constant dense<0.000000e+00> : vector<16x32xf32>
    %9 = tpu.matmul %7, %8, %cst_5 {dimension_numbers = #tpu.dot_dimension_numbers<[1], [0], [0], [1], [0, 0, 1, 1], [], []>} : vector<16x32xf32>, vector<32x32xf32>, vector<16x32xf32> -> vector<16x32xf32>
    %c0_6 = arith.constant 0 : index
    %c0_7 = arith.constant 0 : index
    %10 = vector.load %arg9[%c0_6, %c0_7] : memref<1x32xf32, #tpu.memory_space<vmem>>, vector<1x32xf32>
    %11 = vector.broadcast %10 : vector<1x32xf32> to vector<16x32xf32>
    %12 = arith.addf %9, %11 : vector<16x32xf32>
    %c0_8 = arith.constant 0 : index
    %c0_9 = arith.constant 0 : index
    %13 = vector.load %arg4[%c0_8, %c0_9] : memref<32x32xf32, #tpu.memory_space<vmem>>, vector<32x32xf32>
    %cst_10 = arith.constant dense<0.000000e+00> : vector<16x32xf32>
    %14 = tpu.matmul %7, %13, %cst_10 {dimension_numbers = #tpu.dot_dimension_numbers<[1], [0], [0], [1], [0, 0, 1, 1], [], []>} : vector<16x32xf32>, vector<32x32xf32>, vector<16x32xf32> -> vector<16x32xf32>
    %c0_11 = arith.constant 0 : index
    %c0_12 = arith.constant 0 : index
    %15 = vector.load %arg10[%c0_11, %c0_12] : memref<1x32xf32, #tpu.memory_space<vmem>>, vector<1x32xf32>
    %16 = vector.broadcast %15 : vector<1x32xf32> to vector<16x32xf32>
    %17 = arith.addf %14, %16 : vector<16x32xf32>
    %c0_13 = arith.constant 0 : index
    %c0_14 = arith.constant 0 : index
    %18 = vector.load %arg5[%c0_13, %c0_14] : memref<32x32xf32, #tpu.memory_space<vmem>>, vector<32x32xf32>
    %cst_15 = arith.constant dense<0.000000e+00> : vector<16x32xf32>
    %19 = tpu.matmul %7, %18, %cst_15 {dimension_numbers = #tpu.dot_dimension_numbers<[1], [0], [0], [1], [0, 0, 1, 1], [], []>} : vector<16x32xf32>, vector<32x32xf32>, vector<16x32xf32> -> vector<16x32xf32>
    %c0_16 = arith.constant 0 : index
    %c0_17 = arith.constant 0 : index
    %20 = vector.load %arg11[%c0_16, %c0_17] : memref<1x32xf32, #tpu.memory_space<vmem>>, vector<1x32xf32>
    %21 = vector.broadcast %20 : vector<1x32xf32> to vector<16x32xf32>
    %22 = arith.addf %19, %21 : vector<16x32xf32>
    %c0_18 = arith.constant 0 : index
    %c0_19 = arith.constant 0 : index
    %23 = vector.load %arg6[%c0_18, %c0_19] : memref<32x32xf32, #tpu.memory_space<vmem>>, vector<32x32xf32>
    %c0_20 = arith.constant 0 : index
    %c0_21 = arith.constant 0 : index
    %24 = vector.load %arg7[%c0_20, %c0_21] : memref<32x32xf32, #tpu.memory_space<vmem>>, vector<32x32xf32>
    %c0_22 = arith.constant 0 : index
    %c0_23 = arith.constant 0 : index
    %25 = vector.load %arg8[%c0_22, %c0_23] : memref<32x32xf32, #tpu.memory_space<vmem>>, vector<32x32xf32>
    %c0_24 = arith.constant 0 : index
    %c0_25 = arith.constant 0 : index
    %26 = vector.load %arg12[%c0_24, %c0_25] : memref<1x32xf32, #tpu.memory_space<vmem>>, vector<1x32xf32>
    %c0_26 = arith.constant 0 : index
    %c0_27 = arith.constant 0 : index
    %27 = vector.load %arg13[%c0_26, %c0_27] : memref<1x32xf32, #tpu.memory_space<vmem>>, vector<1x32xf32>
    %c0_28 = arith.constant 0 : index
    %c0_29 = arith.constant 0 : index
    %28 = vector.load %arg14[%c0_28, %c0_29] : memref<1x32xf32, #tpu.memory_space<vmem>>, vector<1x32xf32>
    %cst_30 = arith.constant 0.000000e+00 : f32
    %29 = vector.broadcast %cst_30 : f32 to vector<2x32xf32>
    %cst_31 = arith.constant dense<0.000000e+00> : vector<2x32xf32>
    %30 = tpu.matmul %29, %23, %cst_31 {dimension_numbers = #tpu.dot_dimension_numbers<[1], [0], [0], [1], [0, 0, 1, 1], [], []>} : vector<2x32xf32>, vector<32x32xf32>, vector<2x32xf32> -> vector<2x32xf32>
    %31 = vector.broadcast %26 : vector<1x32xf32> to vector<2x32xf32>
    %32 = arith.addf %30, %31 : vector<2x32xf32>
    %cst_32 = arith.constant dense<0.000000e+00> : vector<2x32xf32>
    %33 = tpu.matmul %29, %24, %cst_32 {dimension_numbers = #tpu.dot_dimension_numbers<[1], [0], [0], [1], [0, 0, 1, 1], [], []>} : vector<2x32xf32>, vector<32x32xf32>, vector<2x32xf32> -> vector<2x32xf32>
    %34 = vector.broadcast %27 : vector<1x32xf32> to vector<2x32xf32>
    %35 = arith.addf %33, %34 : vector<2x32xf32>
    %cst_33 = arith.constant dense<0.000000e+00> : vector<2x32xf32>
    %36 = tpu.matmul %29, %25, %cst_33 {dimension_numbers = #tpu.dot_dimension_numbers<[1], [0], [0], [1], [0, 0, 1, 1], [], []>} : vector<2x32xf32>, vector<32x32xf32>, vector<2x32xf32> -> vector<2x32xf32>
    %37 = vector.broadcast %28 : vector<1x32xf32> to vector<2x32xf32>
    %38 = arith.addf %36, %37 : vector<2x32xf32>
    %39 = vector.extract_strided_slice %12 {offsets = [0, 0], sizes = [2, 32], strides = [1, 1]} : vector<16x32xf32> to vector<2x32xf32>
    %40 = arith.addf %39, %32 : vector<2x32xf32>
    %41 = arith.negf %40 : vector<2x32xf32>
    %42 = math.exp %41 : vector<2x32xf32>
    %cst_34 = arith.constant 1.000000e+00 : f32
    %43 = vector.broadcast %cst_34 : f32 to vector<2x32xf32>
    %44 = arith.addf %43, %42 : vector<2x32xf32>
    %45 = arith.divf %43, %44 : vector<2x32xf32>
    %46 = vector.extract_strided_slice %17 {offsets = [0, 0], sizes = [2, 32], strides = [1, 1]} : vector<16x32xf32> to vector<2x32xf32>
    %47 = arith.addf %46, %35 : vector<2x32xf32>
    %48 = arith.negf %47 : vector<2x32xf32>
    %49 = math.exp %48 : vector<2x32xf32>
    %cst_35 = arith.constant 1.000000e+00 : f32
    %50 = vector.broadcast %cst_35 : f32 to vector<2x32xf32>
    %51 = arith.addf %50, %49 : vector<2x32xf32>
    %52 = arith.divf %50, %51 : vector<2x32xf32>
    %53 = vector.extract_strided_slice %22 {offsets = [0, 0], sizes = [2, 32], strides = [1, 1]} : vector<16x32xf32> to vector<2x32xf32>
    %54 = arith.mulf %45, %38 : vector<2x32xf32>
    %55 = arith.addf %53, %54 : vector<2x32xf32>
    %56 = math.tanh %55 : vector<2x32xf32>
    %cst_36 = arith.constant 1.000000e+00 : f32
    %57 = vector.broadcast %cst_36 : f32 to vector<2x32xf32>
    %58 = arith.subf %57, %52 : vector<2x32xf32>
    %59 = arith.mulf %58, %56 : vector<2x32xf32>
    %60 = arith.mulf %52, %29 : vector<2x32xf32>
    %61 = arith.addf %59, %60 : vector<2x32xf32>
    %cst_37 = arith.constant dense<0.000000e+00> : vector<2x32xf32>
    %62 = tpu.matmul %61, %23, %cst_37 {dimension_numbers = #tpu.dot_dimension_numbers<[1], [0], [0], [1], [0, 0, 1, 1], [], []>} : vector<2x32xf32>, vector<32x32xf32>, vector<2x32xf32> -> vector<2x32xf32>
    %63 = vector.broadcast %26 : vector<1x32xf32> to vector<2x32xf32>
    %64 = arith.addf %62, %63 : vector<2x32xf32>
    %cst_38 = arith.constant dense<0.000000e+00> : vector<2x32xf32>
    %65 = tpu.matmul %61, %24, %cst_38 {dimension_numbers = #tpu.dot_dimension_numbers<[1], [0], [0], [1], [0, 0, 1, 1], [], []>} : vector<2x32xf32>, vector<32x32xf32>, vector<2x32xf32> -> vector<2x32xf32>
    %66 = vector.broadcast %27 : vector<1x32xf32> to vector<2x32xf32>
    %67 = arith.addf %65, %66 : vector<2x32xf32>
    %cst_39 = arith.constant dense<0.000000e+00> : vector<2x32xf32>
    %68 = tpu.matmul %61, %25, %cst_39 {dimension_numbers = #tpu.dot_dimension_numbers<[1], [0], [0], [1], [0, 0, 1, 1], [], []>} : vector<2x32xf32>, vector<32x32xf32>, vector<2x32xf32> -> vector<2x32xf32>
    %69 = vector.broadcast %28 : vector<1x32xf32> to vector<2x32xf32>
    %70 = arith.addf %68, %69 : vector<2x32xf32>
    %71 = vector.extract_strided_slice %12 {offsets = [2, 0], sizes = [2, 32], strides = [1, 1]} : vector<16x32xf32> to vector<2x32xf32>
    %72 = arith.addf %71, %64 : vector<2x32xf32>
    %73 = arith.negf %72 : vector<2x32xf32>
    %74 = math.exp %73 : vector<2x32xf32>
    %cst_40 = arith.constant 1.000000e+00 : f32
    %75 = vector.broadcast %cst_40 : f32 to vector<2x32xf32>
    %76 = arith.addf %75, %74 : vector<2x32xf32>
    %77 = arith.divf %75, %76 : vector<2x32xf32>
    %78 = vector.extract_strided_slice %17 {offsets = [2, 0], sizes = [2, 32], strides = [1, 1]} : vector<16x32xf32> to vector<2x32xf32>
    %79 = arith.addf %78, %67 : vector<2x32xf32>
    %80 = arith.negf %79 : vector<2x32xf32>
    %81 = math.exp %80 : vector<2x32xf32>
    %cst_41 = arith.constant 1.000000e+00 : f32
    %82 = vector.broadcast %cst_41 : f32 to vector<2x32xf32>
    %83 = arith.addf %82, %81 : vector<2x32xf32>
    %84 = arith.divf %82, %83 : vector<2x32xf32>
    %85 = vector.extract_strided_slice %22 {offsets = [2, 0], sizes = [2, 32], strides = [1, 1]} : vector<16x32xf32> to vector<2x32xf32>
    %86 = arith.mulf %77, %70 : vector<2x32xf32>
    %87 = arith.addf %85, %86 : vector<2x32xf32>
    %88 = math.tanh %87 : vector<2x32xf32>
    %cst_42 = arith.constant 1.000000e+00 : f32
    %89 = vector.broadcast %cst_42 : f32 to vector<2x32xf32>
    %90 = arith.subf %89, %84 : vector<2x32xf32>
    %91 = arith.mulf %90, %88 : vector<2x32xf32>
    %92 = arith.mulf %84, %61 : vector<2x32xf32>
    %93 = arith.addf %91, %92 : vector<2x32xf32>
    %cst_43 = arith.constant dense<0.000000e+00> : vector<2x32xf32>
    %94 = tpu.matmul %93, %23, %cst_43 {dimension_numbers = #tpu.dot_dimension_numbers<[1], [0], [0], [1], [0, 0, 1, 1], [], []>} : vector<2x32xf32>, vector<32x32xf32>, vector<2x32xf32> -> vector<2x32xf32>
    %95 = vector.broadcast %26 : vector<1x32xf32> to vector<2x32xf32>
    %96 = arith.addf %94, %95 : vector<2x32xf32>
    %cst_44 = arith.constant dense<0.000000e+00> : vector<2x32xf32>
    %97 = tpu.matmul %93, %24, %cst_44 {dimension_numbers = #tpu.dot_dimension_numbers<[1], [0], [0], [1], [0, 0, 1, 1], [], []>} : vector<2x32xf32>, vector<32x32xf32>, vector<2x32xf32> -> vector<2x32xf32>
    %98 = vector.broadcast %27 : vector<1x32xf32> to vector<2x32xf32>
    %99 = arith.addf %97, %98 : vector<2x32xf32>
    %cst_45 = arith.constant dense<0.000000e+00> : vector<2x32xf32>
    %100 = tpu.matmul %93, %25, %cst_45 {dimension_numbers = #tpu.dot_dimension_numbers<[1], [0], [0], [1], [0, 0, 1, 1], [], []>} : vector<2x32xf32>, vector<32x32xf32>, vector<2x32xf32> -> vector<2x32xf32>
    %101 = vector.broadcast %28 : vector<1x32xf32> to vector<2x32xf32>
    %102 = arith.addf %100, %101 : vector<2x32xf32>
    %103 = vector.extract_strided_slice %12 {offsets = [4, 0], sizes = [2, 32], strides = [1, 1]} : vector<16x32xf32> to vector<2x32xf32>
    %104 = arith.addf %103, %96 : vector<2x32xf32>
    %105 = arith.negf %104 : vector<2x32xf32>
    %106 = math.exp %105 : vector<2x32xf32>
    %cst_46 = arith.constant 1.000000e+00 : f32
    %107 = vector.broadcast %cst_46 : f32 to vector<2x32xf32>
    %108 = arith.addf %107, %106 : vector<2x32xf32>
    %109 = arith.divf %107, %108 : vector<2x32xf32>
    %110 = vector.extract_strided_slice %17 {offsets = [4, 0], sizes = [2, 32], strides = [1, 1]} : vector<16x32xf32> to vector<2x32xf32>
    %111 = arith.addf %110, %99 : vector<2x32xf32>
    %112 = arith.negf %111 : vector<2x32xf32>
    %113 = math.exp %112 : vector<2x32xf32>
    %cst_47 = arith.constant 1.000000e+00 : f32
    %114 = vector.broadcast %cst_47 : f32 to vector<2x32xf32>
    %115 = arith.addf %114, %113 : vector<2x32xf32>
    %116 = arith.divf %114, %115 : vector<2x32xf32>
    %117 = vector.extract_strided_slice %22 {offsets = [4, 0], sizes = [2, 32], strides = [1, 1]} : vector<16x32xf32> to vector<2x32xf32>
    %118 = arith.mulf %109, %102 : vector<2x32xf32>
    %119 = arith.addf %117, %118 : vector<2x32xf32>
    %120 = math.tanh %119 : vector<2x32xf32>
    %cst_48 = arith.constant 1.000000e+00 : f32
    %121 = vector.broadcast %cst_48 : f32 to vector<2x32xf32>
    %122 = arith.subf %121, %116 : vector<2x32xf32>
    %123 = arith.mulf %122, %120 : vector<2x32xf32>
    %124 = arith.mulf %116, %93 : vector<2x32xf32>
    %125 = arith.addf %123, %124 : vector<2x32xf32>
    %cst_49 = arith.constant dense<0.000000e+00> : vector<2x32xf32>
    %126 = tpu.matmul %125, %23, %cst_49 {dimension_numbers = #tpu.dot_dimension_numbers<[1], [0], [0], [1], [0, 0, 1, 1], [], []>} : vector<2x32xf32>, vector<32x32xf32>, vector<2x32xf32> -> vector<2x32xf32>
    %127 = vector.broadcast %26 : vector<1x32xf32> to vector<2x32xf32>
    %128 = arith.addf %126, %127 : vector<2x32xf32>
    %cst_50 = arith.constant dense<0.000000e+00> : vector<2x32xf32>
    %129 = tpu.matmul %125, %24, %cst_50 {dimension_numbers = #tpu.dot_dimension_numbers<[1], [0], [0], [1], [0, 0, 1, 1], [], []>} : vector<2x32xf32>, vector<32x32xf32>, vector<2x32xf32> -> vector<2x32xf32>
    %130 = vector.broadcast %27 : vector<1x32xf32> to vector<2x32xf32>
    %131 = arith.addf %129, %130 : vector<2x32xf32>
    %cst_51 = arith.constant dense<0.000000e+00> : vector<2x32xf32>
    %132 = tpu.matmul %125, %25, %cst_51 {dimension_numbers = #tpu.dot_dimension_numbers<[1], [0], [0], [1], [0, 0, 1, 1], [], []>} : vector<2x32xf32>, vector<32x32xf32>, vector<2x32xf32> -> vector<2x32xf32>
    %133 = vector.broadcast %28 : vector<1x32xf32> to vector<2x32xf32>
    %134 = arith.addf %132, %133 : vector<2x32xf32>
    %135 = vector.extract_strided_slice %12 {offsets = [6, 0], sizes = [2, 32], strides = [1, 1]} : vector<16x32xf32> to vector<2x32xf32>
    %136 = arith.addf %135, %128 : vector<2x32xf32>
    %137 = arith.negf %136 : vector<2x32xf32>
    %138 = math.exp %137 : vector<2x32xf32>
    %cst_52 = arith.constant 1.000000e+00 : f32
    %139 = vector.broadcast %cst_52 : f32 to vector<2x32xf32>
    %140 = arith.addf %139, %138 : vector<2x32xf32>
    %141 = arith.divf %139, %140 : vector<2x32xf32>
    %142 = vector.extract_strided_slice %17 {offsets = [6, 0], sizes = [2, 32], strides = [1, 1]} : vector<16x32xf32> to vector<2x32xf32>
    %143 = arith.addf %142, %131 : vector<2x32xf32>
    %144 = arith.negf %143 : vector<2x32xf32>
    %145 = math.exp %144 : vector<2x32xf32>
    %cst_53 = arith.constant 1.000000e+00 : f32
    %146 = vector.broadcast %cst_53 : f32 to vector<2x32xf32>
    %147 = arith.addf %146, %145 : vector<2x32xf32>
    %148 = arith.divf %146, %147 : vector<2x32xf32>
    %149 = vector.extract_strided_slice %22 {offsets = [6, 0], sizes = [2, 32], strides = [1, 1]} : vector<16x32xf32> to vector<2x32xf32>
    %150 = arith.mulf %141, %134 : vector<2x32xf32>
    %151 = arith.addf %149, %150 : vector<2x32xf32>
    %152 = math.tanh %151 : vector<2x32xf32>
    %cst_54 = arith.constant 1.000000e+00 : f32
    %153 = vector.broadcast %cst_54 : f32 to vector<2x32xf32>
    %154 = arith.subf %153, %148 : vector<2x32xf32>
    %155 = arith.mulf %154, %152 : vector<2x32xf32>
    %156 = arith.mulf %148, %125 : vector<2x32xf32>
    %157 = arith.addf %155, %156 : vector<2x32xf32>
    %cst_55 = arith.constant dense<0.000000e+00> : vector<2x32xf32>
    %158 = tpu.matmul %157, %23, %cst_55 {dimension_numbers = #tpu.dot_dimension_numbers<[1], [0], [0], [1], [0, 0, 1, 1], [], []>} : vector<2x32xf32>, vector<32x32xf32>, vector<2x32xf32> -> vector<2x32xf32>
    %159 = vector.broadcast %26 : vector<1x32xf32> to vector<2x32xf32>
    %160 = arith.addf %158, %159 : vector<2x32xf32>
    %cst_56 = arith.constant dense<0.000000e+00> : vector<2x32xf32>
    %161 = tpu.matmul %157, %24, %cst_56 {dimension_numbers = #tpu.dot_dimension_numbers<[1], [0], [0], [1], [0, 0, 1, 1], [], []>} : vector<2x32xf32>, vector<32x32xf32>, vector<2x32xf32> -> vector<2x32xf32>
    %162 = vector.broadcast %27 : vector<1x32xf32> to vector<2x32xf32>
    %163 = arith.addf %161, %162 : vector<2x32xf32>
    %cst_57 = arith.constant dense<0.000000e+00> : vector<2x32xf32>
    %164 = tpu.matmul %157, %25, %cst_57 {dimension_numbers = #tpu.dot_dimension_numbers<[1], [0], [0], [1], [0, 0, 1, 1], [], []>} : vector<2x32xf32>, vector<32x32xf32>, vector<2x32xf32> -> vector<2x32xf32>
    %165 = vector.broadcast %28 : vector<1x32xf32> to vector<2x32xf32>
    %166 = arith.addf %164, %165 : vector<2x32xf32>
    %167 = vector.extract_strided_slice %12 {offsets = [8, 0], sizes = [2, 32], strides = [1, 1]} : vector<16x32xf32> to vector<2x32xf32>
    %168 = arith.addf %167, %160 : vector<2x32xf32>
    %169 = arith.negf %168 : vector<2x32xf32>
    %170 = math.exp %169 : vector<2x32xf32>
    %cst_58 = arith.constant 1.000000e+00 : f32
    %171 = vector.broadcast %cst_58 : f32 to vector<2x32xf32>
    %172 = arith.addf %171, %170 : vector<2x32xf32>
    %173 = arith.divf %171, %172 : vector<2x32xf32>
    %174 = vector.extract_strided_slice %17 {offsets = [8, 0], sizes = [2, 32], strides = [1, 1]} : vector<16x32xf32> to vector<2x32xf32>
    %175 = arith.addf %174, %163 : vector<2x32xf32>
    %176 = arith.negf %175 : vector<2x32xf32>
    %177 = math.exp %176 : vector<2x32xf32>
    %cst_59 = arith.constant 1.000000e+00 : f32
    %178 = vector.broadcast %cst_59 : f32 to vector<2x32xf32>
    %179 = arith.addf %178, %177 : vector<2x32xf32>
    %180 = arith.divf %178, %179 : vector<2x32xf32>
    %181 = vector.extract_strided_slice %22 {offsets = [8, 0], sizes = [2, 32], strides = [1, 1]} : vector<16x32xf32> to vector<2x32xf32>
    %182 = arith.mulf %173, %166 : vector<2x32xf32>
    %183 = arith.addf %181, %182 : vector<2x32xf32>
    %184 = math.tanh %183 : vector<2x32xf32>
    %cst_60 = arith.constant 1.000000e+00 : f32
    %185 = vector.broadcast %cst_60 : f32 to vector<2x32xf32>
    %186 = arith.subf %185, %180 : vector<2x32xf32>
    %187 = arith.mulf %186, %184 : vector<2x32xf32>
    %188 = arith.mulf %180, %157 : vector<2x32xf32>
    %189 = arith.addf %187, %188 : vector<2x32xf32>
    %cst_61 = arith.constant dense<0.000000e+00> : vector<2x32xf32>
    %190 = tpu.matmul %189, %23, %cst_61 {dimension_numbers = #tpu.dot_dimension_numbers<[1], [0], [0], [1], [0, 0, 1, 1], [], []>} : vector<2x32xf32>, vector<32x32xf32>, vector<2x32xf32> -> vector<2x32xf32>
    %191 = vector.broadcast %26 : vector<1x32xf32> to vector<2x32xf32>
    %192 = arith.addf %190, %191 : vector<2x32xf32>
    %cst_62 = arith.constant dense<0.000000e+00> : vector<2x32xf32>
    %193 = tpu.matmul %189, %24, %cst_62 {dimension_numbers = #tpu.dot_dimension_numbers<[1], [0], [0], [1], [0, 0, 1, 1], [], []>} : vector<2x32xf32>, vector<32x32xf32>, vector<2x32xf32> -> vector<2x32xf32>
    %194 = vector.broadcast %27 : vector<1x32xf32> to vector<2x32xf32>
    %195 = arith.addf %193, %194 : vector<2x32xf32>
    %cst_63 = arith.constant dense<0.000000e+00> : vector<2x32xf32>
    %196 = tpu.matmul %189, %25, %cst_63 {dimension_numbers = #tpu.dot_dimension_numbers<[1], [0], [0], [1], [0, 0, 1, 1], [], []>} : vector<2x32xf32>, vector<32x32xf32>, vector<2x32xf32> -> vector<2x32xf32>
    %197 = vector.broadcast %28 : vector<1x32xf32> to vector<2x32xf32>
    %198 = arith.addf %196, %197 : vector<2x32xf32>
    %199 = vector.extract_strided_slice %12 {offsets = [10, 0], sizes = [2, 32], strides = [1, 1]} : vector<16x32xf32> to vector<2x32xf32>
    %200 = arith.addf %199, %192 : vector<2x32xf32>
    %201 = arith.negf %200 : vector<2x32xf32>
    %202 = math.exp %201 : vector<2x32xf32>
    %cst_64 = arith.constant 1.000000e+00 : f32
    %203 = vector.broadcast %cst_64 : f32 to vector<2x32xf32>
    %204 = arith.addf %203, %202 : vector<2x32xf32>
    %205 = arith.divf %203, %204 : vector<2x32xf32>
    %206 = vector.extract_strided_slice %17 {offsets = [10, 0], sizes = [2, 32], strides = [1, 1]} : vector<16x32xf32> to vector<2x32xf32>
    %207 = arith.addf %206, %195 : vector<2x32xf32>
    %208 = arith.negf %207 : vector<2x32xf32>
    %209 = math.exp %208 : vector<2x32xf32>
    %cst_65 = arith.constant 1.000000e+00 : f32
    %210 = vector.broadcast %cst_65 : f32 to vector<2x32xf32>
    %211 = arith.addf %210, %209 : vector<2x32xf32>
    %212 = arith.divf %210, %211 : vector<2x32xf32>
    %213 = vector.extract_strided_slice %22 {offsets = [10, 0], sizes = [2, 32], strides = [1, 1]} : vector<16x32xf32> to vector<2x32xf32>
    %214 = arith.mulf %205, %198 : vector<2x32xf32>
    %215 = arith.addf %213, %214 : vector<2x32xf32>
    %216 = math.tanh %215 : vector<2x32xf32>
    %cst_66 = arith.constant 1.000000e+00 : f32
    %217 = vector.broadcast %cst_66 : f32 to vector<2x32xf32>
    %218 = arith.subf %217, %212 : vector<2x32xf32>
    %219 = arith.mulf %218, %216 : vector<2x32xf32>
    %220 = arith.mulf %212, %189 : vector<2x32xf32>
    %221 = arith.addf %219, %220 : vector<2x32xf32>
    %cst_67 = arith.constant dense<0.000000e+00> : vector<2x32xf32>
    %222 = tpu.matmul %221, %23, %cst_67 {dimension_numbers = #tpu.dot_dimension_numbers<[1], [0], [0], [1], [0, 0, 1, 1], [], []>} : vector<2x32xf32>, vector<32x32xf32>, vector<2x32xf32> -> vector<2x32xf32>
    %223 = vector.broadcast %26 : vector<1x32xf32> to vector<2x32xf32>
    %224 = arith.addf %222, %223 : vector<2x32xf32>
    %cst_68 = arith.constant dense<0.000000e+00> : vector<2x32xf32>
    %225 = tpu.matmul %221, %24, %cst_68 {dimension_numbers = #tpu.dot_dimension_numbers<[1], [0], [0], [1], [0, 0, 1, 1], [], []>} : vector<2x32xf32>, vector<32x32xf32>, vector<2x32xf32> -> vector<2x32xf32>
    %226 = vector.broadcast %27 : vector<1x32xf32> to vector<2x32xf32>
    %227 = arith.addf %225, %226 : vector<2x32xf32>
    %cst_69 = arith.constant dense<0.000000e+00> : vector<2x32xf32>
    %228 = tpu.matmul %221, %25, %cst_69 {dimension_numbers = #tpu.dot_dimension_numbers<[1], [0], [0], [1], [0, 0, 1, 1], [], []>} : vector<2x32xf32>, vector<32x32xf32>, vector<2x32xf32> -> vector<2x32xf32>
    %229 = vector.broadcast %28 : vector<1x32xf32> to vector<2x32xf32>
    %230 = arith.addf %228, %229 : vector<2x32xf32>
    %231 = vector.extract_strided_slice %12 {offsets = [12, 0], sizes = [2, 32], strides = [1, 1]} : vector<16x32xf32> to vector<2x32xf32>
    %232 = arith.addf %231, %224 : vector<2x32xf32>
    %233 = arith.negf %232 : vector<2x32xf32>
    %234 = math.exp %233 : vector<2x32xf32>
    %cst_70 = arith.constant 1.000000e+00 : f32
    %235 = vector.broadcast %cst_70 : f32 to vector<2x32xf32>
    %236 = arith.addf %235, %234 : vector<2x32xf32>
    %237 = arith.divf %235, %236 : vector<2x32xf32>
    %238 = vector.extract_strided_slice %17 {offsets = [12, 0], sizes = [2, 32], strides = [1, 1]} : vector<16x32xf32> to vector<2x32xf32>
    %239 = arith.addf %238, %227 : vector<2x32xf32>
    %240 = arith.negf %239 : vector<2x32xf32>
    %241 = math.exp %240 : vector<2x32xf32>
    %cst_71 = arith.constant 1.000000e+00 : f32
    %242 = vector.broadcast %cst_71 : f32 to vector<2x32xf32>
    %243 = arith.addf %242, %241 : vector<2x32xf32>
    %244 = arith.divf %242, %243 : vector<2x32xf32>
    %245 = vector.extract_strided_slice %22 {offsets = [12, 0], sizes = [2, 32], strides = [1, 1]} : vector<16x32xf32> to vector<2x32xf32>
    %246 = arith.mulf %237, %230 : vector<2x32xf32>
    %247 = arith.addf %245, %246 : vector<2x32xf32>
    %248 = math.tanh %247 : vector<2x32xf32>
    %cst_72 = arith.constant 1.000000e+00 : f32
    %249 = vector.broadcast %cst_72 : f32 to vector<2x32xf32>
    %250 = arith.subf %249, %244 : vector<2x32xf32>
    %251 = arith.mulf %250, %248 : vector<2x32xf32>
    %252 = arith.mulf %244, %221 : vector<2x32xf32>
    %253 = arith.addf %251, %252 : vector<2x32xf32>
    %cst_73 = arith.constant dense<0.000000e+00> : vector<2x32xf32>
    %254 = tpu.matmul %253, %23, %cst_73 {dimension_numbers = #tpu.dot_dimension_numbers<[1], [0], [0], [1], [0, 0, 1, 1], [], []>} : vector<2x32xf32>, vector<32x32xf32>, vector<2x32xf32> -> vector<2x32xf32>
    %255 = vector.broadcast %26 : vector<1x32xf32> to vector<2x32xf32>
    %256 = arith.addf %254, %255 : vector<2x32xf32>
    %cst_74 = arith.constant dense<0.000000e+00> : vector<2x32xf32>
    %257 = tpu.matmul %253, %24, %cst_74 {dimension_numbers = #tpu.dot_dimension_numbers<[1], [0], [0], [1], [0, 0, 1, 1], [], []>} : vector<2x32xf32>, vector<32x32xf32>, vector<2x32xf32> -> vector<2x32xf32>
    %258 = vector.broadcast %27 : vector<1x32xf32> to vector<2x32xf32>
    %259 = arith.addf %257, %258 : vector<2x32xf32>
    %cst_75 = arith.constant dense<0.000000e+00> : vector<2x32xf32>
    %260 = tpu.matmul %253, %25, %cst_75 {dimension_numbers = #tpu.dot_dimension_numbers<[1], [0], [0], [1], [0, 0, 1, 1], [], []>} : vector<2x32xf32>, vector<32x32xf32>, vector<2x32xf32> -> vector<2x32xf32>
    %261 = vector.broadcast %28 : vector<1x32xf32> to vector<2x32xf32>
    %262 = arith.addf %260, %261 : vector<2x32xf32>
    %263 = vector.extract_strided_slice %12 {offsets = [14, 0], sizes = [2, 32], strides = [1, 1]} : vector<16x32xf32> to vector<2x32xf32>
    %264 = arith.addf %263, %256 : vector<2x32xf32>
    %265 = arith.negf %264 : vector<2x32xf32>
    %266 = math.exp %265 : vector<2x32xf32>
    %cst_76 = arith.constant 1.000000e+00 : f32
    %267 = vector.broadcast %cst_76 : f32 to vector<2x32xf32>
    %268 = arith.addf %267, %266 : vector<2x32xf32>
    %269 = arith.divf %267, %268 : vector<2x32xf32>
    %270 = vector.extract_strided_slice %17 {offsets = [14, 0], sizes = [2, 32], strides = [1, 1]} : vector<16x32xf32> to vector<2x32xf32>
    %271 = arith.addf %270, %259 : vector<2x32xf32>
    %272 = arith.negf %271 : vector<2x32xf32>
    %273 = math.exp %272 : vector<2x32xf32>
    %cst_77 = arith.constant 1.000000e+00 : f32
    %274 = vector.broadcast %cst_77 : f32 to vector<2x32xf32>
    %275 = arith.addf %274, %273 : vector<2x32xf32>
    %276 = arith.divf %274, %275 : vector<2x32xf32>
    %277 = vector.extract_strided_slice %22 {offsets = [14, 0], sizes = [2, 32], strides = [1, 1]} : vector<16x32xf32> to vector<2x32xf32>
    %278 = arith.mulf %269, %262 : vector<2x32xf32>
    %279 = arith.addf %277, %278 : vector<2x32xf32>
    %280 = math.tanh %279 : vector<2x32xf32>
    %cst_78 = arith.constant 1.000000e+00 : f32
    %281 = vector.broadcast %cst_78 : f32 to vector<2x32xf32>
    %282 = arith.subf %281, %276 : vector<2x32xf32>
    %283 = arith.mulf %282, %280 : vector<2x32xf32>
    %284 = arith.mulf %276, %253 : vector<2x32xf32>
    %285 = arith.addf %283, %284 : vector<2x32xf32>
    %c0_79 = arith.constant 0 : index
    %c0_80 = arith.constant 0 : index
    %286 = vector.load %arg1[%c0_79, %c0_80] : memref<32x64xf32, #tpu.memory_space<vmem>>, vector<32x64xf32>
    %c0_81 = arith.constant 0 : index
    %c0_82 = arith.constant 0 : index
    %287 = vector.load %arg15[%c0_81, %c0_82] : memref<64x32xf32, #tpu.memory_space<vmem>>, vector<64x32xf32>
    %cst_83 = arith.constant dense<0.000000e+00> : vector<32x32xf32>
    %288 = tpu.matmul %286, %287, %cst_83 {dimension_numbers = #tpu.dot_dimension_numbers<[1], [0], [0], [1], [0, 0, 1, 1], [], []>} : vector<32x64xf32>, vector<64x32xf32>, vector<32x32xf32> -> vector<32x32xf32>
    %c0_84 = arith.constant 0 : index
    %c0_85 = arith.constant 0 : index
    %289 = vector.load %arg16[%c0_84, %c0_85] : memref<1x32xf32, #tpu.memory_space<vmem>>, vector<1x32xf32>
    %290 = vector.broadcast %289 : vector<1x32xf32> to vector<32x32xf32>
    %291 = arith.addf %288, %290 : vector<32x32xf32>
    %cst_86 = arith.constant 0.000000e+00 : f32
    %292 = vector.broadcast %cst_86 : f32 to vector<32x32xf32>
    %293 = arith.maximumf %291, %292 : vector<32x32xf32>
    %c0_87 = arith.constant 0 : index
    %c0_88 = arith.constant 0 : index
    %294 = vector.load %arg18[%c0_87, %c0_88] : memref<32x32xf32, #tpu.memory_space<vmem>>, vector<32x32xf32>
    %cst_89 = arith.constant dense<0.000000e+00> : vector<2x32xf32>
    %295 = tpu.matmul %285, %294, %cst_89 {dimension_numbers = #tpu.dot_dimension_numbers<[1], [0], [0], [1], [0, 0, 1, 1], [], []>} : vector<2x32xf32>, vector<32x32xf32>, vector<2x32xf32> -> vector<2x32xf32>
    %c0_90 = arith.constant 0 : index
    %c0_91 = arith.constant 0 : index
    %296 = vector.load %arg19[%c0_90, %c0_91] : memref<1x32xf32, #tpu.memory_space<vmem>>, vector<1x32xf32>
    %297 = vector.broadcast %296 : vector<1x32xf32> to vector<2x32xf32>
    %298 = arith.addf %295, %297 : vector<2x32xf32>
    %c0_92 = arith.constant 0 : index
    %c0_93 = arith.constant 0 : index
    %299 = vector.load %arg17[%c0_92, %c0_93] : memref<32x32xf32, #tpu.memory_space<vmem>>, vector<32x32xf32>
    %cst_94 = arith.constant dense<0.000000e+00> : vector<32x32xf32>
    %300 = tpu.matmul %293, %299, %cst_94 {dimension_numbers = #tpu.dot_dimension_numbers<[1], [0], [0], [1], [0, 0, 1, 1], [], []>} : vector<32x32xf32>, vector<32x32xf32>, vector<32x32xf32> -> vector<32x32xf32>
    %301 = vector.shape_cast %293 : vector<32x32xf32> to vector<2x16x32xf32>
    %302 = vector.shape_cast %300 : vector<32x32xf32> to vector<2x16x32xf32>
    %303 = vector.shape_cast %298 : vector<2x32xf32> to vector<2x1x32xf32>
    %304 = vector.broadcast %303 : vector<2x1x32xf32> to vector<2x16x32xf32>
    %305 = arith.addf %302, %304 : vector<2x16x32xf32>
    %306 = math.tanh %305 : vector<2x16x32xf32>
    %c0_95 = arith.constant 0 : index
    %c0_96 = arith.constant 0 : index
    %307 = vector.load %arg20[%c0_95, %c0_96] : memref<32x32xf32, #tpu.memory_space<vmem>>, vector<32x32xf32>
    %cst_97 = arith.constant dense<0.000000e+00> : vector<2x32xf32>
    %308 = tpu.matmul %285, %307, %cst_97 {dimension_numbers = #tpu.dot_dimension_numbers<[1], [0], [0], [1], [0, 0, 1, 1], [], []>} : vector<2x32xf32>, vector<32x32xf32>, vector<2x32xf32> -> vector<2x32xf32>
    %309 = vector.shape_cast %308 : vector<2x32xf32> to vector<2x1x32xf32>
    "tpu.trace_start"() <{level = 10 : i32, message = "bqh,bnh->bqn"}> : () -> ()
    %cst_98 = arith.constant dense<0.000000e+00> : vector<2x1x16xf32>
    %310 = tpu.matmul %309, %301, %cst_98 {dimension_numbers = #tpu.dot_dimension_numbers<[2], [2], [1], [1], [0, 0, 0, 1, 1, 1], [0], [0]>} : vector<2x1x32xf32>, vector<2x16x32xf32>, vector<2x1x16xf32> -> vector<2x1x16xf32>
    "tpu.trace_stop"() : () -> ()
    %cst_99 = arith.constant dense<0xFF800000> : vector<2x1xf32>
    %311 = vector.multi_reduction <maximumf>, %310, %cst_99 [2] : vector<2x1x16xf32> to vector<2x1xf32>
    %312 = vector.shape_cast %311 : vector<2x1xf32> to vector<2x1x1xf32>
    %313 = vector.broadcast %312 : vector<2x1x1xf32> to vector<2x1x16xf32>
    %314 = arith.subf %310, %313 : vector<2x1x16xf32>
    %315 = math.exp %314 : vector<2x1x16xf32>
    %cst_100 = arith.constant dense<0.000000e+00> : vector<2x1xf32>
    %316 = vector.multi_reduction <add>, %315, %cst_100 [2] : vector<2x1x16xf32> to vector<2x1xf32>
    %317 = vector.shape_cast %316 : vector<2x1xf32> to vector<2x1x1xf32>
    %318 = tpu.reciprocal %317 {approx = true} : vector<2x1x1xf32> -> vector<2x1x1xf32>
    %319 = vector.broadcast %318 : vector<2x1x1xf32> to vector<2x1x16xf32>
    %320 = arith.mulf %315, %319 : vector<2x1x16xf32>
    "tpu.trace_start"() <{level = 10 : i32, message = "bqn,bnh->bqh"}> : () -> ()
    %cst_101 = arith.constant dense<0.000000e+00> : vector<2x1x32xf32>
    %321 = tpu.matmul %320, %301, %cst_101 {dimension_numbers = #tpu.dot_dimension_numbers<[2], [1], [1], [2], [0, 0, 0, 1, 1, 2], [0], [0]>} : vector<2x1x16xf32>, vector<2x16x32xf32>, vector<2x1x32xf32> -> vector<2x1x32xf32>
    "tpu.trace_stop"() : () -> ()
    %322 = vector.shape_cast %321 : vector<2x1x32xf32> to vector<2x32xf32>
    %c0_102 = arith.constant 0 : index
    %c0_103 = arith.constant 0 : index
    %323 = vector.load %arg21[%c0_102, %c0_103] : memref<32x32xf32, #tpu.memory_space<vmem>>, vector<32x32xf32>
    %cst_104 = arith.constant dense<0.000000e+00> : vector<2x32xf32>
    %324 = tpu.matmul %322, %323, %cst_104 {dimension_numbers = #tpu.dot_dimension_numbers<[1], [0], [0], [1], [0, 0, 1, 1], [], []>} : vector<2x32xf32>, vector<32x32xf32>, vector<2x32xf32> -> vector<2x32xf32>
    %c0_105 = arith.constant 0 : index
    %c0_106 = arith.constant 0 : index
    %325 = vector.load %arg22[%c0_105, %c0_106] : memref<32x32xf32, #tpu.memory_space<vmem>>, vector<32x32xf32>
    %cst_107 = arith.constant dense<0.000000e+00> : vector<2x32xf32>
    %326 = tpu.matmul %285, %325, %cst_107 {dimension_numbers = #tpu.dot_dimension_numbers<[1], [0], [0], [1], [0, 0, 1, 1], [], []>} : vector<2x32xf32>, vector<32x32xf32>, vector<2x32xf32> -> vector<2x32xf32>
    %327 = vector.shape_cast %326 : vector<2x32xf32> to vector<2x1x32xf32>
    "tpu.trace_start"() <{level = 10 : i32, message = "bqh,bnh->bqn"}> : () -> ()
    %cst_108 = arith.constant dense<0.000000e+00> : vector<2x1x16xf32>
    %328 = tpu.matmul %327, %306, %cst_108 {dimension_numbers = #tpu.dot_dimension_numbers<[2], [2], [1], [1], [0, 0, 0, 1, 1, 1], [0], [0]>} : vector<2x1x32xf32>, vector<2x16x32xf32>, vector<2x1x16xf32> -> vector<2x1x16xf32>
    "tpu.trace_stop"() : () -> ()
    %cst_109 = arith.constant dense<0xFF800000> : vector<2x1xf32>
    %329 = vector.multi_reduction <maximumf>, %328, %cst_109 [2] : vector<2x1x16xf32> to vector<2x1xf32>
    %330 = vector.shape_cast %329 : vector<2x1xf32> to vector<2x1x1xf32>
    %331 = vector.broadcast %330 : vector<2x1x1xf32> to vector<2x1x16xf32>
    %332 = arith.subf %328, %331 : vector<2x1x16xf32>
    %333 = math.exp %332 : vector<2x1x16xf32>
    %cst_110 = arith.constant dense<0.000000e+00> : vector<2x1xf32>
    %334 = vector.multi_reduction <add>, %333, %cst_110 [2] : vector<2x1x16xf32> to vector<2x1xf32>
    %335 = vector.shape_cast %334 : vector<2x1xf32> to vector<2x1x1xf32>
    %336 = tpu.reciprocal %335 {approx = true} : vector<2x1x1xf32> -> vector<2x1x1xf32>
    %337 = vector.broadcast %336 : vector<2x1x1xf32> to vector<2x1x16xf32>
    %338 = arith.mulf %333, %337 : vector<2x1x16xf32>
    "tpu.trace_start"() <{level = 10 : i32, message = "bqn,bnh->bqh"}> : () -> ()
    %cst_111 = arith.constant dense<0.000000e+00> : vector<2x1x32xf32>
    %339 = tpu.matmul %338, %306, %cst_111 {dimension_numbers = #tpu.dot_dimension_numbers<[2], [1], [1], [2], [0, 0, 0, 1, 1, 2], [0], [0]>} : vector<2x1x16xf32>, vector<2x16x32xf32>, vector<2x1x32xf32> -> vector<2x1x32xf32>
    "tpu.trace_stop"() : () -> ()
    %340 = vector.shape_cast %339 : vector<2x1x32xf32> to vector<2x32xf32>
    %c0_112 = arith.constant 0 : index
    %c0_113 = arith.constant 0 : index
    %341 = vector.load %arg23[%c0_112, %c0_113] : memref<32x32xf32, #tpu.memory_space<vmem>>, vector<32x32xf32>
    %cst_114 = arith.constant dense<0.000000e+00> : vector<2x32xf32>
    %342 = tpu.matmul %340, %341, %cst_114 {dimension_numbers = #tpu.dot_dimension_numbers<[1], [0], [0], [1], [0, 0, 1, 1], [], []>} : vector<2x32xf32>, vector<32x32xf32>, vector<2x32xf32> -> vector<2x32xf32>
    %343 = arith.addf %324, %285 : vector<2x32xf32>
    %344 = arith.addf %343, %342 : vector<2x32xf32>
    %c0_115 = arith.constant 0 : index
    %c0_116 = arith.constant 0 : index
    %345 = vector.load %arg24[%c0_115, %c0_116] : memref<32x32xf32, #tpu.memory_space<vmem>>, vector<32x32xf32>
    %cst_117 = arith.constant dense<0.000000e+00> : vector<2x32xf32>
    %346 = tpu.matmul %344, %345, %cst_117 {dimension_numbers = #tpu.dot_dimension_numbers<[1], [0], [0], [1], [0, 0, 1, 1], [], []>} : vector<2x32xf32>, vector<32x32xf32>, vector<2x32xf32> -> vector<2x32xf32>
    %c0_118 = arith.constant 0 : index
    %c0_119 = arith.constant 0 : index
    %347 = vector.load %arg25[%c0_118, %c0_119] : memref<32x32xf32, #tpu.memory_space<vmem>>, vector<32x32xf32>
    %cst_120 = arith.constant dense<0.000000e+00> : vector<2x32xf32>
    %348 = tpu.matmul %285, %347, %cst_120 {dimension_numbers = #tpu.dot_dimension_numbers<[1], [0], [0], [1], [0, 0, 1, 1], [], []>} : vector<2x32xf32>, vector<32x32xf32>, vector<2x32xf32> -> vector<2x32xf32>
    %349 = arith.addf %346, %348 : vector<2x32xf32>
    %c0_121 = arith.constant 0 : index
    %c0_122 = arith.constant 0 : index
    %350 = vector.load %arg26[%c0_121, %c0_122] : memref<1x32xf32, #tpu.memory_space<vmem>>, vector<1x32xf32>
    %351 = vector.broadcast %350 : vector<1x32xf32> to vector<2x32xf32>
    %352 = arith.addf %349, %351 : vector<2x32xf32>
    %cst_123 = arith.constant 0.000000e+00 : f32
    %353 = vector.broadcast %cst_123 : f32 to vector<2x32xf32>
    %354 = arith.maximumf %352, %353 : vector<2x32xf32>
    %c0_124 = arith.constant 0 : index
    %c0_125 = arith.constant 0 : index
    %355 = vector.load %arg27[%c0_124, %c0_125] : memref<32x128xf32, #tpu.memory_space<vmem>>, vector<32x128xf32>
    %cst_126 = arith.constant dense<0.000000e+00> : vector<2x128xf32>
    %356 = tpu.matmul %354, %355, %cst_126 {dimension_numbers = #tpu.dot_dimension_numbers<[1], [0], [0], [1], [0, 0, 1, 1], [], []>} : vector<2x32xf32>, vector<32x128xf32>, vector<2x128xf32> -> vector<2x128xf32>
    %c0_127 = arith.constant 0 : index
    %c0_128 = arith.constant 0 : index
    %357 = vector.load %arg28[%c0_127, %c0_128] : memref<1x128xf32, #tpu.memory_space<vmem>>, vector<1x128xf32>
    %358 = vector.broadcast %357 : vector<1x128xf32> to vector<2x128xf32>
    %359 = arith.addf %356, %358 : vector<2x128xf32>
    %c0_129 = arith.constant 0 : index
    %c0_130 = arith.constant 0 : index
    %360 = vector.load %arg29[%c0_129, %c0_130] : memref<2x128xf32, #tpu.memory_space<vmem>>, vector<2x128xf32>
    tpu.vector_store %arg29[%c0_129, %c0_130], %359 {strides = array<i32>} : memref<2x128xf32, #tpu.memory_space<vmem>>, vector<2x128xf32>,
    return
  }
}

</mosaic_0001>

<llo_original>
// kernel: base_model_forward.1
$region0: #{base_model_forward.1}
  #allocation0 [shape = 'u32[]', space=smem, size = 0x4, offset = 0x4, fixed_abs, tag = 'smem constant byte address 0x4 - core index']
  #allocation1 [shape = 'u32[144,128]{1,0:T(1,128)}', space=vmem, size = 0x12000, scoped, tag = 'internal scratch']
  %s0 = inlined_call_operand.smem [shape: u32[30], index: -1, kind: input, shape index: {}]
  %s1 = sld [smem:[%s0]]
  %s2 = scalar_lea.smem %s0, 1
  %s3 = sld [smem:[%s2]]
  %s4 = scalar_lea.smem %s0, 2
  %s5 = sld [smem:[%s4]]
  %s6 = scalar_lea.smem %s0, 3
  %s7 = sld [smem:[%s6]]
  %s8 = scalar_lea.smem %s0, 4
  %s9 = sld [smem:[%s8]]
  %s10 = scalar_lea.smem %s0, 5
  %s11 = sld [smem:[%s10]]
  %s12 = scalar_lea.smem %s0, 6
  %s13 = sld [smem:[%s12]]
  %s14 = scalar_lea.smem %s0, 7
  %s15 = sld [smem:[%s14]]
  %s16 = scalar_lea.smem %s0, 8
  %s17 = sld [smem:[%s16]]
  %s18 = scalar_lea.smem %s0, 9
  %s19 = sld [smem:[%s18]]
  %s20 = scalar_lea.smem %s0, 10
  %s21 = sld [smem:[%s20]]
  %s22 = scalar_lea.smem %s0, 11
  %s23 = sld [smem:[%s22]]
  %s24 = scalar_lea.smem %s0, 12
  %s25 = sld [smem:[%s24]]
  %s26 = scalar_lea.smem %s0, 13
  %s27 = sld [smem:[%s26]]
  %s28 = scalar_lea.smem %s0, 14
  %s29 = sld [smem:[%s28]]
  %s30 = scalar_lea.smem %s0, 15
  %s31 = sld [smem:[%s30]]
  %s32 = scalar_lea.smem %s0, 16
  %s33 = sld [smem:[%s32]]
  %s34 = scalar_lea.smem %s0, 17
  %s35 = sld [smem:[%s34]]
  %s36 = scalar_lea.smem %s0, 18
  %s37 = sld [smem:[%s36]]
  %s38 = scalar_lea.smem %s0, 19
  %s39 = sld [smem:[%s38]]
  %s40 = scalar_lea.smem %s0, 20
  %s41 = sld [smem:[%s40]]
  %s42 = scalar_lea.smem %s0, 21
  %s43 = sld [smem:[%s42]]
  %s44 = scalar_lea.smem %s0, 22
  %s45 = sld [smem:[%s44]]
  %s46 = scalar_lea.smem %s0, 23
  %s47 = sld [smem:[%s46]]
  %s48 = scalar_lea.smem %s0, 24
  %s49 = sld [smem:[%s48]]
  %s50 = scalar_lea.smem %s0, 25
  %s51 = sld [smem:[%s50]]
  %s52 = scalar_lea.smem %s0, 26
  %s53 = sld [smem:[%s52]]
  %s54 = scalar_lea.smem %s0, 27
  %s55 = sld [smem:[%s54]]
  %s56 = scalar_lea.smem %s0, 28
  %s57 = sld [smem:[%s56]]
  %s58 = scalar_lea.smem %s0, 29
  %s59 = sld [smem:[%s58]]
  %s60 = sld [smem:[#allocation0]]
  $region174: #{base_model_forward.1} parent=0
    _
  %s62 = ssub.s32 1, %s60
  %s63 = scalar_select 0, %s62, %s60
  $region1: #{base_model_forward.1} parent=0
    #allocation2 [shape = 'u8[512]{0}', space=vmem, size = 0x400, scoped, tag = 'input window, operand 9, single buffered']
    #allocation3 [shape = 's32[1]{0}', space=sflag, size = 0x4, scoped, tag = 'scoped memory for base_model_forward.1']
    #allocation4 [shape = 'u8[512]{0}', space=vmem, size = 0x400, scoped, tag = 'input window, operand 10, single buffered']
    #allocation5 [shape = 's32[1]{0}', space=sflag, size = 0x4, scoped, tag = 'scoped memory for base_model_forward.1']
    #allocation6 [shape = 'u8[512]{0}', space=vmem, size = 0x400, scoped, tag = 'input window, operand 11, single buffered']
    #allocation7 [shape = 'u8[512]{0}', space=vmem, size = 0x400, scoped, tag = 'input window, operand 12, single buffered']
    #allocation8 [shape = 's32[1]{0}', space=sflag, size = 0x4, scoped, tag = 'scoped memory for base_model_forward.1']
    #allocation9 [shape = 'u8[512]{0}', space=vmem, size = 0x400, scoped, tag = 'input window, operand 13, single buffered']
    #allocation10 [shape = 'u8[512]{0}', space=vmem, size = 0x400, scoped, tag = 'input window, operand 14, single buffered']
    #allocation11 [shape = 's32[1]{0}', space=sflag, size = 0x4, scoped, tag = 'scoped memory for base_model_forward.1']
    #allocation12 [shape = 'u8[16384]{0}', space=vmem, size = 0x4000, scoped, tag = 'input window, operand 21, single buffered']
    #allocation13 [shape = 'u8[16384]{0}', space=vmem, size = 0x4000, scoped, tag = 'input window, operand 22, single buffered']
    #allocation14 [shape = 's32[1]{0}', space=sflag, size = 0x4, scoped, tag = 'scoped memory for base_model_forward.1']
    #allocation15 [shape = 'u8[16384]{0}', space=vmem, size = 0x4000, scoped, tag = 'input window, operand 23, single buffered']
    #allocation16 [shape = 'u8[16384]{0}', space=vmem, size = 0x4000, scoped, tag = 'input window, operand 24, single buffered']
    #allocation17 [shape = 's32[1]{0}', space=sflag, size = 0x4, scoped, tag = 'scoped memory for base_model_forward.1']
    #allocation18 [shape = 'u8[16384]{0}', space=vmem, size = 0x4000, scoped, tag = 'input window, operand 25, single buffered']
    #allocation19 [shape = 'u8[512]{0}', space=vmem, size = 0x400, scoped, tag = 'input window, operand 26, single buffered']
    #allocation20 [shape = 's32[1]{0}', space=sflag, size = 0x4, scoped, tag = 'scoped memory for base_model_forward.1']
    %64 = vsyncpa [#allocation3], 0
    %65 = vsyncpa [#allocation5], 0
    %66 = vsyncpa [#allocation8], 0
    %67 = vsyncpa [#allocation11], 0
    %68 = vsyncpa [#allocation14], 0
    %69 = vsyncpa [#allocation17], 0
    %70 = vsyncpa [#allocation20], 0
    // Predicated region
    $region2: #{base_model_forward.1} parent=1 // pred_check
      _
    $region3: #{base_model_forward.1} parent=1 // pred_check_branch
      %72 = sbr.rel (0) target = $region5
    $region4: #{base_model_forward.1} parent=1 // pred_region
      _
    $region5: #{base_model_forward.1} parent=1 // pred_fallthru
      _
    // Predicated region
    $region6: #{base_model_forward.1} parent=1 // pred_check
      _
    $region7: #{base_model_forward.1} parent=1 // pred_check_branch
      %74 = sbr.rel (0) target = $region9
    $region8: #{base_model_forward.1} parent=1 // pred_region
      _
    $region9: #{base_model_forward.1} parent=1 // pred_fallthru
      _
    // Predicated region
    $region10: #{base_model_forward.1} parent=1 // pred_check
      _
    $region11: #{base_model_forward.1} parent=1 // pred_check_branch
      %76 = sbr.rel (0) target = $region13
    $region12: #{base_model_forward.1} parent=1 // pred_region
      _
    $region13: #{base_model_forward.1} parent=1 // pred_fallthru
      _
    // Predicated region
    $region14: #{base_model_forward.1} parent=1 // pred_check
      _
    $region15: #{base_model_forward.1} parent=1 // pred_check_branch
      %78 = sbr.rel (0) target = $region17
    $region16: #{base_model_forward.1} parent=1 // pred_region
      _
    $region17: #{base_model_forward.1} parent=1 // pred_fallthru
      _
    // Predicated region
    $region18: #{base_model_forward.1} parent=1 // pred_check
      _
    $region19: #{base_model_forward.1} parent=1 // pred_check_branch
      %80 = sbr.rel (0) target = $region21
    $region20: #{base_model_forward.1} parent=1 // pred_region
      _
    $region21: #{base_model_forward.1} parent=1 // pred_fallthru
      _
    // Predicated region
    $region22: #{base_model_forward.1} parent=1 // pred_check
      _
    $region23: #{base_model_forward.1} parent=1 // pred_check_branch
      %82 = sbr.rel (0) target = $region25
    $region24: #{base_model_forward.1} parent=1 // pred_region
      _
    $region25: #{base_model_forward.1} parent=1 // pred_fallthru
      _
    // Predicated region
    $region26: #{base_model_forward.1} parent=1 // pred_check
      _
    $region27: #{base_model_forward.1} parent=1 // pred_check_branch
      %84 = sbr.rel (0) target = $region29
    $region28: #{base_model_forward.1} parent=1 // pred_region
      _
    $region29: #{base_model_forward.1} parent=1 // pred_fallthru
      _
    // Predicated region
    $region30: #{base_model_forward.1} parent=1 // pred_check
      _
    $region31: #{base_model_forward.1} parent=1 // pred_check_branch
      %86 = sbr.rel (0) target = $region33
    $region32: #{base_model_forward.1} parent=1 // pred_region
      _
    $region33: #{base_model_forward.1} parent=1 // pred_fallthru
      _
    // Predicated region
    $region34: #{base_model_forward.1} parent=1 // pred_check
      _
    $region35: #{base_model_forward.1} parent=1 // pred_check_branch
      %88 = sbr.rel (0) target = $region37
    $region36: #{base_model_forward.1} parent=1 // pred_region
      _
    $region37: #{base_model_forward.1} parent=1 // pred_fallthru
      _
    // Predicated region
    $region38: #{base_model_forward.1} parent=1 // pred_check
      _
    $region39: #{base_model_forward.1} parent=1 // pred_check_branch
      %90 = sbr.rel (0) target = $region41
    $region40: #{base_model_forward.1} parent=1 // pred_region
      %s92 = ssub.s32 16, 16
      %93 = vsyncadd [#allocation3], %s92
      %s95 = sshll.u32 [#allocation2], 4
      %s96 = int_to_ptr.vmem [resolvable:$true] %s95
      %98 = dma.hbm_to_vmem [thread:$0]  %s19, 16, %s96, [#allocation3]
    $region41: #{base_model_forward.1} parent=1 // pred_fallthru
      _
    // Predicated region
    $region42: #{base_model_forward.1} parent=1 // pred_check
      _
    $region43: #{base_model_forward.1} parent=1 // pred_check_branch
      %100 = sbr.rel (0) target = $region45
    $region44: #{base_model_forward.1} parent=1 // pred_region
      %s102 = ssub.s32 16, 16
      %103 = vsyncadd [#allocation5], %s102
      %s105 = sshll.u32 [#allocation4], 4
      %s106 = int_to_ptr.vmem [resolvable:$true] %s105
      %108 = dma.hbm_to_vmem [thread:$0]  %s21, 16, %s106, [#allocation5]
    $region45: #{base_model_forward.1} parent=1 // pred_fallthru
      _
    // Predicated region
    $region46: #{base_model_forward.1} parent=1 // pred_check
      _
    $region47: #{base_model_forward.1} parent=1 // pred_check_branch
      %110 = sbr.rel (0) target = $region49
    $region48: #{base_model_forward.1} parent=1 // pred_region
      %s112 = ssub.s32 16, 16
      %113 = vsyncadd [#allocation5], %s112
      %s115 = sshll.u32 [#allocation6], 4
      %s116 = int_to_ptr.vmem [resolvable:$true] %s115
      %118 = dma.hbm_to_vmem [thread:$0]  %s23, 16, %s116, [#allocation5]
    $region49: #{base_model_forward.1} parent=1 // pred_fallthru
      _
    // Predicated region
    $region50: #{base_model_forward.1} parent=1 // pred_check
      _
    $region51: #{base_model_forward.1} parent=1 // pred_check_branch
      %120 = sbr.rel (0) target = $region53
    $region52: #{base_model_forward.1} parent=1 // pred_region
      %s122 = ssub.s32 16, 16
      %123 = vsyncadd [#allocation8], %s122
      %s125 = sshll.u32 [#allocation7], 4
      %s126 = int_to_ptr.vmem [resolvable:$true] %s125
      %128 = dma.hbm_to_vmem [thread:$0]  %s25, 16, %s126, [#allocation8]
    $region53: #{base_model_forward.1} parent=1 // pred_fallthru
      _
    // Predicated region
    $region54: #{base_model_forward.1} parent=1 // pred_check
      _
    $region55: #{base_model_forward.1} parent=1 // pred_check_branch
      %130 = sbr.rel (0) target = $region57
    $region56: #{base_model_forward.1} parent=1 // pred_region
      %s132 = ssub.s32 16, 16
      %133 = vsyncadd [#allocation8], %s132
      %s135 = sshll.u32 [#allocation9], 4
      %s136 = int_to_ptr.vmem [resolvable:$true] %s135
      %138 = dma.hbm_to_vmem [thread:$0]  %s27, 16, %s136, [#allocation8]
    $region57: #{base_model_forward.1} parent=1 // pred_fallthru
      _
    // Predicated region
    $region58: #{base_model_forward.1} parent=1 // pred_check
      _
    $region59: #{base_model_forward.1} parent=1 // pred_check_branch
      %140 = sbr.rel (0) target = $region61
    $region60: #{base_model_forward.1} parent=1 // pred_region
      %s142 = ssub.s32 16, 16
      %143 = vsyncadd [#allocation11], %s142
      %s145 = sshll.u32 [#allocation10], 4
      %s146 = int_to_ptr.vmem [resolvable:$true] %s145
      %148 = dma.hbm_to_vmem [thread:$0]  %s29, 16, %s146, [#allocation11]
    $region61: #{base_model_forward.1} parent=1 // pred_fallthru
      _
    // Predicated region
    $region62: #{base_model_forward.1} parent=1 // pred_check
      _
    $region63: #{base_model_forward.1} parent=1 // pred_check_branch
      %150 = sbr.rel (0) target = $region65
    $region64: #{base_model_forward.1} parent=1 // pred_region
      _
    $region65: #{base_model_forward.1} parent=1 // pred_fallthru
      _
    // Predicated region
    $region66: #{base_model_forward.1} parent=1 // pred_check
      _
    $region67: #{base_model_forward.1} parent=1 // pred_check_branch
      %152 = sbr.rel (0) target = $region69
    $region68: #{base_model_forward.1} parent=1 // pred_region
      _
    $region69: #{base_model_forward.1} parent=1 // pred_fallthru
      _
    // Predicated region
    $region70: #{base_model_forward.1} parent=1 // pred_check
      _
    $region71: #{base_model_forward.1} parent=1 // pred_check_branch
      %154 = sbr.rel (0) target = $region73
    $region72: #{base_model_forward.1} parent=1 // pred_region
      _
    $region73: #{base_model_forward.1} parent=1 // pred_fallthru
      _
    // Predicated region
    $region74: #{base_model_forward.1} parent=1 // pred_check
      _
    $region75: #{base_model_forward.1} parent=1 // pred_check_branch
      %156 = sbr.rel (0) target = $region77
    $region76: #{base_model_forward.1} parent=1 // pred_region
      _
    $region77: #{base_model_forward.1} parent=1 // pred_fallthru
      _
    // Predicated region
    $region78: #{base_model_forward.1} parent=1 // pred_check
      _
    $region79: #{base_model_forward.1} parent=1 // pred_check_branch
      %158 = sbr.rel (0) target = $region81
    $region80: #{base_model_forward.1} parent=1 // pred_region
      _
    $region81: #{base_model_forward.1} parent=1 // pred_fallthru
      _
    // Predicated region
    $region82: #{base_model_forward.1} parent=1 // pred_check
      _
    $region83: #{base_model_forward.1} parent=1 // pred_check_branch
      %160 = sbr.rel (0) target = $region85
    $region84: #{base_model_forward.1} parent=1 // pred_region
      _
    $region85: #{base_model_forward.1} parent=1 // pred_fallthru
      _
    // Predicated region
    $region86: #{base_model_forward.1} parent=1 // pred_check
      _
    $region87: #{base_model_forward.1} parent=1 // pred_check_branch
      %162 = sbr.rel (0) target = $region89
    $region88: #{base_model_forward.1} parent=1 // pred_region
      %s164 = ssub.s32 512, 512
      %165 = vsyncadd [#allocation11], %s164
      %s166 = sshll.u32 [#allocation12], 4
      %s167 = int_to_ptr.vmem [resolvable:$true] %s166
      %172 = dma.hbm_to_vmem [thread:$0]  %s43, 512, %s167, [#allocation11], 128, 128, 8
    $region89: #{base_model_forward.1} parent=1 // pred_fallthru
      _
    // Predicated region
    $region90: #{base_model_forward.1} parent=1 // pred_check
      _
    $region91: #{base_model_forward.1} parent=1 // pred_check_branch
      %174 = sbr.rel (0) target = $region93
    $region92: #{base_model_forward.1} parent=1 // pred_region
      %s176 = ssub.s32 512, 512
      %177 = vsyncadd [#allocation14], %s176
      %s178 = sshll.u32 [#allocation13], 4
      %s179 = int_to_ptr.vmem [resolvable:$true] %s178
      %184 = dma.hbm_to_vmem [thread:$0]  %s45, 512, %s179, [#allocation14], 128, 128, 8
    $region93: #{base_model_forward.1} parent=1 // pred_fallthru
      _
    // Predicated region
    $region94: #{base_model_forward.1} parent=1 // pred_check
      _
    $region95: #{base_model_forward.1} parent=1 // pred_check_branch
      %186 = sbr.rel (0) target = $region97
    $region96: #{base_model_forward.1} parent=1 // pred_region
      %s188 = ssub.s32 512, 512
      %189 = vsyncadd [#allocation14], %s188
      %s190 = sshll.u32 [#allocation15], 4
      %s191 = int_to_ptr.vmem [resolvable:$true] %s190
      %196 = dma.hbm_to_vmem [thread:$0]  %s47, 512, %s191, [#allocation14], 128, 128, 8
    $region97: #{base_model_forward.1} parent=1 // pred_fallthru
      _
    // Predicated region
    $region98: #{base_model_forward.1} parent=1 // pred_check
      _
    $region99: #{base_model_forward.1} parent=1 // pred_check_branch
      %198 = sbr.rel (0) target = $region101
    $region100: #{base_model_forward.1} parent=1 // pred_region
      %s200 = ssub.s32 512, 512
      %201 = vsyncadd [#allocation17], %s200
      %s202 = sshll.u32 [#allocation16], 4
      %s203 = int_to_ptr.vmem [resolvable:$true] %s202
      %208 = dma.hbm_to_vmem [thread:$0]  %s49, 512, %s203, [#allocation17], 128, 128, 8
    $region101: #{base_model_forward.1} parent=1 // pred_fallthru
      _
    // Predicated region
    $region102: #{base_model_forward.1} parent=1 // pred_check
      _
    $region103: #{base_model_forward.1} parent=1 // pred_check_branch
      %210 = sbr.rel (0) target = $region105
    $region104: #{base_model_forward.1} parent=1 // pred_region
      %s212 = ssub.s32 512, 512
      %213 = vsyncadd [#allocation17], %s212
      %s214 = sshll.u32 [#allocation18], 4
      %s215 = int_to_ptr.vmem [resolvable:$true] %s214
      %220 = dma.hbm_to_vmem [thread:$0]  %s51, 512, %s215, [#allocation17], 128, 128, 8
    $region105: #{base_model_forward.1} parent=1 // pred_fallthru
      _
    // Predicated region
    $region106: #{base_model_forward.1} parent=1 // pred_check
      _
    $region107: #{base_model_forward.1} parent=1 // pred_check_branch
      %222 = sbr.rel (0) target = $region109
    $region108: #{base_model_forward.1} parent=1 // pred_region
      %s224 = ssub.s32 16, 16
      %225 = vsyncadd [#allocation20], %s224
      %s227 = sshll.u32 [#allocation19], 4
      %s228 = int_to_ptr.vmem [resolvable:$true] %s227
      %230 = dma.hbm_to_vmem [thread:$0]  %s53, 16, %s228, [#allocation20]
    $region109: #{base_model_forward.1} parent=1 // pred_fallthru
      _
    // Predicated region
    $region110: #{base_model_forward.1} parent=1 // pred_check
      _
    $region111: #{base_model_forward.1} parent=1 // pred_check_branch
      %232 = sbr.rel (0) target = $region113
    $region112: #{base_model_forward.1} parent=1 // pred_region
      _
    $region113: #{base_model_forward.1} parent=1 // pred_fallthru
      _
    // Predicated region
    $region114: #{base_model_forward.1} parent=1 // pred_check
      _
    $region115: #{base_model_forward.1} parent=1 // pred_check_branch
      %234 = sbr.rel (0) target = $region117
    $region116: #{base_model_forward.1} parent=1 // pred_region
      _
    $region117: #{base_model_forward.1} parent=1 // pred_fallthru
      _
    // Predicated region
    $region118: #{base_model_forward.1} parent=1 // pred_check
      _
    $region119: #{base_model_forward.1} parent=1 // pred_check_branch
      %236 = sbr.rel (0) target = $region121
    $region120: #{base_model_forward.1} parent=1 // pred_region
      %237 = dma.done [#allocation3], 16
    $region121: #{base_model_forward.1} parent=1 // pred_fallthru
      _
    // Predicated region
    $region122: #{base_model_forward.1} parent=1 // pred_check
      _
    $region123: #{base_model_forward.1} parent=1 // pred_check_branch
      %239 = sbr.rel (0) target = $region125
    $region124: #{base_model_forward.1} parent=1 // pred_region
      %240 = dma.done [#allocation5], 16
    $region125: #{base_model_forward.1} parent=1 // pred_fallthru
      _
    // Predicated region
    $region126: #{base_model_forward.1} parent=1 // pred_check
      _
    $region127: #{base_model_forward.1} parent=1 // pred_check_branch
      %242 = sbr.rel (0) target = $region129
    $region128: #{base_model_forward.1} parent=1 // pred_region
      %243 = dma.done [#allocation5], 16
    $region129: #{base_model_forward.1} parent=1 // pred_fallthru
      _
    // Predicated region
    $region130: #{base_model_forward.1} parent=1 // pred_check
      _
    $region131: #{base_model_forward.1} parent=1 // pred_check_branch
      %245 = sbr.rel (0) target = $region133
    $region132: #{base_model_forward.1} parent=1 // pred_region
      %246 = dma.done [#allocation8], 16
    $region133: #{base_model_forward.1} parent=1 // pred_fallthru
      _
    // Predicated region
    $region134: #{base_model_forward.1} parent=1 // pred_check
      _
    $region135: #{base_model_forward.1} parent=1 // pred_check_branch
      %248 = sbr.rel (0) target = $region137
    $region136: #{base_model_forward.1} parent=1 // pred_region
      %249 = dma.done [#allocation8], 16
    $region137: #{base_model_forward.1} parent=1 // pred_fallthru
      _
    // Predicated region
    $region138: #{base_model_forward.1} parent=1 // pred_check
      _
    $region139: #{base_model_forward.1} parent=1 // pred_check_branch
      %251 = sbr.rel (0) target = $region141
    $region140: #{base_model_forward.1} parent=1 // pred_region
      %252 = dma.done [#allocation11], 16
    $region141: #{base_model_forward.1} parent=1 // pred_fallthru
      _
    // Predicated region
    $region142: #{base_model_forward.1} parent=1 // pred_check
      _
    $region143: #{base_model_forward.1} parent=1 // pred_check_branch
      %254 = sbr.rel (0) target = $region145
    $region144: #{base_model_forward.1} parent=1 // pred_region
      %255 = dma.done [#allocation11], 512
    $region145: #{base_model_forward.1} parent=1 // pred_fallthru
      _
    // Predicated region
    $region146: #{base_model_forward.1} parent=1 // pred_check
      _
    $region147: #{base_model_forward.1} parent=1 // pred_check_branch
      %257 = sbr.rel (0) target = $region149
    $region148: #{base_model_forward.1} parent=1 // pred_region
      %258 = dma.done [#allocation14], 512
    $region149: #{base_model_forward.1} parent=1 // pred_fallthru
      _
    // Predicated region
    $region150: #{base_model_forward.1} parent=1 // pred_check
      _
    $region151: #{base_model_forward.1} parent=1 // pred_check_branch
      %260 = sbr.rel (0) target = $region153
    $region152: #{base_model_forward.1} parent=1 // pred_region
      %261 = dma.done [#allocation14], 512
    $region153: #{base_model_forward.1} parent=1 // pred_fallthru
      _
    // Predicated region
    $region154: #{base_model_forward.1} parent=1 // pred_check
      _
    $region155: #{base_model_forward.1} parent=1 // pred_check_branch
      %263 = sbr.rel (0) target = $region157
    $region156: #{base_model_forward.1} parent=1 // pred_region
      %264 = dma.done [#allocation17], 512
    $region157: #{base_model_forward.1} parent=1 // pred_fallthru
      _
    // Predicated region
    $region158: #{base_model_forward.1} parent=1 // pred_check
      _
    $region159: #{base_model_forward.1} parent=1 // pred_check_branch
      %266 = sbr.rel (0) target = $region161
    $region160: #{base_model_forward.1} parent=1 // pred_region
      %267 = dma.done [#allocation17], 512
    $region161: #{base_model_forward.1} parent=1 // pred_fallthru
      _
    // Predicated region
    $region162: #{base_model_forward.1} parent=1 // pred_check
      _
    $region163: #{base_model_forward.1} parent=1 // pred_check_branch
      %269 = sbr.rel (0) target = $region165
    $region164: #{base_model_forward.1} parent=1 // pred_region
      %270 = dma.done [#allocation20], 16
    $region165: #{base_model_forward.1} parent=1 // pred_fallthru
      _
    %v271 = vld [vmem:[%s1] sm:$0xff]
    %v272 = vld [vmem:[%s1 + $0x8] sm:$0xff]
    %v273 = vlaneseq
    %v274 = vand.u32 %v273, 127
    %275 = vset.pattern.permute.xlu0 0
    %276 = vperm.xlu0 %275, %v271
    %v277 = vpop.permute.xlu0 %276
    %278 = vset.pattern.permute.xlu0 0
    %279 = vperm.xlu0 %278, %v272
    %v280 = vpop.permute.xlu0 %279
    %vm281 = vcmp.eq.s32.totalorder %v277, %v274
    %vm282 = vcmp.eq.s32.totalorder %v280, %v274
    %v283 = vsel %vm281, 1, 0
    %v284 = vsel %vm282, 1, 0
    %v285 = vcvt.s32.f32 %v283
    %v286 = vcvt.s32.f32 %v284
    %v287 = vld [vmem:[%s5] sm:$0xff]
    %v288 = vld [vmem:[%s5 + $0x8] sm:$0xff]
    %v289 = vld [vmem:[%s5 + $0x10] sm:$0xff]
    %v290 = vld [vmem:[%s5 + $0x18] sm:$0xff]
    %v291 = vld [vmem:[%s5 + $0x20] sm:$0xff]
    %v292 = vld [vmem:[%s5 + $0x28] sm:$0xff]
    %v293 = vld [vmem:[%s5 + $0x30] sm:$0x3]
    %vm294 = vcmask 408576
    %v296 = vsel %vm294, %v285, 0
    %v299 = vsel %vm294, %v286, 0
    %vm301 = vcmask 1041408
    %v303 = vsel %vm301, %v293, 0
    %305 = vmatprep.subr.mxu0 0.0
    %306 = vmatpush1.msra.mxu0 %v287
    %307 = vmatprep.subr.mxu0 0.0
    %308 = vmatpush1.msra.mxu0 %v288
    %309 = vmatprep.subr.mxu0 0.0
    %310 = vmatpush1.msra.mxu0 %v289
    %311 = vmatprep.subr.mxu0 0.0
    %312 = vmatpush1.msra.mxu0 %v290
    %313 = vmatprep.subr.mxu0 0.0
    %314 = vmatpush1.msra.mxu0 %v291
    %315 = vmatprep.subr.mxu0 0.0
    %316 = vmatpush1.msra.mxu0 %v292
    %317 = vmatprep.subr.mxu0 0.0
    %318 = vmatpush1.msra.mxu0 %v303
    %319 = vmatprep.subr.mxu0 0.0
    %320 = vmatpush1.msra.mxu0 0.0
    %321 = vmatprep.subr.mxu0 0.0
    %322 = vmatpush1.msra.mxu0 0.0
    %323 = vmatprep.subr.mxu0 0.0
    %324 = vmatpush1.msra.mxu0 0.0
    %325 = vmatprep.subr.mxu0 0.0
    %326 = vmatpush1.msra.mxu0 0.0
    %327 = vmatprep.subr.mxu0 0.0
    %328 = vmatpush1.msra.mxu0 0.0
    %329 = vmatprep.subr.mxu0 0.0
    %330 = vmatpush1.msra.mxu0 0.0
    %331 = vmatprep.subr.mxu0 0.0
    %332 = vmatpush1.msra.mxu0 0.0
    %333 = vmatprep.subr.mxu0 0.0
    %334 = vmatpush1.msra.mxu0 0.0
    %335 = vmatprep.subr.mxu0 0.0
    %336 = vmatpush1.msra.mxu0 0.0
    %337 = vmatprep.subr.mxu0 0.0
    %338 = vmatpush1.msra.mxu0 0.0
    %339 = vmatprep.subr.mxu0 0.0
    %340 = vmatpush1.msra.mxu0 0.0
    %341 = vmatprep.subr.mxu0 0.0
    %342 = vmatpush1.msra.mxu0 0.0
    %343 = vmatprep.subr.mxu0 0.0
    %344 = vmatpush1.msra.mxu0 0.0
    %345 = vmatprep.subr.mxu0 0.0
    %346 = vmatpush1.msra.mxu0 0.0
    %347 = vmatprep.subr.mxu0 0.0
    %348 = vmatpush1.msra.mxu0 0.0
    %349 = vmatprep.subr.mxu0 0.0
    %350 = vmatpush1.msra.mxu0 0.0
    %351 = vmatprep.subr.mxu0 0.0
    %352 = vmatpush1.msra.mxu0 0.0
    %353 = vmatprep.subr.mxu0 0.0
    %354 = vmatpush1.msra.mxu0 0.0
    %355 = vmatprep.subr.mxu0 0.0
    %356 = vmatpush1.msra.mxu0 0.0
    %357 = vmatprep.subr.mxu0 0.0
    %358 = vmatpush1.msra.mxu0 0.0
    %359 = vmatprep.subr.mxu0 0.0
    %360 = vmatpush1.msra.mxu0 0.0
    %361 = vmatprep.subr.mxu0 0.0
    %362 = vmatpush1.msra.mxu0 0.0
    %363 = vmatprep.subr.mxu0 0.0
    %364 = vmatpush1.msra.mxu0 0.0
    %365 = vmatprep.subr.mxu0 0.0
    %366 = vmatpush1.msra.mxu0 0.0
    %367 = vmatprep.subr.mxu0 0.0
    %368 = vmatpush1.msra.mxu0 0.0
    %369 = vmatprep.mubr.f32.mxu0 0.0
    %370 = vmatmul.mubr.f32.gmra.mrb[0].mxu0 %v296
    %v371 = vpop.f32.mrb[0].mxu0
    %v372 = vadd.f32 0.0, %v371
    %v373 = vpop.f32.mrb[0].mxu0
    %374 = vmatprep.mubr.f32.mxu0 0.0
    %375 = vmatmul.mubr.f32.gmra.mrb[0].mxu0 %v299
    %v376 = vpop.f32.mrb[0].mxu0
    %v377 = vadd.f32 0.0, %v376
    %v378 = vpop.f32.mrb[0].mxu0
    %379 = vdwg.mxu0
    %v380 = vld [vmem:[%s7] sm:$0xff]
    %v381 = vld [vmem:[%s7 + $0x8] sm:$0xff]
    %v382 = vld [vmem:[%s7 + $0x10] sm:$0xff]
    %v383 = vld [vmem:[%s7 + $0x18] sm:$0xff]
    %v384 = vld [vmem:[#allocation2] sm:$0x1]
    %v386 = vlaneseq
    %v387 = vshrl.u32 %v386, 7
    %v388 = vsub.s32 0, %v387
    %v389 = vrot.slane %v384, %v388
    %vm391 = vcmask 261120
    %v393 = vsel %vm391, %v372, 0
    %v396 = vsel %vm391, %v377, 0
    %398 = vmatprep.subr.mxu0 0.0
    %399 = vmatpush1.msra.mxu0 %v380
    %400 = vmatprep.subr.mxu0 0.0
    %401 = vmatpush1.msra.mxu0 %v381
    %402 = vmatprep.subr.mxu0 0.0
    %403 = vmatpush1.msra.mxu0 %v382
    %404 = vmatprep.subr.mxu0 0.0
    %405 = vmatpush1.msra.mxu0 %v383
    %406 = vmatprep.subr.mxu0 0.0
    %407 = vmatpush1.msra.mxu0 0.0
    %408 = vmatprep.subr.mxu0 0.0
    %409 = vmatpush1.msra.mxu0 0.0
    %410 = vmatprep.subr.mxu0 0.0
    %411 = vmatpush1.msra.mxu0 0.0
    %412 = vmatprep.subr.mxu0 0.0
    %413 = vmatpush1.msra.mxu0 0.0
    %414 = vmatprep.subr.mxu0 0.0
    %415 = vmatpush1.msra.mxu0 0.0
    %416 = vmatprep.subr.mxu0 0.0
    %417 = vmatpush1.msra.mxu0 0.0
    %418 = vmatprep.subr.mxu0 0.0
    %419 = vmatpush1.msra.mxu0 0.0
    %420 = vmatprep.subr.mxu0 0.0
    %421 = vmatpush1.msra.mxu0 0.0
    %422 = vmatprep.subr.mxu0 0.0
    %423 = vmatpush1.msra.mxu0 0.0
    %424 = vmatprep.subr.mxu0 0.0
    %425 = vmatpush1.msra.mxu0 0.0
    %426 = vmatprep.subr.mxu0 0.0
    %427 = vmatpush1.msra.mxu0 0.0
    %428 = vmatprep.subr.mxu0 0.0
    %429 = vmatpush1.msra.mxu0 0.0
    %430 = vmatprep.subr.mxu0 0.0
    %431 = vmatpush1.msra.mxu0 0.0
    %432 = vmatprep.subr.mxu0 0.0
    %433 = vmatpush1.msra.mxu0 0.0
    %434 = vmatprep.subr.mxu0 0.0
    %435 = vmatpush1.msra.mxu0 0.0
    %436 = vmatprep.subr.mxu0 0.0
    %437 = vmatpush1.msra.mxu0 0.0
    %438 = vmatprep.subr.mxu0 0.0
    %439 = vmatpush1.msra.mxu0 0.0
    %440 = vmatprep.subr.mxu0 0.0
    %441 = vmatpush1.msra.mxu0 0.0
    %442 = vmatprep.subr.mxu0 0.0
    %443 = vmatpush1.msra.mxu0 0.0
    %444 = vmatprep.subr.mxu0 0.0
    %445 = vmatpush1.msra.mxu0 0.0
    %446 = vmatprep.subr.mxu0 0.0
    %447 = vmatpush1.msra.mxu0 0.0
    %448 = vmatprep.subr.mxu0 0.0
    %449 = vmatpush1.msra.mxu0 0.0
    %450 = vmatprep.subr.mxu0 0.0
    %451 = vmatpush1.msra.mxu0 0.0
    %452 = vmatprep.subr.mxu0 0.0
    %453 = vmatpush1.msra.mxu0 0.0
    %454 = vmatprep.subr.mxu0 0.0
    %455 = vmatpush1.msra.mxu0 0.0
    %456 = vmatprep.subr.mxu0 0.0
    %457 = vmatpush1.msra.mxu0 0.0
    %458 = vmatprep.subr.mxu0 0.0
    %459 = vmatpush1.msra.mxu0 0.0
    %460 = vmatprep.subr.mxu0 0.0
    %461 = vmatpush1.msra.mxu0 0.0
    %462 = vmatprep.mubr.f32.mxu0 0.0
    %463 = vmatmul.mubr.f32.gmra.mrb[0].mxu0 %v393
    %v464 = vpop.f32.mrb[0].mxu0
    %v465 = vadd.f32 %v389, %v464
    %v466 = vpop.f32.mrb[0].mxu0
    %467 = vmatprep.mubr.f32.mxu0 0.0
    %468 = vmatmul.mubr.f32.gmra.mrb[0].mxu0 %v396
    %v469 = vpop.f32.mrb[0].mxu0
    %v470 = vadd.f32 %v389, %v469
    %v471 = vpop.f32.mrb[0].mxu0
    %472 = vdwg.mxu0
    %v473 = vld [vmem:[%s9] sm:$0xff]
    %v474 = vld [vmem:[%s9 + $0x8] sm:$0xff]
    %v475 = vld [vmem:[%s9 + $0x10] sm:$0xff]
    %v476 = vld [vmem:[%s9 + $0x18] sm:$0xff]
    %v477 = vld [vmem:[#allocation4] sm:$0x1]
    %v479 = vlaneseq
    %v480 = vshrl.u32 %v479, 7
    %v481 = vsub.s32 0, %v480
    %v482 = vrot.slane %v477, %v481
    %484 = vmatprep.subr.mxu0 0.0
    %485 = vmatpush1.msra.mxu0 %v473
    %486 = vmatprep.subr.mxu0 0.0
    %487 = vmatpush1.msra.mxu0 %v474
    %488 = vmatprep.subr.mxu0 0.0
    %489 = vmatpush1.msra.mxu0 %v475
    %490 = vmatprep.subr.mxu0 0.0
    %491 = vmatpush1.msra.mxu0 %v476
    %492 = vmatprep.subr.mxu0 0.0
    %493 = vmatpush1.msra.mxu0 0.0
    %494 = vmatprep.subr.mxu0 0.0
    %495 = vmatpush1.msra.mxu0 0.0
    %496 = vmatprep.subr.mxu0 0.0
    %497 = vmatpush1.msra.mxu0 0.0
    %498 = vmatprep.subr.mxu0 0.0
    %499 = vmatpush1.msra.mxu0 0.0
    %500 = vmatprep.subr.mxu0 0.0
    %501 = vmatpush1.msra.mxu0 0.0
    %502 = vmatprep.subr.mxu0 0.0
    %503 = vmatpush1.msra.mxu0 0.0
    %504 = vmatprep.subr.mxu0 0.0
    %505 = vmatpush1.msra.mxu0 0.0
    %506 = vmatprep.subr.mxu0 0.0
    %507 = vmatpush1.msra.mxu0 0.0
    %508 = vmatprep.subr.mxu0 0.0
    %509 = vmatpush1.msra.mxu0 0.0
    %510 = vmatprep.subr.mxu0 0.0
    %511 = vmatpush1.msra.mxu0 0.0
    %512 = vmatprep.subr.mxu0 0.0
    %513 = vmatpush1.msra.mxu0 0.0
    %514 = vmatprep.subr.mxu0 0.0
    %515 = vmatpush1.msra.mxu0 0.0
    %516 = vmatprep.subr.mxu0 0.0
    %517 = vmatpush1.msra.mxu0 0.0
    %518 = vmatprep.subr.mxu0 0.0
    %519 = vmatpush1.msra.mxu0 0.0
    %520 = vmatprep.subr.mxu0 0.0
    %521 = vmatpush1.msra.mxu0 0.0
    %522 = vmatprep.subr.mxu0 0.0
    %523 = vmatpush1.msra.mxu0 0.0
    %524 = vmatprep.subr.mxu0 0.0
    %525 = vmatpush1.msra.mxu0 0.0
    %526 = vmatprep.subr.mxu0 0.0
    %527 = vmatpush1.msra.mxu0 0.0
    %528 = vmatprep.subr.mxu0 0.0
    %529 = vmatpush1.msra.mxu0 0.0
    %530 = vmatprep.subr.mxu0 0.0
    %531 = vmatpush1.msra.mxu0 0.0
    %532 = vmatprep.subr.mxu0 0.0
    %533 = vmatpush1.msra.mxu0 0.0
    %534 = vmatprep.subr.mxu0 0.0
    %535 = vmatpush1.msra.mxu0 0.0
    %536 = vmatprep.subr.mxu0 0.0
    %537 = vmatpush1.msra.mxu0 0.0
    %538 = vmatprep.subr.mxu0 0.0
    %539 = vmatpush1.msra.mxu0 0.0
    %540 = vmatprep.subr.mxu0 0.0
    %541 = vmatpush1.msra.mxu0 0.0
    %542 = vmatprep.subr.mxu0 0.0
    %543 = vmatpush1.msra.mxu0 0.0
    %544 = vmatprep.subr.mxu0 0.0
    %545 = vmatpush1.msra.mxu0 0.0
    %546 = vmatprep.subr.mxu0 0.0
    %547 = vmatpush1.msra.mxu0 0.0
    %548 = vmatprep.mubr.f32.mxu0 0.0
    %549 = vmatmul.mubr.f32.gmra.mrb[0].mxu0 %v393
    %v550 = vpop.f32.mrb[0].mxu0
    %v551 = vadd.f32 %v482, %v550
    %v552 = vpop.f32.mrb[0].mxu0
    %553 = vmatprep.mubr.f32.mxu0 0.0
    %554 = vmatmul.mubr.f32.gmra.mrb[0].mxu0 %v396
    %v555 = vpop.f32.mrb[0].mxu0
    %v556 = vadd.f32 %v482, %v555
    %v557 = vpop.f32.mrb[0].mxu0
    %558 = vdwg.mxu0
    %v559 = vld [vmem:[%s11] sm:$0xff]
    %v560 = vld [vmem:[%s11 + $0x8] sm:$0xff]
    %v561 = vld [vmem:[%s11 + $0x10] sm:$0xff]
    %v562 = vld [vmem:[%s11 + $0x18] sm:$0xff]
    %v563 = vld [vmem:[#allocation6] sm:$0x1]
    %v565 = vlaneseq
    %v566 = vshrl.u32 %v565, 7
    %v567 = vsub.s32 0, %v566
    %v568 = vrot.slane %v563, %v567
    %570 = vmatprep.subr.mxu0 0.0
    %571 = vmatpush1.msra.mxu0 %v559
    %572 = vmatprep.subr.mxu0 0.0
    %573 = vmatpush1.msra.mxu0 %v560
    %574 = vmatprep.subr.mxu0 0.0
    %575 = vmatpush1.msra.mxu0 %v561
    %576 = vmatprep.subr.mxu0 0.0
    %577 = vmatpush1.msra.mxu0 %v562
    %578 = vmatprep.subr.mxu0 0.0
    %579 = vmatpush1.msra.mxu0 0.0
    %580 = vmatprep.subr.mxu0 0.0
    %581 = vmatpush1.msra.mxu0 0.0
    %582 = vmatprep.subr.mxu0 0.0
    %583 = vmatpush1.msra.mxu0 0.0
    %584 = vmatprep.subr.mxu0 0.0
    %585 = vmatpush1.msra.mxu0 0.0
    %586 = vmatprep.subr.mxu0 0.0
    %587 = vmatpush1.msra.mxu0 0.0
    %588 = vmatprep.subr.mxu0 0.0
    %589 = vmatpush1.msra.mxu0 0.0
    %590 = vmatprep.subr.mxu0 0.0
    %591 = vmatpush1.msra.mxu0 0.0
    %592 = vmatprep.subr.mxu0 0.0
    %593 = vmatpush1.msra.mxu0 0.0
    %594 = vmatprep.subr.mxu0 0.0
    %595 = vmatpush1.msra.mxu0 0.0
    %596 = vmatprep.subr.mxu0 0.0
    %597 = vmatpush1.msra.mxu0 0.0
    %598 = vmatprep.subr.mxu0 0.0
    %599 = vmatpush1.msra.mxu0 0.0
    %600 = vmatprep.subr.mxu0 0.0
    %601 = vmatpush1.msra.mxu0 0.0
    %602 = vmatprep.subr.mxu0 0.0
    %603 = vmatpush1.msra.mxu0 0.0
    %604 = vmatprep.subr.mxu0 0.0
    %605 = vmatpush1.msra.mxu0 0.0
    %606 = vmatprep.subr.mxu0 0.0
    %607 = vmatpush1.msra.mxu0 0.0
    %608 = vmatprep.subr.mxu0 0.0
    %609 = vmatpush1.msra.mxu0 0.0
    %610 = vmatprep.subr.mxu0 0.0
    %611 = vmatpush1.msra.mxu0 0.0
    %612 = vmatprep.subr.mxu0 0.0
    %613 = vmatpush1.msra.mxu0 0.0
    %614 = vmatprep.subr.mxu0 0.0
    %615 = vmatpush1.msra.mxu0 0.0
    %616 = vmatprep.subr.mxu0 0.0
    %617 = vmatpush1.msra.mxu0 0.0
    %618 = vmatprep.subr.mxu0 0.0
    %619 = vmatpush1.msra.mxu0 0.0
    %620 = vmatprep.subr.mxu0 0.0
    %621 = vmatpush1.msra.mxu0 0.0
    %622 = vmatprep.subr.mxu0 0.0
    %623 = vmatpush1.msra.mxu0 0.0
    %624 = vmatprep.subr.mxu0 0.0
    %625 = vmatpush1.msra.mxu0 0.0
    %626 = vmatprep.subr.mxu0 0.0
    %627 = vmatpush1.msra.mxu0 0.0
    %628 = vmatprep.subr.mxu0 0.0
    %629 = vmatpush1.msra.mxu0 0.0
    %630 = vmatprep.subr.mxu0 0.0
    %631 = vmatpush1.msra.mxu0 0.0
    %632 = vmatprep.subr.mxu0 0.0
    %633 = vmatpush1.msra.mxu0 0.0
    %634 = vmatprep.mubr.f32.mxu0 0.0
    %635 = vmatmul.mubr.f32.gmra.mrb[0].mxu0 %v393
    %v636 = vpop.f32.mrb[0].mxu0
    %v637 = vadd.f32 %v568, %v636
    %v638 = vpop.f32.mrb[0].mxu0
    %639 = vmatprep.mubr.f32.mxu0 0.0
    %640 = vmatmul.mubr.f32.gmra.mrb[0].mxu0 %v396
    %v641 = vpop.f32.mrb[0].mxu0
    %v642 = vadd.f32 %v568, %v641
    %v643 = vpop.f32.mrb[0].mxu0
    %644 = vdwg.mxu0
    %v645 = vld [vmem:[%s13] sm:$0xff]
    %v646 = vld [vmem:[%s13 + $0x8] sm:$0xff]
    %v647 = vld [vmem:[%s13 + $0x10] sm:$0xff]
    %v648 = vld [vmem:[%s13 + $0x18] sm:$0xff]
    %v649 = vld [vmem:[%s15] sm:$0xff]
    %v650 = vld [vmem:[%s15 + $0x8] sm:$0xff]
    %v651 = vld [vmem:[%s15 + $0x10] sm:$0xff]
    %v652 = vld [vmem:[%s15 + $0x18] sm:$0xff]
    %v653 = vld [vmem:[%s17] sm:$0xff]
    %v654 = vld [vmem:[%s17 + $0x8] sm:$0xff]
    %v655 = vld [vmem:[%s17 + $0x10] sm:$0xff]
    %v656 = vld [vmem:[%s17 + $0x18] sm:$0xff]
    %v657 = vld [vmem:[#allocation7] sm:$0x1]
    %v658 = vld [vmem:[#allocation9] sm:$0x1]
    %v659 = vld [vmem:[#allocation10] sm:$0x1]
    %v661 = vlaneseq
    %v662 = vshrl.u32 %v661, 7
    %v663 = vsub.s32 0, %v662
    %v664 = vrot.slane %v657, %v663
    %v667 = vsel %vm391, 0.0, 0
    %669 = vmatprep.subr.mxu0 0.0
    %670 = vmatpush1.msra.mxu0 %v645
    %671 = vmatprep.subr.mxu0 0.0
    %672 = vmatpush1.msra.mxu0 %v646
    %673 = vmatprep.subr.mxu0 0.0
    %674 = vmatpush1.msra.mxu0 %v647
    %675 = vmatprep.subr.mxu0 0.0
    %676 = vmatpush1.msra.mxu0 %v648
    %677 = vmatprep.subr.mxu0 0.0
    %678 = vmatpush1.msra.mxu0 0.0
    %679 = vmatprep.subr.mxu0 0.0
    %680 = vmatpush1.msra.mxu0 0.0
    %681 = vmatprep.subr.mxu0 0.0
    %682 = vmatpush1.msra.mxu0 0.0
    %683 = vmatprep.subr.mxu0 0.0
    %684 = vmatpush1.msra.mxu0 0.0
    %685 = vmatprep.subr.mxu0 0.0
    %686 = vmatpush1.msra.mxu0 0.0
    %687 = vmatprep.subr.mxu0 0.0
    %688 = vmatpush1.msra.mxu0 0.0
    %689 = vmatprep.subr.mxu0 0.0
    %690 = vmatpush1.msra.mxu0 0.0
    %691 = vmatprep.subr.mxu0 0.0
    %692 = vmatpush1.msra.mxu0 0.0
    %693 = vmatprep.subr.mxu0 0.0
    %694 = vmatpush1.msra.mxu0 0.0
    %695 = vmatprep.subr.mxu0 0.0
    %696 = vmatpush1.msra.mxu0 0.0
    %697 = vmatprep.subr.mxu0 0.0
    %698 = vmatpush1.msra.mxu0 0.0
    %699 = vmatprep.subr.mxu0 0.0
    %700 = vmatpush1.msra.mxu0 0.0
    %701 = vmatprep.subr.mxu0 0.0
    %702 = vmatpush1.msra.mxu0 0.0
    %703 = vmatprep.subr.mxu0 0.0
    %704 = vmatpush1.msra.mxu0 0.0
    %705 = vmatprep.subr.mxu0 0.0
    %706 = vmatpush1.msra.mxu0 0.0
    %707 = vmatprep.subr.mxu0 0.0
    %708 = vmatpush1.msra.mxu0 0.0
    %709 = vmatprep.subr.mxu0 0.0
    %710 = vmatpush1.msra.mxu0 0.0
    %711 = vmatprep.subr.mxu0 0.0
    %712 = vmatpush1.msra.mxu0 0.0
    %713 = vmatprep.subr.mxu0 0.0
    %714 = vmatpush1.msra.mxu0 0.0
    %715 = vmatprep.subr.mxu0 0.0
    %716 = vmatpush1.msra.mxu0 0.0
    %717 = vmatprep.subr.mxu0 0.0
    %718 = vmatpush1.msra.mxu0 0.0
    %719 = vmatprep.subr.mxu0 0.0
    %720 = vmatpush1.msra.mxu0 0.0
    %721 = vmatprep.subr.mxu0 0.0
    %722 = vmatpush1.msra.mxu0 0.0
    %723 = vmatprep.subr.mxu0 0.0
    %724 = vmatpush1.msra.mxu0 0.0
    %725 = vmatprep.subr.mxu0 0.0
    %726 = vmatpush1.msra.mxu0 0.0
    %727 = vmatprep.subr.mxu0 0.0
    %728 = vmatpush1.msra.mxu0 0.0
    %729 = vmatprep.subr.mxu0 0.0
    %730 = vmatpush1.msra.mxu0 0.0
    %731 = vmatprep.subr.mxu0 0.0
    %732 = vmatpush1.msra.mxu0 0.0
    %733 = vmatprep.mubr.f32.mxu0 0.0
    %734 = vmatmul.mubr.f32.gmra.mrb[0].mxu0 %v667
    %v735 = vpop.f32.mrb[0].mxu0
    %v736 = vadd.f32 %v664, %v735
    %v737 = vpop.f32.mrb[0].mxu0
    %738 = vdwg.mxu0
    %v740 = vlaneseq
    %v741 = vshrl.u32 %v740, 7
    %v742 = vsub.s32 0, %v741
    %v743 = vrot.slane %v658, %v742
    %745 = vmatprep.subr.mxu0 0.0
    %746 = vmatpush1.msra.mxu0 %v649
    %747 = vmatprep.subr.mxu0 0.0
    %748 = vmatpush1.msra.mxu0 %v650
    %749 = vmatprep.subr.mxu0 0.0
    %750 = vmatpush1.msra.mxu0 %v651
    %751 = vmatprep.subr.mxu0 0.0
    %752 = vmatpush1.msra.mxu0 %v652
    %753 = vmatprep.subr.mxu0 0.0
    %754 = vmatpush1.msra.mxu0 0.0
    %755 = vmatprep.subr.mxu0 0.0
    %756 = vmatpush1.msra.mxu0 0.0
    %757 = vmatprep.subr.mxu0 0.0
    %758 = vmatpush1.msra.mxu0 0.0
    %759 = vmatprep.subr.mxu0 0.0
    %760 = vmatpush1.msra.mxu0 0.0
    %761 = vmatprep.subr.mxu0 0.0
    %762 = vmatpush1.msra.mxu0 0.0
    %763 = vmatprep.subr.mxu0 0.0
    %764 = vmatpush1.msra.mxu0 0.0
    %765 = vmatprep.subr.mxu0 0.0
    %766 = vmatpush1.msra.mxu0 0.0
    %767 = vmatprep.subr.mxu0 0.0
    %768 = vmatpush1.msra.mxu0 0.0
    %769 = vmatprep.subr.mxu0 0.0
    %770 = vmatpush1.msra.mxu0 0.0
    %771 = vmatprep.subr.mxu0 0.0
    %772 = vmatpush1.msra.mxu0 0.0
    %773 = vmatprep.subr.mxu0 0.0
    %774 = vmatpush1.msra.mxu0 0.0
    %775 = vmatprep.subr.mxu0 0.0
    %776 = vmatpush1.msra.mxu0 0.0
    %777 = vmatprep.subr.mxu0 0.0
    %778 = vmatpush1.msra.mxu0 0.0
    %779 = vmatprep.subr.mxu0 0.0
    %780 = vmatpush1.msra.mxu0 0.0
    %781 = vmatprep.subr.mxu0 0.0
    %782 = vmatpush1.msra.mxu0 0.0
    %783 = vmatprep.subr.mxu0 0.0
    %784 = vmatpush1.msra.mxu0 0.0
    %785 = vmatprep.subr.mxu0 0.0
    %786 = vmatpush1.msra.mxu0 0.0
    %787 = vmatprep.subr.mxu0 0.0
    %788 = vmatpush1.msra.mxu0 0.0
    %789 = vmatprep.subr.mxu0 0.0
    %790 = vmatpush1.msra.mxu0 0.0
    %791 = vmatprep.subr.mxu0 0.0
    %792 = vmatpush1.msra.mxu0 0.0
    %793 = vmatprep.subr.mxu0 0.0
    %794 = vmatpush1.msra.mxu0 0.0
    %795 = vmatprep.subr.mxu0 0.0
    %796 = vmatpush1.msra.mxu0 0.0
    %797 = vmatprep.subr.mxu0 0.0
    %798 = vmatpush1.msra.mxu0 0.0
    %799 = vmatprep.subr.mxu0 0.0
    %800 = vmatpush1.msra.mxu0 0.0
    %801 = vmatprep.subr.mxu0 0.0
    %802 = vmatpush1.msra.mxu0 0.0
    %803 = vmatprep.subr.mxu0 0.0
    %804 = vmatpush1.msra.mxu0 0.0
    %805 = vmatprep.subr.mxu0 0.0
    %806 = vmatpush1.msra.mxu0 0.0
    %807 = vmatprep.subr.mxu0 0.0
    %808 = vmatpush1.msra.mxu0 0.0
    %809 = vmatprep.mubr.f32.mxu0 0.0
    %810 = vmatmul.mubr.f32.gmra.mrb[0].mxu0 %v667
    %v811 = vpop.f32.mrb[0].mxu0
    %v812 = vadd.f32 %v743, %v811
    %v813 = vpop.f32.mrb[0].mxu0
    %814 = vdwg.mxu0
    %v816 = vlaneseq
    %v817 = vshrl.u32 %v816, 7
    %v818 = vsub.s32 0, %v817
    %v819 = vrot.slane %v659, %v818
    %821 = vmatprep.subr.mxu0 0.0
    %822 = vmatpush1.msra.mxu0 %v653
    %823 = vmatprep.subr.mxu0 0.0
    %824 = vmatpush1.msra.mxu0 %v654
    %825 = vmatprep.subr.mxu0 0.0
    %826 = vmatpush1.msra.mxu0 %v655
    %827 = vmatprep.subr.mxu0 0.0
    %828 = vmatpush1.msra.mxu0 %v656
    %829 = vmatprep.subr.mxu0 0.0
    %830 = vmatpush1.msra.mxu0 0.0
    %831 = vmatprep.subr.mxu0 0.0
    %832 = vmatpush1.msra.mxu0 0.0
    %833 = vmatprep.subr.mxu0 0.0
    %834 = vmatpush1.msra.mxu0 0.0
    %835 = vmatprep.subr.mxu0 0.0
    %836 = vmatpush1.msra.mxu0 0.0
    %837 = vmatprep.subr.mxu0 0.0
    %838 = vmatpush1.msra.mxu0 0.0
    %839 = vmatprep.subr.mxu0 0.0
    %840 = vmatpush1.msra.mxu0 0.0
    %841 = vmatprep.subr.mxu0 0.0
    %842 = vmatpush1.msra.mxu0 0.0
    %843 = vmatprep.subr.mxu0 0.0
    %844 = vmatpush1.msra.mxu0 0.0
    %845 = vmatprep.subr.mxu0 0.0
    %846 = vmatpush1.msra.mxu0 0.0
    %847 = vmatprep.subr.mxu0 0.0
    %848 = vmatpush1.msra.mxu0 0.0
    %849 = vmatprep.subr.mxu0 0.0
    %850 = vmatpush1.msra.mxu0 0.0
    %851 = vmatprep.subr.mxu0 0.0
    %852 = vmatpush1.msra.mxu0 0.0
    %853 = vmatprep.subr.mxu0 0.0
    %854 = vmatpush1.msra.mxu0 0.0
    %855 = vmatprep.subr.mxu0 0.0
    %856 = vmatpush1.msra.mxu0 0.0
    %857 = vmatprep.subr.mxu0 0.0
    %858 = vmatpush1.msra.mxu0 0.0
    %859 = vmatprep.subr.mxu0 0.0
    %860 = vmatpush1.msra.mxu0 0.0
    %861 = vmatprep.subr.mxu0 0.0
    %862 = vmatpush1.msra.mxu0 0.0
    %863 = vmatprep.subr.mxu0 0.0
    %864 = vmatpush1.msra.mxu0 0.0
    %865 = vmatprep.subr.mxu0 0.0
    %866 = vmatpush1.msra.mxu0 0.0
    %867 = vmatprep.subr.mxu0 0.0
    %868 = vmatpush1.msra.mxu0 0.0
    %869 = vmatprep.subr.mxu0 0.0
    %870 = vmatpush1.msra.mxu0 0.0
    %871 = vmatprep.subr.mxu0 0.0
    %872 = vmatpush1.msra.mxu0 0.0
    %873 = vmatprep.subr.mxu0 0.0
    %874 = vmatpush1.msra.mxu0 0.0
    %875 = vmatprep.subr.mxu0 0.0
    %876 = vmatpush1.msra.mxu0 0.0
    %877 = vmatprep.subr.mxu0 0.0
    %878 = vmatpush1.msra.mxu0 0.0
    %879 = vmatprep.subr.mxu0 0.0
    %880 = vmatpush1.msra.mxu0 0.0
    %881 = vmatprep.subr.mxu0 0.0
    %882 = vmatpush1.msra.mxu0 0.0
    %883 = vmatprep.subr.mxu0 0.0
    %884 = vmatpush1.msra.mxu0 0.0
    %885 = vmatprep.mubr.f32.mxu0 0.0
    %886 = vmatmul.mubr.f32.gmra.mrb[0].mxu0 %v667
    %v887 = vpop.f32.mrb[0].mxu0
    %v888 = vadd.f32 %v819, %v887
    %v889 = vpop.f32.mrb[0].mxu0
    %890 = vdwg.mxu0
    %v891 = vadd.f32 %v465, %v736
    %v892 = vxor.u32 %v891, 2147483648
    %v893 = vmul.f32 %v892, 1.442695
    %v894 = vpow.pop %v893
    %v895 = vadd.f32 %v894, 1.0
    %v896 = vrcp.pop %v895
    %v897 = vmul.f32 1.0, %v896
    %v898 = vadd.f32 %v551, %v812
    %v899 = vxor.u32 %v898, 2147483648
    %v900 = vmul.f32 %v899, 1.442695
    %v901 = vpow.pop %v900
    %v902 = vadd.f32 %v901, 1.0
    %v903 = vrcp.pop %v902
    %v904 = vmul.f32 1.0, %v903
    %v905 = vmul.f32 %v897, %v888
    %v906 = vadd.f32 %v637, %v905
    %v907 = vtanh.pop %v906
    %v908 = vsub.f32 1.0, %v904
    %v909 = vmul.f32 %v908, %v907
    %v910 = vmul.f32 %v904, 0.0
    %v911 = vadd.f32 %v909, %v910
    %v913 = vsel %vm391, %v911, 0
    %915 = vmatprep.subr.mxu0 0.0
    %916 = vmatpush1.msra.mxu0 %v645
    %917 = vmatprep.subr.mxu0 0.0
    %918 = vmatpush1.msra.mxu0 %v646
    %919 = vmatprep.subr.mxu0 0.0
    %920 = vmatpush1.msra.mxu0 %v647
    %921 = vmatprep.subr.mxu0 0.0
    %922 = vmatpush1.msra.mxu0 %v648
    %923 = vmatprep.subr.mxu0 0.0
    %924 = vmatpush1.msra.mxu0 0.0
    %925 = vmatprep.subr.mxu0 0.0
    %926 = vmatpush1.msra.mxu0 0.0
    %927 = vmatprep.subr.mxu0 0.0
    %928 = vmatpush1.msra.mxu0 0.0
    %929 = vmatprep.subr.mxu0 0.0
    %930 = vmatpush1.msra.mxu0 0.0
    %931 = vmatprep.subr.mxu0 0.0
    %932 = vmatpush1.msra.mxu0 0.0
    %933 = vmatprep.subr.mxu0 0.0
    %934 = vmatpush1.msra.mxu0 0.0
    %935 = vmatprep.subr.mxu0 0.0
    %936 = vmatpush1.msra.mxu0 0.0
    %937 = vmatprep.subr.mxu0 0.0
    %938 = vmatpush1.msra.mxu0 0.0
    %939 = vmatprep.subr.mxu0 0.0
    %940 = vmatpush1.msra.mxu0 0.0
    %941 = vmatprep.subr.mxu0 0.0
    %942 = vmatpush1.msra.mxu0 0.0
    %943 = vmatprep.subr.mxu0 0.0
    %944 = vmatpush1.msra.mxu0 0.0
    %945 = vmatprep.subr.mxu0 0.0
    %946 = vmatpush1.msra.mxu0 0.0
    %947 = vmatprep.subr.mxu0 0.0
    %948 = vmatpush1.msra.mxu0 0.0
    %949 = vmatprep.subr.mxu0 0.0
    %950 = vmatpush1.msra.mxu0 0.0
    %951 = vmatprep.subr.mxu0 0.0
    %952 = vmatpush1.msra.mxu0 0.0
    %953 = vmatprep.subr.mxu0 0.0
    %954 = vmatpush1.msra.mxu0 0.0
    %955 = vmatprep.subr.mxu0 0.0
    %956 = vmatpush1.msra.mxu0 0.0
    %957 = vmatprep.subr.mxu0 0.0
    %958 = vmatpush1.msra.mxu0 0.0
    %959 = vmatprep.subr.mxu0 0.0
    %960 = vmatpush1.msra.mxu0 0.0
    %961 = vmatprep.subr.mxu0 0.0
    %962 = vmatpush1.msra.mxu0 0.0
    %963 = vmatprep.subr.mxu0 0.0
    %964 = vmatpush1.msra.mxu0 0.0
    %965 = vmatprep.subr.mxu0 0.0
    %966 = vmatpush1.msra.mxu0 0.0
    %967 = vmatprep.subr.mxu0 0.0
    %968 = vmatpush1.msra.mxu0 0.0
    %969 = vmatprep.subr.mxu0 0.0
    %970 = vmatpush1.msra.mxu0 0.0
    %971 = vmatprep.subr.mxu0 0.0
    %972 = vmatpush1.msra.mxu0 0.0
    %973 = vmatprep.subr.mxu0 0.0
    %974 = vmatpush1.msra.mxu0 0.0
    %975 = vmatprep.subr.mxu0 0.0
    %976 = vmatpush1.msra.mxu0 0.0
    %977 = vmatprep.subr.mxu0 0.0
    %978 = vmatpush1.msra.mxu0 0.0
    %979 = vmatprep.mubr.f32.mxu0 0.0
    %980 = vmatmul.mubr.f32.gmra.mrb[0].mxu0 %v913
    %v981 = vpop.f32.mrb[0].mxu0
    %v982 = vadd.f32 %v664, %v981
    %v983 = vpop.f32.mrb[0].mxu0
    %984 = vdwg.mxu0
    %985 = vmatprep.subr.mxu0 0.0
    %986 = vmatpush1.msra.mxu0 %v649
    %987 = vmatprep.subr.mxu0 0.0
    %988 = vmatpush1.msra.mxu0 %v650
    %989 = vmatprep.subr.mxu0 0.0
    %990 = vmatpush1.msra.mxu0 %v651
    %991 = vmatprep.subr.mxu0 0.0
    %992 = vmatpush1.msra.mxu0 %v652
    %993 = vmatprep.subr.mxu0 0.0
    %994 = vmatpush1.msra.mxu0 0.0
    %995 = vmatprep.subr.mxu0 0.0
    %996 = vmatpush1.msra.mxu0 0.0
    %997 = vmatprep.subr.mxu0 0.0
    %998 = vmatpush1.msra.mxu0 0.0
    %999 = vmatprep.subr.mxu0 0.0
    %1000 = vmatpush1.msra.mxu0 0.0
    %1001 = vmatprep.subr.mxu0 0.0
    %1002 = vmatpush1.msra.mxu0 0.0
    %1003 = vmatprep.subr.mxu0 0.0
    %1004 = vmatpush1.msra.mxu0 0.0
    %1005 = vmatprep.subr.mxu0 0.0
    %1006 = vmatpush1.msra.mxu0 0.0
    %1007 = vmatprep.subr.mxu0 0.0
    %1008 = vmatpush1.msra.mxu0 0.0
    %1009 = vmatprep.subr.mxu0 0.0
    %1010 = vmatpush1.msra.mxu0 0.0
    %1011 = vmatprep.subr.mxu0 0.0
    %1012 = vmatpush1.msra.mxu0 0.0
    %1013 = vmatprep.subr.mxu0 0.0
    %1014 = vmatpush1.msra.mxu0 0.0
    %1015 = vmatprep.subr.mxu0 0.0
    %1016 = vmatpush1.msra.mxu0 0.0
    %1017 = vmatprep.subr.mxu0 0.0
    %1018 = vmatpush1.msra.mxu0 0.0
    %1019 = vmatprep.subr.mxu0 0.0
    %1020 = vmatpush1.msra.mxu0 0.0
    %1021 = vmatprep.subr.mxu0 0.0
    %1022 = vmatpush1.msra.mxu0 0.0
    %1023 = vmatprep.subr.mxu0 0.0
    %1024 = vmatpush1.msra.mxu0 0.0
    %1025 = vmatprep.subr.mxu0 0.0
    %1026 = vmatpush1.msra.mxu0 0.0
    %1027 = vmatprep.subr.mxu0 0.0
    %1028 = vmatpush1.msra.mxu0 0.0
    %1029 = vmatprep.subr.mxu0 0.0
    %1030 = vmatpush1.msra.mxu0 0.0
    %1031 = vmatprep.subr.mxu0 0.0
    %1032 = vmatpush1.msra.mxu0 0.0
    %1033 = vmatprep.subr.mxu0 0.0
    %1034 = vmatpush1.msra.mxu0 0.0
    %1035 = vmatprep.subr.mxu0 0.0
    %1036 = vmatpush1.msra.mxu0 0.0
    %1037 = vmatprep.subr.mxu0 0.0
    %1038 = vmatpush1.msra.mxu0 0.0
    %1039 = vmatprep.subr.mxu0 0.0
    %1040 = vmatpush1.msra.mxu0 0.0
    %1041 = vmatprep.subr.mxu0 0.0
    %1042 = vmatpush1.msra.mxu0 0.0
    %1043 = vmatprep.subr.mxu0 0.0
    %1044 = vmatpush1.msra.mxu0 0.0
    %1045 = vmatprep.subr.mxu0 0.0
    %1046 = vmatpush1.msra.mxu0 0.0
    %1047 = vmatprep.subr.mxu0 0.0
    %1048 = vmatpush1.msra.mxu0 0.0
    %1049 = vmatprep.mubr.f32.mxu0 0.0
    %1050 = vmatmul.mubr.f32.gmra.mrb[0].mxu0 %v913
    %v1051 = vpop.f32.mrb[0].mxu0
    %v1052 = vadd.f32 %v743, %v1051
    %v1053 = vpop.f32.mrb[0].mxu0
    %1054 = vdwg.mxu0
    %1055 = vmatprep.subr.mxu0 0.0
    %1056 = vmatpush1.msra.mxu0 %v653
    %1057 = vmatprep.subr.mxu0 0.0
    %1058 = vmatpush1.msra.mxu0 %v654
    %1059 = vmatprep.subr.mxu0 0.0
    %1060 = vmatpush1.msra.mxu0 %v655
    %1061 = vmatprep.subr.mxu0 0.0
    %1062 = vmatpush1.msra.mxu0 %v656
    %1063 = vmatprep.subr.mxu0 0.0
    %1064 = vmatpush1.msra.mxu0 0.0
    %1065 = vmatprep.subr.mxu0 0.0
    %1066 = vmatpush1.msra.mxu0 0.0
    %1067 = vmatprep.subr.mxu0 0.0
    %1068 = vmatpush1.msra.mxu0 0.0
    %1069 = vmatprep.subr.mxu0 0.0
    %1070 = vmatpush1.msra.mxu0 0.0
    %1071 = vmatprep.subr.mxu0 0.0
    %1072 = vmatpush1.msra.mxu0 0.0
    %1073 = vmatprep.subr.mxu0 0.0
    %1074 = vmatpush1.msra.mxu0 0.0
    %1075 = vmatprep.subr.mxu0 0.0
    %1076 = vmatpush1.msra.mxu0 0.0
    %1077 = vmatprep.subr.mxu0 0.0
    %1078 = vmatpush1.msra.mxu0 0.0
    %1079 = vmatprep.subr.mxu0 0.0
    %1080 = vmatpush1.msra.mxu0 0.0
    %1081 = vmatprep.subr.mxu0 0.0
    %1082 = vmatpush1.msra.mxu0 0.0
    %1083 = vmatprep.subr.mxu0 0.0
    %1084 = vmatpush1.msra.mxu0 0.0
    %1085 = vmatprep.subr.mxu0 0.0
    %1086 = vmatpush1.msra.mxu0 0.0
    %1087 = vmatprep.subr.mxu0 0.0
    %1088 = vmatpush1.msra.mxu0 0.0
    %1089 = vmatprep.subr.mxu0 0.0
    %1090 = vmatpush1.msra.mxu0 0.0
    %1091 = vmatprep.subr.mxu0 0.0
    %1092 = vmatpush1.msra.mxu0 0.0
    %1093 = vmatprep.subr.mxu0 0.0
    %1094 = vmatpush1.msra.mxu0 0.0
    %1095 = vmatprep.subr.mxu0 0.0
    %1096 = vmatpush1.msra.mxu0 0.0
    %1097 = vmatprep.subr.mxu0 0.0
    %1098 = vmatpush1.msra.mxu0 0.0
    %1099 = vmatprep.subr.mxu0 0.0
    %1100 = vmatpush1.msra.mxu0 0.0
    %1101 = vmatprep.subr.mxu0 0.0
    %1102 = vmatpush1.msra.mxu0 0.0
    %1103 = vmatprep.subr.mxu0 0.0
    %1104 = vmatpush1.msra.mxu0 0.0
    %1105 = vmatprep.subr.mxu0 0.0
    %1106 = vmatpush1.msra.mxu0 0.0
    %1107 = vmatprep.subr.mxu0 0.0
    %1108 = vmatpush1.msra.mxu0 0.0
    %1109 = vmatprep.subr.mxu0 0.0
    %1110 = vmatpush1.msra.mxu0 0.0
    %1111 = vmatprep.subr.mxu0 0.0
    %1112 = vmatpush1.msra.mxu0 0.0
    %1113 = vmatprep.subr.mxu0 0.0
    %1114 = vmatpush1.msra.mxu0 0.0
    %1115 = vmatprep.subr.mxu0 0.0
    %1116 = vmatpush1.msra.mxu0 0.0
    %1117 = vmatprep.subr.mxu0 0.0
    %1118 = vmatpush1.msra.mxu0 0.0
    %1119 = vmatprep.mubr.f32.mxu0 0.0
    %1120 = vmatmul.mubr.f32.gmra.mrb[0].mxu0 %v913
    %v1121 = vpop.f32.mrb[0].mxu0
    %v1122 = vadd.f32 %v819, %v1121
    %v1123 = vpop.f32.mrb[0].mxu0
    %1124 = vdwg.mxu0
    %v1126 = vrot.slane %v982, 6
    %v1128 = vadd.f32 %v465, %v1126
    %v1129 = vxor.u32 %v1128, 2147483648
    %v1130 = vmul.f32 %v1129, 1.442695
    %v1131 = vpow.pop %v1130
    %v1132 = vadd.f32 %v1131, 1.0
    %v1133 = vrcp.pop %v1132
    %v1134 = vmul.f32 1.0, %v1133
    %v1136 = vrot.slane %v1052, 6
    %v1138 = vadd.f32 %v551, %v1136
    %v1139 = vxor.u32 %v1138, 2147483648
    %v1140 = vmul.f32 %v1139, 1.442695
    %v1141 = vpow.pop %v1140
    %v1142 = vadd.f32 %v1141, 1.0
    %v1143 = vrcp.pop %v1142
    %v1144 = vmul.f32 1.0, %v1143
    %v1146 = vrot.slane %v1122, 6
    %v1148 = vmul.f32 %v1134, %v1146
    %v1149 = vadd.f32 %v637, %v1148
    %v1150 = vtanh.pop %v1149
    %v1151 = vsub.f32 1.0, %v1144
    %v1152 = vmul.f32 %v1151, %v1150
    %v1153 = vrot.slane %v911, 6
    %v1155 = vmul.f32 %v1144, %v1153
    %v1156 = vadd.f32 %v1152, %v1155
    %v1158 = vrot.slane %v1156, 2
    %v1159 = vsel %vm391, %v1158, 0
    %1161 = vmatprep.subr.mxu0 0.0
    %1162 = vmatpush1.msra.mxu0 %v645
    %1163 = vmatprep.subr.mxu0 0.0
    %1164 = vmatpush1.msra.mxu0 %v646
    %1165 = vmatprep.subr.mxu0 0.0
    %1166 = vmatpush1.msra.mxu0 %v647
    %1167 = vmatprep.subr.mxu0 0.0
    %1168 = vmatpush1.msra.mxu0 %v648
    %1169 = vmatprep.subr.mxu0 0.0
    %1170 = vmatpush1.msra.mxu0 0.0
    %1171 = vmatprep.subr.mxu0 0.0
    %1172 = vmatpush1.msra.mxu0 0.0
    %1173 = vmatprep.subr.mxu0 0.0
    %1174 = vmatpush1.msra.mxu0 0.0
    %1175 = vmatprep.subr.mxu0 0.0
    %1176 = vmatpush1.msra.mxu0 0.0
    %1177 = vmatprep.subr.mxu0 0.0
    %1178 = vmatpush1.msra.mxu0 0.0
    %1179 = vmatprep.subr.mxu0 0.0
    %1180 = vmatpush1.msra.mxu0 0.0
    %1181 = vmatprep.subr.mxu0 0.0
    %1182 = vmatpush1.msra.mxu0 0.0
    %1183 = vmatprep.subr.mxu0 0.0
    %1184 = vmatpush1.msra.mxu0 0.0
    %1185 = vmatprep.subr.mxu0 0.0
    %1186 = vmatpush1.msra.mxu0 0.0
    %1187 = vmatprep.subr.mxu0 0.0
    %1188 = vmatpush1.msra.mxu0 0.0
    %1189 = vmatprep.subr.mxu0 0.0
    %1190 = vmatpush1.msra.mxu0 0.0
    %1191 = vmatprep.subr.mxu0 0.0
    %1192 = vmatpush1.msra.mxu0 0.0
    %1193 = vmatprep.subr.mxu0 0.0
    %1194 = vmatpush1.msra.mxu0 0.0
    %1195 = vmatprep.subr.mxu0 0.0
    %1196 = vmatpush1.msra.mxu0 0.0
    %1197 = vmatprep.subr.mxu0 0.0
    %1198 = vmatpush1.msra.mxu0 0.0
    %1199 = vmatprep.subr.mxu0 0.0
    %1200 = vmatpush1.msra.mxu0 0.0
    %1201 = vmatprep.subr.mxu0 0.0
    %1202 = vmatpush1.msra.mxu0 0.0
    %1203 = vmatprep.subr.mxu0 0.0
    %1204 = vmatpush1.msra.mxu0 0.0
    %1205 = vmatprep.subr.mxu0 0.0
    %1206 = vmatpush1.msra.mxu0 0.0
    %1207 = vmatprep.subr.mxu0 0.0
    %1208 = vmatpush1.msra.mxu0 0.0
    %1209 = vmatprep.subr.mxu0 0.0
    %1210 = vmatpush1.msra.mxu0 0.0
    %1211 = vmatprep.subr.mxu0 0.0
    %1212 = vmatpush1.msra.mxu0 0.0
    %1213 = vmatprep.subr.mxu0 0.0
    %1214 = vmatpush1.msra.mxu0 0.0
    %1215 = vmatprep.subr.mxu0 0.0
    %1216 = vmatpush1.msra.mxu0 0.0
    %1217 = vmatprep.subr.mxu0 0.0
    %1218 = vmatpush1.msra.mxu0 0.0
    %1219 = vmatprep.subr.mxu0 0.0
    %1220 = vmatpush1.msra.mxu0 0.0
    %1221 = vmatprep.subr.mxu0 0.0
    %1222 = vmatpush1.msra.mxu0 0.0
    %1223 = vmatprep.subr.mxu0 0.0
    %1224 = vmatpush1.msra.mxu0 0.0
    %1225 = vmatprep.mubr.f32.mxu0 0.0
    %1226 = vmatmul.mubr.f32.gmra.mrb[0].mxu0 %v1159
    %v1227 = vpop.f32.mrb[0].mxu0
    %v1228 = vadd.f32 %v664, %v1227
    %v1229 = vpop.f32.mrb[0].mxu0
    %1230 = vdwg.mxu0
    %1231 = vmatprep.subr.mxu0 0.0
    %1232 = vmatpush1.msra.mxu0 %v649
    %1233 = vmatprep.subr.mxu0 0.0
    %1234 = vmatpush1.msra.mxu0 %v650
    %1235 = vmatprep.subr.mxu0 0.0
    %1236 = vmatpush1.msra.mxu0 %v651
    %1237 = vmatprep.subr.mxu0 0.0
    %1238 = vmatpush1.msra.mxu0 %v652
    %1239 = vmatprep.subr.mxu0 0.0
    %1240 = vmatpush1.msra.mxu0 0.0
    %1241 = vmatprep.subr.mxu0 0.0
    %1242 = vmatpush1.msra.mxu0 0.0
    %1243 = vmatprep.subr.mxu0 0.0
    %1244 = vmatpush1.msra.mxu0 0.0
    %1245 = vmatprep.subr.mxu0 0.0
    %1246 = vmatpush1.msra.mxu0 0.0
    %1247 = vmatprep.subr.mxu0 0.0
    %1248 = vmatpush1.msra.mxu0 0.0
    %1249 = vmatprep.subr.mxu0 0.0
    %1250 = vmatpush1.msra.mxu0 0.0
    %1251 = vmatprep.subr.mxu0 0.0
    %1252 = vmatpush1.msra.mxu0 0.0
    %1253 = vmatprep.subr.mxu0 0.0
    %1254 = vmatpush1.msra.mxu0 0.0
    %1255 = vmatprep.subr.mxu0 0.0
    %1256 = vmatpush1.msra.mxu0 0.0
    %1257 = vmatprep.subr.mxu0 0.0
    %1258 = vmatpush1.msra.mxu0 0.0
    %1259 = vmatprep.subr.mxu0 0.0
    %1260 = vmatpush1.msra.mxu0 0.0
    %1261 = vmatprep.subr.mxu0 0.0
    %1262 = vmatpush1.msra.mxu0 0.0
    %1263 = vmatprep.subr.mxu0 0.0
    %1264 = vmatpush1.msra.mxu0 0.0
    %1265 = vmatprep.subr.mxu0 0.0
    %1266 = vmatpush1.msra.mxu0 0.0
    %1267 = vmatprep.subr.mxu0 0.0
    %1268 = vmatpush1.msra.mxu0 0.0
    %1269 = vmatprep.subr.mxu0 0.0
    %1270 = vmatpush1.msra.mxu0 0.0
    %1271 = vmatprep.subr.mxu0 0.0
    %1272 = vmatpush1.msra.mxu0 0.0
    %1273 = vmatprep.subr.mxu0 0.0
    %1274 = vmatpush1.msra.mxu0 0.0
    %1275 = vmatprep.subr.mxu0 0.0
    %1276 = vmatpush1.msra.mxu0 0.0
    %1277 = vmatprep.subr.mxu0 0.0
    %1278 = vmatpush1.msra.mxu0 0.0
    %1279 = vmatprep.subr.mxu0 0.0
    %1280 = vmatpush1.msra.mxu0 0.0
    %1281 = vmatprep.subr.mxu0 0.0
    %1282 = vmatpush1.msra.mxu0 0.0
    %1283 = vmatprep.subr.mxu0 0.0
    %1284 = vmatpush1.msra.mxu0 0.0
    %1285 = vmatprep.subr.mxu0 0.0
    %1286 = vmatpush1.msra.mxu0 0.0
    %1287 = vmatprep.subr.mxu0 0.0
    %1288 = vmatpush1.msra.mxu0 0.0
    %1289 = vmatprep.subr.mxu0 0.0
    %1290 = vmatpush1.msra.mxu0 0.0
    %1291 = vmatprep.subr.mxu0 0.0
    %1292 = vmatpush1.msra.mxu0 0.0
    %1293 = vmatprep.subr.mxu0 0.0
    %1294 = vmatpush1.msra.mxu0 0.0
    %1295 = vmatprep.mubr.f32.mxu0 0.0
    %1296 = vmatmul.mubr.f32.gmra.mrb[0].mxu0 %v1159
    %v1297 = vpop.f32.mrb[0].mxu0
    %v1298 = vadd.f32 %v743, %v1297
    %v1299 = vpop.f32.mrb[0].mxu0
    %1300 = vdwg.mxu0
    %1301 = vmatprep.subr.mxu0 0.0
    %1302 = vmatpush1.msra.mxu0 %v653
    %1303 = vmatprep.subr.mxu0 0.0
    %1304 = vmatpush1.msra.mxu0 %v654
    %1305 = vmatprep.subr.mxu0 0.0
    %1306 = vmatpush1.msra.mxu0 %v655
    %1307 = vmatprep.subr.mxu0 0.0
    %1308 = vmatpush1.msra.mxu0 %v656
    %1309 = vmatprep.subr.mxu0 0.0
    %1310 = vmatpush1.msra.mxu0 0.0
    %1311 = vmatprep.subr.mxu0 0.0
    %1312 = vmatpush1.msra.mxu0 0.0
    %1313 = vmatprep.subr.mxu0 0.0
    %1314 = vmatpush1.msra.mxu0 0.0
    %1315 = vmatprep.subr.mxu0 0.0
    %1316 = vmatpush1.msra.mxu0 0.0
    %1317 = vmatprep.subr.mxu0 0.0
    %1318 = vmatpush1.msra.mxu0 0.0
    %1319 = vmatprep.subr.mxu0 0.0
    %1320 = vmatpush1.msra.mxu0 0.0
    %1321 = vmatprep.subr.mxu0 0.0
    %1322 = vmatpush1.msra.mxu0 0.0
    %1323 = vmatprep.subr.mxu0 0.0
    %1324 = vmatpush1.msra.mxu0 0.0
    %1325 = vmatprep.subr.mxu0 0.0
    %1326 = vmatpush1.msra.mxu0 0.0
    %1327 = vmatprep.subr.mxu0 0.0
    %1328 = vmatpush1.msra.mxu0 0.0
    %1329 = vmatprep.subr.mxu0 0.0
    %1330 = vmatpush1.msra.mxu0 0.0
    %1331 = vmatprep.subr.mxu0 0.0
    %1332 = vmatpush1.msra.mxu0 0.0
    %1333 = vmatprep.subr.mxu0 0.0
    %1334 = vmatpush1.msra.mxu0 0.0
    %1335 = vmatprep.subr.mxu0 0.0
    %1336 = vmatpush1.msra.mxu0 0.0
    %1337 = vmatprep.subr.mxu0 0.0
    %1338 = vmatpush1.msra.mxu0 0.0
    %1339 = vmatprep.subr.mxu0 0.0
    %1340 = vmatpush1.msra.mxu0 0.0
    %1341 = vmatprep.subr.mxu0 0.0
    %1342 = vmatpush1.msra.mxu0 0.0
    %1343 = vmatprep.subr.mxu0 0.0
    %1344 = vmatpush1.msra.mxu0 0.0
    %1345 = vmatprep.subr.mxu0 0.0
    %1346 = vmatpush1.msra.mxu0 0.0
    %1347 = vmatprep.subr.mxu0 0.0
    %1348 = vmatpush1.msra.mxu0 0.0
    %1349 = vmatprep.subr.mxu0 0.0
    %1350 = vmatpush1.msra.mxu0 0.0
    %1351 = vmatprep.subr.mxu0 0.0
    %1352 = vmatpush1.msra.mxu0 0.0
    %1353 = vmatprep.subr.mxu0 0.0
    %1354 = vmatpush1.msra.mxu0 0.0
    %1355 = vmatprep.subr.mxu0 0.0
    %1356 = vmatpush1.msra.mxu0 0.0
    %1357 = vmatprep.subr.mxu0 0.0
    %1358 = vmatpush1.msra.mxu0 0.0
    %1359 = vmatprep.subr.mxu0 0.0
    %1360 = vmatpush1.msra.mxu0 0.0
    %1361 = vmatprep.subr.mxu0 0.0
    %1362 = vmatpush1.msra.mxu0 0.0
    %1363 = vmatprep.subr.mxu0 0.0
    %1364 = vmatpush1.msra.mxu0 0.0
    %1365 = vmatprep.mubr.f32.mxu0 0.0
    %1366 = vmatmul.mubr.f32.gmra.mrb[0].mxu0 %v1159
    %v1367 = vpop.f32.mrb[0].mxu0
    %v1368 = vadd.f32 %v819, %v1367
    %v1369 = vpop.f32.mrb[0].mxu0
    %1370 = vdwg.mxu0
    %v1372 = vrot.slane %v1228, 4
    %v1374 = vadd.f32 %v465, %v1372
    %v1375 = vxor.u32 %v1374, 2147483648
    %v1376 = vmul.f32 %v1375, 1.442695
    %v1377 = vpow.pop %v1376
    %v1378 = vadd.f32 %v1377, 1.0
    %v1379 = vrcp.pop %v1378
    %v1380 = vmul.f32 1.0, %v1379
    %v1382 = vrot.slane %v1298, 4
    %v1384 = vadd.f32 %v551, %v1382
    %v1385 = vxor.u32 %v1384, 2147483648
    %v1386 = vmul.f32 %v1385, 1.442695
    %v1387 = vpow.pop %v1386
    %v1388 = vadd.f32 %v1387, 1.0
    %v1389 = vrcp.pop %v1388
    %v1390 = vmul.f32 1.0, %v1389
    %v1392 = vrot.slane %v1368, 4
    %v1394 = vmul.f32 %v1380, %v1392
    %v1395 = vadd.f32 %v637, %v1394
    %v1396 = vtanh.pop %v1395
    %v1397 = vsub.f32 1.0, %v1390
    %v1398 = vmul.f32 %v1397, %v1396
    %v1399 = vrot.slane %v1156, 6
    %v1401 = vmul.f32 %v1390, %v1399
    %v1402 = vadd.f32 %v1398, %v1401
    %v1404 = vrot.slane %v1402, 4
    %v1405 = vsel %vm391, %v1404, 0
    %1407 = vmatprep.subr.mxu0 0.0
    %1408 = vmatpush1.msra.mxu0 %v645
    %1409 = vmatprep.subr.mxu0 0.0
    %1410 = vmatpush1.msra.mxu0 %v646
    %1411 = vmatprep.subr.mxu0 0.0
    %1412 = vmatpush1.msra.mxu0 %v647
    %1413 = vmatprep.subr.mxu0 0.0
    %1414 = vmatpush1.msra.mxu0 %v648
    %1415 = vmatprep.subr.mxu0 0.0
    %1416 = vmatpush1.msra.mxu0 0.0
    %1417 = vmatprep.subr.mxu0 0.0
    %1418 = vmatpush1.msra.mxu0 0.0
    %1419 = vmatprep.subr.mxu0 0.0
    %1420 = vmatpush1.msra.mxu0 0.0
    %1421 = vmatprep.subr.mxu0 0.0
    %1422 = vmatpush1.msra.mxu0 0.0
    %1423 = vmatprep.subr.mxu0 0.0
    %1424 = vmatpush1.msra.mxu0 0.0
    %1425 = vmatprep.subr.mxu0 0.0
    %1426 = vmatpush1.msra.mxu0 0.0
    %1427 = vmatprep.subr.mxu0 0.0
    %1428 = vmatpush1.msra.mxu0 0.0
    %1429 = vmatprep.subr.mxu0 0.0
    %1430 = vmatpush1.msra.mxu0 0.0
    %1431 = vmatprep.subr.mxu0 0.0
    %1432 = vmatpush1.msra.mxu0 0.0
    %1433 = vmatprep.subr.mxu0 0.0
    %1434 = vmatpush1.msra.mxu0 0.0
    %1435 = vmatprep.subr.mxu0 0.0
    %1436 = vmatpush1.msra.mxu0 0.0
    %1437 = vmatprep.subr.mxu0 0.0
    %1438 = vmatpush1.msra.mxu0 0.0
    %1439 = vmatprep.subr.mxu0 0.0
    %1440 = vmatpush1.msra.mxu0 0.0
    %1441 = vmatprep.subr.mxu0 0.0
    %1442 = vmatpush1.msra.mxu0 0.0
    %1443 = vmatprep.subr.mxu0 0.0
    %1444 = vmatpush1.msra.mxu0 0.0
    %1445 = vmatprep.subr.mxu0 0.0
    %1446 = vmatpush1.msra.mxu0 0.0
    %1447 = vmatprep.subr.mxu0 0.0
    %1448 = vmatpush1.msra.mxu0 0.0
    %1449 = vmatprep.subr.mxu0 0.0
    %1450 = vmatpush1.msra.mxu0 0.0
    %1451 = vmatprep.subr.mxu0 0.0
    %1452 = vmatpush1.msra.mxu0 0.0
    %1453 = vmatprep.subr.mxu0 0.0
    %1454 = vmatpush1.msra.mxu0 0.0
    %1455 = vmatprep.subr.mxu0 0.0
    %1456 = vmatpush1.msra.mxu0 0.0
    %1457 = vmatprep.subr.mxu0 0.0
    %1458 = vmatpush1.msra.mxu0 0.0
    %1459 = vmatprep.subr.mxu0 0.0
    %1460 = vmatpush1.msra.mxu0 0.0
    %1461 = vmatprep.subr.mxu0 0.0
    %1462 = vmatpush1.msra.mxu0 0.0
    %1463 = vmatprep.subr.mxu0 0.0
    %1464 = vmatpush1.msra.mxu0 0.0
    %1465 = vmatprep.subr.mxu0 0.0
    %1466 = vmatpush1.msra.mxu0 0.0
    %1467 = vmatprep.subr.mxu0 0.0
    %1468 = vmatpush1.msra.mxu0 0.0
    %1469 = vmatprep.subr.mxu0 0.0
    %1470 = vmatpush1.msra.mxu0 0.0
    %1471 = vmatprep.mubr.f32.mxu0 0.0
    %1472 = vmatmul.mubr.f32.gmra.mrb[0].mxu0 %v1405
    %v1473 = vpop.f32.mrb[0].mxu0
    %v1474 = vadd.f32 %v664, %v1473
    %v1475 = vpop.f32.mrb[0].mxu0
    %1476 = vdwg.mxu0
    %1477 = vmatprep.subr.mxu0 0.0
    %1478 = vmatpush1.msra.mxu0 %v649
    %1479 = vmatprep.subr.mxu0 0.0
    %1480 = vmatpush1.msra.mxu0 %v650
    %1481 = vmatprep.subr.mxu0 0.0
    %1482 = vmatpush1.msra.mxu0 %v651
    %1483 = vmatprep.subr.mxu0 0.0
    %1484 = vmatpush1.msra.mxu0 %v652
    %1485 = vmatprep.subr.mxu0 0.0
    %1486 = vmatpush1.msra.mxu0 0.0
    %1487 = vmatprep.subr.mxu0 0.0
    %1488 = vmatpush1.msra.mxu0 0.0
    %1489 = vmatprep.subr.mxu0 0.0
    %1490 = vmatpush1.msra.mxu0 0.0
    %1491 = vmatprep.subr.mxu0 0.0
    %1492 = vmatpush1.msra.mxu0 0.0
    %1493 = vmatprep.subr.mxu0 0.0
    %1494 = vmatpush1.msra.mxu0 0.0
    %1495 = vmatprep.subr.mxu0 0.0
    %1496 = vmatpush1.msra.mxu0 0.0
    %1497 = vmatprep.subr.mxu0 0.0
    %1498 = vmatpush1.msra.mxu0 0.0
    %1499 = vmatprep.subr.mxu0 0.0
    %1500 = vmatpush1.msra.mxu0 0.0
    %1501 = vmatprep.subr.mxu0 0.0
    %1502 = vmatpush1.msra.mxu0 0.0
    %1503 = vmatprep.subr.mxu0 0.0
    %1504 = vmatpush1.msra.mxu0 0.0
    %1505 = vmatprep.subr.mxu0 0.0
    %1506 = vmatpush1.msra.mxu0 0.0
    %1507 = vmatprep.subr.mxu0 0.0
    %1508 = vmatpush1.msra.mxu0 0.0
    %1509 = vmatprep.subr.mxu0 0.0
    %1510 = vmatpush1.msra.mxu0 0.0
    %1511 = vmatprep.subr.mxu0 0.0
    %1512 = vmatpush1.msra.mxu0 0.0
    %1513 = vmatprep.subr.mxu0 0.0
    %1514 = vmatpush1.msra.mxu0 0.0
    %1515 = vmatprep.subr.mxu0 0.0
    %1516 = vmatpush1.msra.mxu0 0.0
    %1517 = vmatprep.subr.mxu0 0.0
    %1518 = vmatpush1.msra.mxu0 0.0
    %1519 = vmatprep.subr.mxu0 0.0
    %1520 = vmatpush1.msra.mxu0 0.0
    %1521 = vmatprep.subr.mxu0 0.0
    %1522 = vmatpush1.msra.mxu0 0.0
    %1523 = vmatprep.subr.mxu0 0.0
    %1524 = vmatpush1.msra.mxu0 0.0
    %1525 = vmatprep.subr.mxu0 0.0
    %1526 = vmatpush1.msra.mxu0 0.0
    %1527 = vmatprep.subr.mxu0 0.0
    %1528 = vmatpush1.msra.mxu0 0.0
    %1529 = vmatprep.subr.mxu0 0.0
    %1530 = vmatpush1.msra.mxu0 0.0
    %1531 = vmatprep.subr.mxu0 0.0
    %1532 = vmatpush1.msra.mxu0 0.0
    %1533 = vmatprep.subr.mxu0 0.0
    %1534 = vmatpush1.msra.mxu0 0.0
    %1535 = vmatprep.subr.mxu0 0.0
    %1536 = vmatpush1.msra.mxu0 0.0
    %1537 = vmatprep.subr.mxu0 0.0
    %1538 = vmatpush1.msra.mxu0 0.0
    %1539 = vmatprep.subr.mxu0 0.0
    %1540 = vmatpush1.msra.mxu0 0.0
    %1541 = vmatprep.mubr.f32.mxu0 0.0
    %1542 = vmatmul.mubr.f32.gmra.mrb[0].mxu0 %v1405
    %v1543 = vpop.f32.mrb[0].mxu0
    %v1544 = vadd.f32 %v743, %v1543
    %v1545 = vpop.f32.mrb[0].mxu0
    %1546 = vdwg.mxu0
    %1547 = vmatprep.subr.mxu0 0.0
    %1548 = vmatpush1.msra.mxu0 %v653
    %1549 = vmatprep.subr.mxu0 0.0
    %1550 = vmatpush1.msra.mxu0 %v654
    %1551 = vmatprep.subr.mxu0 0.0
    %1552 = vmatpush1.msra.mxu0 %v655
    %1553 = vmatprep.subr.mxu0 0.0
    %1554 = vmatpush1.msra.mxu0 %v656
    %1555 = vmatprep.subr.mxu0 0.0
    %1556 = vmatpush1.msra.mxu0 0.0
    %1557 = vmatprep.subr.mxu0 0.0
    %1558 = vmatpush1.msra.mxu0 0.0
    %1559 = vmatprep.subr.mxu0 0.0
    %1560 = vmatpush1.msra.mxu0 0.0
    %1561 = vmatprep.subr.mxu0 0.0
    %1562 = vmatpush1.msra.mxu0 0.0
    %1563 = vmatprep.subr.mxu0 0.0
    %1564 = vmatpush1.msra.mxu0 0.0
    %1565 = vmatprep.subr.mxu0 0.0
    %1566 = vmatpush1.msra.mxu0 0.0
    %1567 = vmatprep.subr.mxu0 0.0
    %1568 = vmatpush1.msra.mxu0 0.0
    %1569 = vmatprep.subr.mxu0 0.0
    %1570 = vmatpush1.msra.mxu0 0.0
    %1571 = vmatprep.subr.mxu0 0.0
    %1572 = vmatpush1.msra.mxu0 0.0
    %1573 = vmatprep.subr.mxu0 0.0
    %1574 = vmatpush1.msra.mxu0 0.0
    %1575 = vmatprep.subr.mxu0 0.0
    %1576 = vmatpush1.msra.mxu0 0.0
    %1577 = vmatprep.subr.mxu0 0.0
    %1578 = vmatpush1.msra.mxu0 0.0
    %1579 = vmatprep.subr.mxu0 0.0
    %1580 = vmatpush1.msra.mxu0 0.0
    %1581 = vmatprep.subr.mxu0 0.0
    %1582 = vmatpush1.msra.mxu0 0.0
    %1583 = vmatprep.subr.mxu0 0.0
    %1584 = vmatpush1.msra.mxu0 0.0
    %1585 = vmatprep.subr.mxu0 0.0
    %1586 = vmatpush1.msra.mxu0 0.0
    %1587 = vmatprep.subr.mxu0 0.0
    %1588 = vmatpush1.msra.mxu0 0.0
    %1589 = vmatprep.subr.mxu0 0.0
    %1590 = vmatpush1.msra.mxu0 0.0
    %1591 = vmatprep.subr.mxu0 0.0
    %1592 = vmatpush1.msra.mxu0 0.0
    %1593 = vmatprep.subr.mxu0 0.0
    %1594 = vmatpush1.msra.mxu0 0.0
    %1595 = vmatprep.subr.mxu0 0.0
    %1596 = vmatpush1.msra.mxu0 0.0
    %1597 = vmatprep.subr.mxu0 0.0
    %1598 = vmatpush1.msra.mxu0 0.0
    %1599 = vmatprep.subr.mxu0 0.0
    %1600 = vmatpush1.msra.mxu0 0.0
    %1601 = vmatprep.subr.mxu0 0.0
    %1602 = vmatpush1.msra.mxu0 0.0
    %1603 = vmatprep.subr.mxu0 0.0
    %1604 = vmatpush1.msra.mxu0 0.0
    %1605 = vmatprep.subr.mxu0 0.0
    %1606 = vmatpush1.msra.mxu0 0.0
    %1607 = vmatprep.subr.mxu0 0.0
    %1608 = vmatpush1.msra.mxu0 0.0
    %1609 = vmatprep.subr.mxu0 0.0
    %1610 = vmatpush1.msra.mxu0 0.0
    %1611 = vmatprep.mubr.f32.mxu0 0.0
    %1612 = vmatmul.mubr.f32.gmra.mrb[0].mxu0 %v1405
    %v1613 = vpop.f32.mrb[0].mxu0
    %v1614 = vadd.f32 %v819, %v1613
    %v1615 = vpop.f32.mrb[0].mxu0
    %1616 = vdwg.mxu0
    %v1618 = vrot.slane %v1474, 2
    %v1620 = vadd.f32 %v465, %v1618
    %v1621 = vxor.u32 %v1620, 2147483648
    %v1622 = vmul.f32 %v1621, 1.442695
    %v1623 = vpow.pop %v1622
    %v1624 = vadd.f32 %v1623, 1.0
    %v1625 = vrcp.pop %v1624
    %v1626 = vmul.f32 1.0, %v1625
    %v1628 = vrot.slane %v1544, 2
    %v1630 = vadd.f32 %v551, %v1628
    %v1631 = vxor.u32 %v1630, 2147483648
    %v1632 = vmul.f32 %v1631, 1.442695
    %v1633 = vpow.pop %v1632
    %v1634 = vadd.f32 %v1633, 1.0
    %v1635 = vrcp.pop %v1634
    %v1636 = vmul.f32 1.0, %v1635
    %v1638 = vrot.slane %v1614, 2
    %v1640 = vmul.f32 %v1626, %v1638
    %v1641 = vadd.f32 %v637, %v1640
    %v1642 = vtanh.pop %v1641
    %v1643 = vsub.f32 1.0, %v1636
    %v1644 = vmul.f32 %v1643, %v1642
    %v1645 = vrot.slane %v1402, 6
    %v1647 = vmul.f32 %v1636, %v1645
    %v1648 = vadd.f32 %v1644, %v1647
    %v1650 = vrot.slane %v1648, 6
    %v1651 = vsel %vm391, %v1650, 0
    %1653 = vmatprep.subr.mxu0 0.0
    %1654 = vmatpush1.msra.mxu0 %v645
    %1655 = vmatprep.subr.mxu0 0.0
    %1656 = vmatpush1.msra.mxu0 %v646
    %1657 = vmatprep.subr.mxu0 0.0
    %1658 = vmatpush1.msra.mxu0 %v647
    %1659 = vmatprep.subr.mxu0 0.0
    %1660 = vmatpush1.msra.mxu0 %v648
    %1661 = vmatprep.subr.mxu0 0.0
    %1662 = vmatpush1.msra.mxu0 0.0
    %1663 = vmatprep.subr.mxu0 0.0
    %1664 = vmatpush1.msra.mxu0 0.0
    %1665 = vmatprep.subr.mxu0 0.0
    %1666 = vmatpush1.msra.mxu0 0.0
    %1667 = vmatprep.subr.mxu0 0.0
    %1668 = vmatpush1.msra.mxu0 0.0
    %1669 = vmatprep.subr.mxu0 0.0
    %1670 = vmatpush1.msra.mxu0 0.0
    %1671 = vmatprep.subr.mxu0 0.0
    %1672 = vmatpush1.msra.mxu0 0.0
    %1673 = vmatprep.subr.mxu0 0.0
    %1674 = vmatpush1.msra.mxu0 0.0
    %1675 = vmatprep.subr.mxu0 0.0
    %1676 = vmatpush1.msra.mxu0 0.0
    %1677 = vmatprep.subr.mxu0 0.0
    %1678 = vmatpush1.msra.mxu0 0.0
    %1679 = vmatprep.subr.mxu0 0.0
    %1680 = vmatpush1.msra.mxu0 0.0
    %1681 = vmatprep.subr.mxu0 0.0
    %1682 = vmatpush1.msra.mxu0 0.0
    %1683 = vmatprep.subr.mxu0 0.0
    %1684 = vmatpush1.msra.mxu0 0.0
    %1685 = vmatprep.subr.mxu0 0.0
    %1686 = vmatpush1.msra.mxu0 0.0
    %1687 = vmatprep.subr.mxu0 0.0
    %1688 = vmatpush1.msra.mxu0 0.0
    %1689 = vmatprep.subr.mxu0 0.0
    %1690 = vmatpush1.msra.mxu0 0.0
    %1691 = vmatprep.subr.mxu0 0.0
    %1692 = vmatpush1.msra.mxu0 0.0
    %1693 = vmatprep.subr.mxu0 0.0
    %1694 = vmatpush1.msra.mxu0 0.0
    %1695 = vmatprep.subr.mxu0 0.0
    %1696 = vmatpush1.msra.mxu0 0.0
    %1697 = vmatprep.subr.mxu0 0.0
    %1698 = vmatpush1.msra.mxu0 0.0
    %1699 = vmatprep.subr.mxu0 0.0
    %1700 = vmatpush1.msra.mxu0 0.0
    %1701 = vmatprep.subr.mxu0 0.0
    %1702 = vmatpush1.msra.mxu0 0.0
    %1703 = vmatprep.subr.mxu0 0.0
    %1704 = vmatpush1.msra.mxu0 0.0
    %1705 = vmatprep.subr.mxu0 0.0
    %1706 = vmatpush1.msra.mxu0 0.0
    %1707 = vmatprep.subr.mxu0 0.0
    %1708 = vmatpush1.msra.mxu0 0.0
    %1709 = vmatprep.subr.mxu0 0.0
    %1710 = vmatpush1.msra.mxu0 0.0
    %1711 = vmatprep.subr.mxu0 0.0
    %1712 = vmatpush1.msra.mxu0 0.0
    %1713 = vmatprep.subr.mxu0 0.0
    %1714 = vmatpush1.msra.mxu0 0.0
    %1715 = vmatprep.subr.mxu0 0.0
    %1716 = vmatpush1.msra.mxu0 0.0
    %1717 = vmatprep.mubr.f32.mxu0 0.0
    %1718 = vmatmul.mubr.f32.gmra.mrb[0].mxu0 %v1651
    %v1719 = vpop.f32.mrb[0].mxu0
    %v1720 = vadd.f32 %v664, %v1719
    %v1721 = vpop.f32.mrb[0].mxu0
    %1722 = vdwg.mxu0
    %1723 = vmatprep.subr.mxu0 0.0
    %1724 = vmatpush1.msra.mxu0 %v649
    %1725 = vmatprep.subr.mxu0 0.0
    %1726 = vmatpush1.msra.mxu0 %v650
    %1727 = vmatprep.subr.mxu0 0.0
    %1728 = vmatpush1.msra.mxu0 %v651
    %1729 = vmatprep.subr.mxu0 0.0
    %1730 = vmatpush1.msra.mxu0 %v652
    %1731 = vmatprep.subr.mxu0 0.0
    %1732 = vmatpush1.msra.mxu0 0.0
    %1733 = vmatprep.subr.mxu0 0.0
    %1734 = vmatpush1.msra.mxu0 0.0
    %1735 = vmatprep.subr.mxu0 0.0
    %1736 = vmatpush1.msra.mxu0 0.0
    %1737 = vmatprep.subr.mxu0 0.0
    %1738 = vmatpush1.msra.mxu0 0.0
    %1739 = vmatprep.subr.mxu0 0.0
    %1740 = vmatpush1.msra.mxu0 0.0
    %1741 = vmatprep.subr.mxu0 0.0
    %1742 = vmatpush1.msra.mxu0 0.0
    %1743 = vmatprep.subr.mxu0 0.0
    %1744 = vmatpush1.msra.mxu0 0.0
    %1745 = vmatprep.subr.mxu0 0.0
    %1746 = vmatpush1.msra.mxu0 0.0
    %1747 = vmatprep.subr.mxu0 0.0
    %1748 = vmatpush1.msra.mxu0 0.0
    %1749 = vmatprep.subr.mxu0 0.0
    %1750 = vmatpush1.msra.mxu0 0.0
    %1751 = vmatprep.subr.mxu0 0.0
    %1752 = vmatpush1.msra.mxu0 0.0
    %1753 = vmatprep.subr.mxu0 0.0
    %1754 = vmatpush1.msra.mxu0 0.0
    %1755 = vmatprep.subr.mxu0 0.0
    %1756 = vmatpush1.msra.mxu0 0.0
    %1757 = vmatprep.subr.mxu0 0.0
    %1758 = vmatpush1.msra.mxu0 0.0
    %1759 = vmatprep.subr.mxu0 0.0
    %1760 = vmatpush1.msra.mxu0 0.0
    %1761 = vmatprep.subr.mxu0 0.0
    %1762 = vmatpush1.msra.mxu0 0.0
    %1763 = vmatprep.subr.mxu0 0.0
    %1764 = vmatpush1.msra.mxu0 0.0
    %1765 = vmatprep.subr.mxu0 0.0
    %1766 = vmatpush1.msra.mxu0 0.0
    %1767 = vmatprep.subr.mxu0 0.0
    %1768 = vmatpush1.msra.mxu0 0.0
    %1769 = vmatprep.subr.mxu0 0.0
    %1770 = vmatpush1.msra.mxu0 0.0
    %1771 = vmatprep.subr.mxu0 0.0
    %1772 = vmatpush1.msra.mxu0 0.0
    %1773 = vmatprep.subr.mxu0 0.0
    %1774 = vmatpush1.msra.mxu0 0.0
    %1775 = vmatprep.subr.mxu0 0.0
    %1776 = vmatpush1.msra.mxu0 0.0
    %1777 = vmatprep.subr.mxu0 0.0
    %1778 = vmatpush1.msra.mxu0 0.0
    %1779 = vmatprep.subr.mxu0 0.0
    %1780 = vmatpush1.msra.mxu0 0.0
    %1781 = vmatprep.subr.mxu0 0.0
    %1782 = vmatpush1.msra.mxu0 0.0
    %1783 = vmatprep.subr.mxu0 0.0
    %1784 = vmatpush1.msra.mxu0 0.0
    %1785 = vmatprep.subr.mxu0 0.0
    %1786 = vmatpush1.msra.mxu0 0.0
    %1787 = vmatprep.mubr.f32.mxu0 0.0
    %1788 = vmatmul.mubr.f32.gmra.mrb[0].mxu0 %v1651
    %v1789 = vpop.f32.mrb[0].mxu0
    %v1790 = vadd.f32 %v743, %v1789
    %v1791 = vpop.f32.mrb[0].mxu0
    %1792 = vdwg.mxu0
    %1793 = vmatprep.subr.mxu0 0.0
    %1794 = vmatpush1.msra.mxu0 %v653
    %1795 = vmatprep.subr.mxu0 0.0
    %1796 = vmatpush1.msra.mxu0 %v654
    %1797 = vmatprep.subr.mxu0 0.0
    %1798 = vmatpush1.msra.mxu0 %v655
    %1799 = vmatprep.subr.mxu0 0.0
    %1800 = vmatpush1.msra.mxu0 %v656
    %1801 = vmatprep.subr.mxu0 0.0
    %1802 = vmatpush1.msra.mxu0 0.0
    %1803 = vmatprep.subr.mxu0 0.0
    %1804 = vmatpush1.msra.mxu0 0.0
    %1805 = vmatprep.subr.mxu0 0.0
    %1806 = vmatpush1.msra.mxu0 0.0
    %1807 = vmatprep.subr.mxu0 0.0
    %1808 = vmatpush1.msra.mxu0 0.0
    %1809 = vmatprep.subr.mxu0 0.0
    %1810 = vmatpush1.msra.mxu0 0.0
    %1811 = vmatprep.subr.mxu0 0.0
    %1812 = vmatpush1.msra.mxu0 0.0
    %1813 = vmatprep.subr.mxu0 0.0
    %1814 = vmatpush1.msra.mxu0 0.0
    %1815 = vmatprep.subr.mxu0 0.0
    %1816 = vmatpush1.msra.mxu0 0.0
    %1817 = vmatprep.subr.mxu0 0.0
    %1818 = vmatpush1.msra.mxu0 0.0
    %1819 = vmatprep.subr.mxu0 0.0
    %1820 = vmatpush1.msra.mxu0 0.0
    %1821 = vmatprep.subr.mxu0 0.0
    %1822 = vmatpush1.msra.mxu0 0.0
    %1823 = vmatprep.subr.mxu0 0.0
    %1824 = vmatpush1.msra.mxu0 0.0
    %1825 = vmatprep.subr.mxu0 0.0
    %1826 = vmatpush1.msra.mxu0 0.0
    %1827 = vmatprep.subr.mxu0 0.0
    %1828 = vmatpush1.msra.mxu0 0.0
    %1829 = vmatprep.subr.mxu0 0.0
    %1830 = vmatpush1.msra.mxu0 0.0
    %1831 = vmatprep.subr.mxu0 0.0
    %1832 = vmatpush1.msra.mxu0 0.0
    %1833 = vmatprep.subr.mxu0 0.0
    %1834 = vmatpush1.msra.mxu0 0.0
    %1835 = vmatprep.subr.mxu0 0.0
    %1836 = vmatpush1.msra.mxu0 0.0
    %1837 = vmatprep.subr.mxu0 0.0
    %1838 = vmatpush1.msra.mxu0 0.0
    %1839 = vmatprep.subr.mxu0 0.0
    %1840 = vmatpush1.msra.mxu0 0.0
    %1841 = vmatprep.subr.mxu0 0.0
    %1842 = vmatpush1.msra.mxu0 0.0
    %1843 = vmatprep.subr.mxu0 0.0
    %1844 = vmatpush1.msra.mxu0 0.0
    %1845 = vmatprep.subr.mxu0 0.0
    %1846 = vmatpush1.msra.mxu0 0.0
    %1847 = vmatprep.subr.mxu0 0.0
    %1848 = vmatpush1.msra.mxu0 0.0
    %1849 = vmatprep.subr.mxu0 0.0
    %1850 = vmatpush1.msra.mxu0 0.0
    %1851 = vmatprep.subr.mxu0 0.0
    %1852 = vmatpush1.msra.mxu0 0.0
    %1853 = vmatprep.subr.mxu0 0.0
    %1854 = vmatpush1.msra.mxu0 0.0
    %1855 = vmatprep.subr.mxu0 0.0
    %1856 = vmatpush1.msra.mxu0 0.0
    %1857 = vmatprep.mubr.f32.mxu0 0.0
    %1858 = vmatmul.mubr.f32.gmra.mrb[0].mxu0 %v1651
    %v1859 = vpop.f32.mrb[0].mxu0
    %v1860 = vadd.f32 %v819, %v1859
    %v1861 = vpop.f32.mrb[0].mxu0
    %1862 = vdwg.mxu0
    %v1863 = vadd.f32 %v470, %v1720
    %v1864 = vxor.u32 %v1863, 2147483648
    %v1865 = vmul.f32 %v1864, 1.442695
    %v1866 = vpow.pop %v1865
    %v1867 = vadd.f32 %v1866, 1.0
    %v1868 = vrcp.pop %v1867
    %v1869 = vmul.f32 1.0, %v1868
    %v1870 = vadd.f32 %v556, %v1790
    %v1871 = vxor.u32 %v1870, 2147483648
    %v1872 = vmul.f32 %v1871, 1.442695
    %v1873 = vpow.pop %v1872
    %v1874 = vadd.f32 %v1873, 1.0
    %v1875 = vrcp.pop %v1874
    %v1876 = vmul.f32 1.0, %v1875
    %v1877 = vmul.f32 %v1869, %v1860
    %v1878 = vadd.f32 %v642, %v1877
    %v1879 = vtanh.pop %v1878
    %v1880 = vsub.f32 1.0, %v1876
    %v1881 = vmul.f32 %v1880, %v1879
    %v1883 = vmul.f32 %v1876, %v1650
    %v1884 = vadd.f32 %v1881, %v1883
    %v1886 = vsel %vm391, %v1884, 0
    %1888 = vmatprep.subr.mxu0 0.0
    %1889 = vmatpush1.msra.mxu0 %v645
    %1890 = vmatprep.subr.mxu0 0.0
    %1891 = vmatpush1.msra.mxu0 %v646
    %1892 = vmatprep.subr.mxu0 0.0
    %1893 = vmatpush1.msra.mxu0 %v647
    %1894 = vmatprep.subr.mxu0 0.0
    %1895 = vmatpush1.msra.mxu0 %v648
    %1896 = vmatprep.subr.mxu0 0.0
    %1897 = vmatpush1.msra.mxu0 0.0
    %1898 = vmatprep.subr.mxu0 0.0
    %1899 = vmatpush1.msra.mxu0 0.0
    %1900 = vmatprep.subr.mxu0 0.0
    %1901 = vmatpush1.msra.mxu0 0.0
    %1902 = vmatprep.subr.mxu0 0.0
    %1903 = vmatpush1.msra.mxu0 0.0
    %1904 = vmatprep.subr.mxu0 0.0
    %1905 = vmatpush1.msra.mxu0 0.0
    %1906 = vmatprep.subr.mxu0 0.0
    %1907 = vmatpush1.msra.mxu0 0.0
    %1908 = vmatprep.subr.mxu0 0.0
    %1909 = vmatpush1.msra.mxu0 0.0
    %1910 = vmatprep.subr.mxu0 0.0
    %1911 = vmatpush1.msra.mxu0 0.0
    %1912 = vmatprep.subr.mxu0 0.0
    %1913 = vmatpush1.msra.mxu0 0.0
    %1914 = vmatprep.subr.mxu0 0.0
    %1915 = vmatpush1.msra.mxu0 0.0
    %1916 = vmatprep.subr.mxu0 0.0
    %1917 = vmatpush1.msra.mxu0 0.0
    %1918 = vmatprep.subr.mxu0 0.0
    %1919 = vmatpush1.msra.mxu0 0.0
    %1920 = vmatprep.subr.mxu0 0.0
    %1921 = vmatpush1.msra.mxu0 0.0
    %1922 = vmatprep.subr.mxu0 0.0
    %1923 = vmatpush1.msra.mxu0 0.0
    %1924 = vmatprep.subr.mxu0 0.0
    %1925 = vmatpush1.msra.mxu0 0.0
    %1926 = vmatprep.subr.mxu0 0.0
    %1927 = vmatpush1.msra.mxu0 0.0
    %1928 = vmatprep.subr.mxu0 0.0
    %1929 = vmatpush1.msra.mxu0 0.0
    %1930 = vmatprep.subr.mxu0 0.0
    %1931 = vmatpush1.msra.mxu0 0.0
    %1932 = vmatprep.subr.mxu0 0.0
    %1933 = vmatpush1.msra.mxu0 0.0
    %1934 = vmatprep.subr.mxu0 0.0
    %1935 = vmatpush1.msra.mxu0 0.0
    %1936 = vmatprep.subr.mxu0 0.0
    %1937 = vmatpush1.msra.mxu0 0.0
    %1938 = vmatprep.subr.mxu0 0.0
    %1939 = vmatpush1.msra.mxu0 0.0
    %1940 = vmatprep.subr.mxu0 0.0
    %1941 = vmatpush1.msra.mxu0 0.0
    %1942 = vmatprep.subr.mxu0 0.0
    %1943 = vmatpush1.msra.mxu0 0.0
    %1944 = vmatprep.subr.mxu0 0.0
    %1945 = vmatpush1.msra.mxu0 0.0
    %1946 = vmatprep.subr.mxu0 0.0
    %1947 = vmatpush1.msra.mxu0 0.0
    %1948 = vmatprep.subr.mxu0 0.0
    %1949 = vmatpush1.msra.mxu0 0.0
    %1950 = vmatprep.subr.mxu0 0.0
    %1951 = vmatpush1.msra.mxu0 0.0
    %1952 = vmatprep.mubr.f32.mxu0 0.0
    %1953 = vmatmul.mubr.f32.gmra.mrb[0].mxu0 %v1886
    %v1954 = vpop.f32.mrb[0].mxu0
    %v1955 = vadd.f32 %v664, %v1954
    %v1956 = vpop.f32.mrb[0].mxu0
    %1957 = vdwg.mxu0
    %1958 = vmatprep.subr.mxu0 0.0
    %1959 = vmatpush1.msra.mxu0 %v649
    %1960 = vmatprep.subr.mxu0 0.0
    %1961 = vmatpush1.msra.mxu0 %v650
    %1962 = vmatprep.subr.mxu0 0.0
    %1963 = vmatpush1.msra.mxu0 %v651
    %1964 = vmatprep.subr.mxu0 0.0
    %1965 = vmatpush1.msra.mxu0 %v652
    %1966 = vmatprep.subr.mxu0 0.0
    %1967 = vmatpush1.msra.mxu0 0.0
    %1968 = vmatprep.subr.mxu0 0.0
    %1969 = vmatpush1.msra.mxu0 0.0
    %1970 = vmatprep.subr.mxu0 0.0
    %1971 = vmatpush1.msra.mxu0 0.0
    %1972 = vmatprep.subr.mxu0 0.0
    %1973 = vmatpush1.msra.mxu0 0.0
    %1974 = vmatprep.subr.mxu0 0.0
    %1975 = vmatpush1.msra.mxu0 0.0
    %1976 = vmatprep.subr.mxu0 0.0
    %1977 = vmatpush1.msra.mxu0 0.0
    %1978 = vmatprep.subr.mxu0 0.0
    %1979 = vmatpush1.msra.mxu0 0.0
    %1980 = vmatprep.subr.mxu0 0.0
    %1981 = vmatpush1.msra.mxu0 0.0
    %1982 = vmatprep.subr.mxu0 0.0
    %1983 = vmatpush1.msra.mxu0 0.0
    %1984 = vmatprep.subr.mxu0 0.0
    %1985 = vmatpush1.msra.mxu0 0.0
    %1986 = vmatprep.subr.mxu0 0.0
    %1987 = vmatpush1.msra.mxu0 0.0
    %1988 = vmatprep.subr.mxu0 0.0
    %1989 = vmatpush1.msra.mxu0 0.0
    %1990 = vmatprep.subr.mxu0 0.0
    %1991 = vmatpush1.msra.mxu0 0.0
    %1992 = vmatprep.subr.mxu0 0.0
    %1993 = vmatpush1.msra.mxu0 0.0
    %1994 = vmatprep.subr.mxu0 0.0
    %1995 = vmatpush1.msra.mxu0 0.0
    %1996 = vmatprep.subr.mxu0 0.0
    %1997 = vmatpush1.msra.mxu0 0.0
    %1998 = vmatprep.subr.mxu0 0.0
    %1999 = vmatpush1.msra.mxu0 0.0
    %2000 = vmatprep.subr.mxu0 0.0
    %2001 = vmatpush1.msra.mxu0 0.0
    %2002 = vmatprep.subr.mxu0 0.0
    %2003 = vmatpush1.msra.mxu0 0.0
    %2004 = vmatprep.subr.mxu0 0.0
    %2005 = vmatpush1.msra.mxu0 0.0
    %2006 = vmatprep.subr.mxu0 0.0
    %2007 = vmatpush1.msra.mxu0 0.0
    %2008 = vmatprep.subr.mxu0 0.0
    %2009 = vmatpush1.msra.mxu0 0.0
    %2010 = vmatprep.subr.mxu0 0.0
    %2011 = vmatpush1.msra.mxu0 0.0
    %2012 = vmatprep.subr.mxu0 0.0
    %2013 = vmatpush1.msra.mxu0 0.0
    %2014 = vmatprep.subr.mxu0 0.0
    %2015 = vmatpush1.msra.mxu0 0.0
    %2016 = vmatprep.subr.mxu0 0.0
    %2017 = vmatpush1.msra.mxu0 0.0
    %2018 = vmatprep.subr.mxu0 0.0
    %2019 = vmatpush1.msra.mxu0 0.0
    %2020 = vmatprep.subr.mxu0 0.0
    %2021 = vmatpush1.msra.mxu0 0.0
    %2022 = vmatprep.mubr.f32.mxu0 0.0
    %2023 = vmatmul.mubr.f32.gmra.mrb[0].mxu0 %v1886
    %v2024 = vpop.f32.mrb[0].mxu0
    %v2025 = vadd.f32 %v743, %v2024
    %v2026 = vpop.f32.mrb[0].mxu0
    %2027 = vdwg.mxu0
    %2028 = vmatprep.subr.mxu0 0.0
    %2029 = vmatpush1.msra.mxu0 %v653
    %2030 = vmatprep.subr.mxu0 0.0
    %2031 = vmatpush1.msra.mxu0 %v654
    %2032 = vmatprep.subr.mxu0 0.0
    %2033 = vmatpush1.msra.mxu0 %v655
    %2034 = vmatprep.subr.mxu0 0.0
    %2035 = vmatpush1.msra.mxu0 %v656
    %2036 = vmatprep.subr.mxu0 0.0
    %2037 = vmatpush1.msra.mxu0 0.0
    %2038 = vmatprep.subr.mxu0 0.0
    %2039 = vmatpush1.msra.mxu0 0.0
    %2040 = vmatprep.subr.mxu0 0.0
    %2041 = vmatpush1.msra.mxu0 0.0
    %2042 = vmatprep.subr.mxu0 0.0
    %2043 = vmatpush1.msra.mxu0 0.0
    %2044 = vmatprep.subr.mxu0 0.0
    %2045 = vmatpush1.msra.mxu0 0.0
    %2046 = vmatprep.subr.mxu0 0.0
    %2047 = vmatpush1.msra.mxu0 0.0
    %2048 = vmatprep.subr.mxu0 0.0
    %2049 = vmatpush1.msra.mxu0 0.0
    %2050 = vmatprep.subr.mxu0 0.0
    %2051 = vmatpush1.msra.mxu0 0.0
    %2052 = vmatprep.subr.mxu0 0.0
    %2053 = vmatpush1.msra.mxu0 0.0
    %2054 = vmatprep.subr.mxu0 0.0
    %2055 = vmatpush1.msra.mxu0 0.0
    %2056 = vmatprep.subr.mxu0 0.0
    %2057 = vmatpush1.msra.mxu0 0.0
    %2058 = vmatprep.subr.mxu0 0.0
    %2059 = vmatpush1.msra.mxu0 0.0
    %2060 = vmatprep.subr.mxu0 0.0
    %2061 = vmatpush1.msra.mxu0 0.0
    %2062 = vmatprep.subr.mxu0 0.0
    %2063 = vmatpush1.msra.mxu0 0.0
    %2064 = vmatprep.subr.mxu0 0.0
    %2065 = vmatpush1.msra.mxu0 0.0
    %2066 = vmatprep.subr.mxu0 0.0
    %2067 = vmatpush1.msra.mxu0 0.0
    %2068 = vmatprep.subr.mxu0 0.0
    %2069 = vmatpush1.msra.mxu0 0.0
    %2070 = vmatprep.subr.mxu0 0.0
    %2071 = vmatpush1.msra.mxu0 0.0
    %2072 = vmatprep.subr.mxu0 0.0
    %2073 = vmatpush1.msra.mxu0 0.0
    %2074 = vmatprep.subr.mxu0 0.0
    %2075 = vmatpush1.msra.mxu0 0.0
    %2076 = vmatprep.subr.mxu0 0.0
    %2077 = vmatpush1.msra.mxu0 0.0
    %2078 = vmatprep.subr.mxu0 0.0
    %2079 = vmatpush1.msra.mxu0 0.0
    %2080 = vmatprep.subr.mxu0 0.0
    %2081 = vmatpush1.msra.mxu0 0.0
    %2082 = vmatprep.subr.mxu0 0.0
    %2083 = vmatpush1.msra.mxu0 0.0
    %2084 = vmatprep.subr.mxu0 0.0
    %2085 = vmatpush1.msra.mxu0 0.0
    %2086 = vmatprep.subr.mxu0 0.0
    %2087 = vmatpush1.msra.mxu0 0.0
    %2088 = vmatprep.subr.mxu0 0.0
    %2089 = vmatpush1.msra.mxu0 0.0
    %2090 = vmatprep.subr.mxu0 0.0
    %2091 = vmatpush1.msra.mxu0 0.0
    %2092 = vmatprep.mubr.f32.mxu0 0.0
    %2093 = vmatmul.mubr.f32.gmra.mrb[0].mxu0 %v1886
    %v2094 = vpop.f32.mrb[0].mxu0
    %v2095 = vadd.f32 %v819, %v2094
    %v2096 = vpop.f32.mrb[0].mxu0
    %2097 = vdwg.mxu0
    %v2099 = vrot.slane %v1955, 6
    %v2101 = vadd.f32 %v470, %v2099
    %v2102 = vxor.u32 %v2101, 2147483648
    %v2103 = vmul.f32 %v2102, 1.442695
    %v2104 = vpow.pop %v2103
    %v2105 = vadd.f32 %v2104, 1.0
    %v2106 = vrcp.pop %v2105
    %v2107 = vmul.f32 1.0, %v2106
    %v2109 = vrot.slane %v2025, 6
    %v2111 = vadd.f32 %v556, %v2109
    %v2112 = vxor.u32 %v2111, 2147483648
    %v2113 = vmul.f32 %v2112, 1.442695
    %v2114 = vpow.pop %v2113
    %v2115 = vadd.f32 %v2114, 1.0
    %v2116 = vrcp.pop %v2115
    %v2117 = vmul.f32 1.0, %v2116
    %v2119 = vrot.slane %v2095, 6
    %v2121 = vmul.f32 %v2107, %v2119
    %v2122 = vadd.f32 %v642, %v2121
    %v2123 = vtanh.pop %v2122
    %v2124 = vsub.f32 1.0, %v2117
    %v2125 = vmul.f32 %v2124, %v2123
    %v2126 = vrot.slane %v1884, 6
    %v2128 = vmul.f32 %v2117, %v2126
    %v2129 = vadd.f32 %v2125, %v2128
    %v2131 = vrot.slane %v2129, 2
    %v2132 = vsel %vm391, %v2131, 0
    %2134 = vmatprep.subr.mxu0 0.0
    %2135 = vmatpush1.msra.mxu0 %v645
    %2136 = vmatprep.subr.mxu0 0.0
    %2137 = vmatpush1.msra.mxu0 %v646
    %2138 = vmatprep.subr.mxu0 0.0
    %2139 = vmatpush1.msra.mxu0 %v647
    %2140 = vmatprep.subr.mxu0 0.0
    %2141 = vmatpush1.msra.mxu0 %v648
    %2142 = vmatprep.subr.mxu0 0.0
    %2143 = vmatpush1.msra.mxu0 0.0
    %2144 = vmatprep.subr.mxu0 0.0
    %2145 = vmatpush1.msra.mxu0 0.0
    %2146 = vmatprep.subr.mxu0 0.0
    %2147 = vmatpush1.msra.mxu0 0.0
    %2148 = vmatprep.subr.mxu0 0.0
    %2149 = vmatpush1.msra.mxu0 0.0
    %2150 = vmatprep.subr.mxu0 0.0
    %2151 = vmatpush1.msra.mxu0 0.0
    %2152 = vmatprep.subr.mxu0 0.0
    %2153 = vmatpush1.msra.mxu0 0.0
    %2154 = vmatprep.subr.mxu0 0.0
    %2155 = vmatpush1.msra.mxu0 0.0
    %2156 = vmatprep.subr.mxu0 0.0
    %2157 = vmatpush1.msra.mxu0 0.0
    %2158 = vmatprep.subr.mxu0 0.0
    %2159 = vmatpush1.msra.mxu0 0.0
    %2160 = vmatprep.subr.mxu0 0.0
    %2161 = vmatpush1.msra.mxu0 0.0
    %2162 = vmatprep.subr.mxu0 0.0
    %2163 = vmatpush1.msra.mxu0 0.0
    %2164 = vmatprep.subr.mxu0 0.0
    %2165 = vmatpush1.msra.mxu0 0.0
    %2166 = vmatprep.subr.mxu0 0.0
    %2167 = vmatpush1.msra.mxu0 0.0
    %2168 = vmatprep.subr.mxu0 0.0
    %2169 = vmatpush1.msra.mxu0 0.0
    %2170 = vmatprep.subr.mxu0 0.0
    %2171 = vmatpush1.msra.mxu0 0.0
    %2172 = vmatprep.subr.mxu0 0.0
    %2173 = vmatpush1.msra.mxu0 0.0
    %2174 = vmatprep.subr.mxu0 0.0
    %2175 = vmatpush1.msra.mxu0 0.0
    %2176 = vmatprep.subr.mxu0 0.0
    %2177 = vmatpush1.msra.mxu0 0.0
    %2178 = vmatprep.subr.mxu0 0.0
    %2179 = vmatpush1.msra.mxu0 0.0
    %2180 = vmatprep.subr.mxu0 0.0
    %2181 = vmatpush1.msra.mxu0 0.0
    %2182 = vmatprep.subr.mxu0 0.0
    %2183 = vmatpush1.msra.mxu0 0.0
    %2184 = vmatprep.subr.mxu0 0.0
    %2185 = vmatpush1.msra.mxu0 0.0
    %2186 = vmatprep.subr.mxu0 0.0
    %2187 = vmatpush1.msra.mxu0 0.0
    %2188 = vmatprep.subr.mxu0 0.0
    %2189 = vmatpush1.msra.mxu0 0.0
    %2190 = vmatprep.subr.mxu0 0.0
    %2191 = vmatpush1.msra.mxu0 0.0
    %2192 = vmatprep.subr.mxu0 0.0
    %2193 = vmatpush1.msra.mxu0 0.0
    %2194 = vmatprep.subr.mxu0 0.0
    %2195 = vmatpush1.msra.mxu0 0.0
    %2196 = vmatprep.subr.mxu0 0.0
    %2197 = vmatpush1.msra.mxu0 0.0
    %2198 = vmatprep.mubr.f32.mxu0 0.0
    %2199 = vmatmul.mubr.f32.gmra.mrb[0].mxu0 %v2132
    %v2200 = vpop.f32.mrb[0].mxu0
    %v2201 = vadd.f32 %v664, %v2200
    %v2202 = vpop.f32.mrb[0].mxu0
    %2203 = vdwg.mxu0
    %2204 = vmatprep.subr.mxu0 0.0
    %2205 = vmatpush1.msra.mxu0 %v649
    %2206 = vmatprep.subr.mxu0 0.0
    %2207 = vmatpush1.msra.mxu0 %v650
    %2208 = vmatprep.subr.mxu0 0.0
    %2209 = vmatpush1.msra.mxu0 %v651
    %2210 = vmatprep.subr.mxu0 0.0
    %2211 = vmatpush1.msra.mxu0 %v652
    %2212 = vmatprep.subr.mxu0 0.0
    %2213 = vmatpush1.msra.mxu0 0.0
    %2214 = vmatprep.subr.mxu0 0.0
    %2215 = vmatpush1.msra.mxu0 0.0
    %2216 = vmatprep.subr.mxu0 0.0
    %2217 = vmatpush1.msra.mxu0 0.0
    %2218 = vmatprep.subr.mxu0 0.0
    %2219 = vmatpush1.msra.mxu0 0.0
    %2220 = vmatprep.subr.mxu0 0.0
    %2221 = vmatpush1.msra.mxu0 0.0
    %2222 = vmatprep.subr.mxu0 0.0
    %2223 = vmatpush1.msra.mxu0 0.0
    %2224 = vmatprep.subr.mxu0 0.0
    %2225 = vmatpush1.msra.mxu0 0.0
    %2226 = vmatprep.subr.mxu0 0.0
    %2227 = vmatpush1.msra.mxu0 0.0
    %2228 = vmatprep.subr.mxu0 0.0
    %2229 = vmatpush1.msra.mxu0 0.0
    %2230 = vmatprep.subr.mxu0 0.0
    %2231 = vmatpush1.msra.mxu0 0.0
    %2232 = vmatprep.subr.mxu0 0.0
    %2233 = vmatpush1.msra.mxu0 0.0
    %2234 = vmatprep.subr.mxu0 0.0
    %2235 = vmatpush1.msra.mxu0 0.0
    %2236 = vmatprep.subr.mxu0 0.0
    %2237 = vmatpush1.msra.mxu0 0.0
    %2238 = vmatprep.subr.mxu0 0.0
    %2239 = vmatpush1.msra.mxu0 0.0
    %2240 = vmatprep.subr.mxu0 0.0
    %2241 = vmatpush1.msra.mxu0 0.0
    %2242 = vmatprep.subr.mxu0 0.0
    %2243 = vmatpush1.msra.mxu0 0.0
    %2244 = vmatprep.subr.mxu0 0.0
    %2245 = vmatpush1.msra.mxu0 0.0
    %2246 = vmatprep.subr.mxu0 0.0
    %2247 = vmatpush1.msra.mxu0 0.0
    %2248 = vmatprep.subr.mxu0 0.0
    %2249 = vmatpush1.msra.mxu0 0.0
    %2250 = vmatprep.subr.mxu0 0.0
    %2251 = vmatpush1.msra.mxu0 0.0
    %2252 = vmatprep.subr.mxu0 0.0
    %2253 = vmatpush1.msra.mxu0 0.0
    %2254 = vmatprep.subr.mxu0 0.0
    %2255 = vmatpush1.msra.mxu0 0.0
    %2256 = vmatprep.subr.mxu0 0.0
    %2257 = vmatpush1.msra.mxu0 0.0
    %2258 = vmatprep.subr.mxu0 0.0
    %2259 = vmatpush1.msra.mxu0 0.0
    %2260 = vmatprep.subr.mxu0 0.0
    %2261 = vmatpush1.msra.mxu0 0.0
    %2262 = vmatprep.subr.mxu0 0.0
    %2263 = vmatpush1.msra.mxu0 0.0
    %2264 = vmatprep.subr.mxu0 0.0
    %2265 = vmatpush1.msra.mxu0 0.0
    %2266 = vmatprep.subr.mxu0 0.0
    %2267 = vmatpush1.msra.mxu0 0.0
    %2268 = vmatprep.mubr.f32.mxu0 0.0
    %2269 = vmatmul.mubr.f32.gmra.mrb[0].mxu0 %v2132
    %v2270 = vpop.f32.mrb[0].mxu0
    %v2271 = vadd.f32 %v743, %v2270
    %v2272 = vpop.f32.mrb[0].mxu0
    %2273 = vdwg.mxu0
    %2274 = vmatprep.subr.mxu0 0.0
    %2275 = vmatpush1.msra.mxu0 %v653
    %2276 = vmatprep.subr.mxu0 0.0
    %2277 = vmatpush1.msra.mxu0 %v654
    %2278 = vmatprep.subr.mxu0 0.0
    %2279 = vmatpush1.msra.mxu0 %v655
    %2280 = vmatprep.subr.mxu0 0.0
    %2281 = vmatpush1.msra.mxu0 %v656
    %2282 = vmatprep.subr.mxu0 0.0
    %2283 = vmatpush1.msra.mxu0 0.0
    %2284 = vmatprep.subr.mxu0 0.0
    %2285 = vmatpush1.msra.mxu0 0.0
    %2286 = vmatprep.subr.mxu0 0.0
    %2287 = vmatpush1.msra.mxu0 0.0
    %2288 = vmatprep.subr.mxu0 0.0
    %2289 = vmatpush1.msra.mxu0 0.0
    %2290 = vmatprep.subr.mxu0 0.0
    %2291 = vmatpush1.msra.mxu0 0.0
    %2292 = vmatprep.subr.mxu0 0.0
    %2293 = vmatpush1.msra.mxu0 0.0
    %2294 = vmatprep.subr.mxu0 0.0
    %2295 = vmatpush1.msra.mxu0 0.0
    %2296 = vmatprep.subr.mxu0 0.0
    %2297 = vmatpush1.msra.mxu0 0.0
    %2298 = vmatprep.subr.mxu0 0.0
    %2299 = vmatpush1.msra.mxu0 0.0
    %2300 = vmatprep.subr.mxu0 0.0
    %2301 = vmatpush1.msra.mxu0 0.0
    %2302 = vmatprep.subr.mxu0 0.0
    %2303 = vmatpush1.msra.mxu0 0.0
    %2304 = vmatprep.subr.mxu0 0.0
    %2305 = vmatpush1.msra.mxu0 0.0
    %2306 = vmatprep.subr.mxu0 0.0
    %2307 = vmatpush1.msra.mxu0 0.0
    %2308 = vmatprep.subr.mxu0 0.0
    %2309 = vmatpush1.msra.mxu0 0.0
    %2310 = vmatprep.subr.mxu0 0.0
    %2311 = vmatpush1.msra.mxu0 0.0
    %2312 = vmatprep.subr.mxu0 0.0
    %2313 = vmatpush1.msra.mxu0 0.0
    %2314 = vmatprep.subr.mxu0 0.0
    %2315 = vmatpush1.msra.mxu0 0.0
    %2316 = vmatprep.subr.mxu0 0.0
    %2317 = vmatpush1.msra.mxu0 0.0
    %2318 = vmatprep.subr.mxu0 0.0
    %2319 = vmatpush1.msra.mxu0 0.0
    %2320 = vmatprep.subr.mxu0 0.0
    %2321 = vmatpush1.msra.mxu0 0.0
    %2322 = vmatprep.subr.mxu0 0.0
    %2323 = vmatpush1.msra.mxu0 0.0
    %2324 = vmatprep.subr.mxu0 0.0
    %2325 = vmatpush1.msra.mxu0 0.0
    %2326 = vmatprep.subr.mxu0 0.0
    %2327 = vmatpush1.msra.mxu0 0.0
    %2328 = vmatprep.subr.mxu0 0.0
    %2329 = vmatpush1.msra.mxu0 0.0
    %2330 = vmatprep.subr.mxu0 0.0
    %2331 = vmatpush1.msra.mxu0 0.0
    %2332 = vmatprep.subr.mxu0 0.0
    %2333 = vmatpush1.msra.mxu0 0.0
    %2334 = vmatprep.subr.mxu0 0.0
    %2335 = vmatpush1.msra.mxu0 0.0
    %2336 = vmatprep.subr.mxu0 0.0
    %2337 = vmatpush1.msra.mxu0 0.0
    %2338 = vmatprep.mubr.f32.mxu0 0.0
    %2339 = vmatmul.mubr.f32.gmra.mrb[0].mxu0 %v2132
    %v2340 = vpop.f32.mrb[0].mxu0
    %v2341 = vadd.f32 %v819, %v2340
    %v2342 = vpop.f32.mrb[0].mxu0
    %2343 = vdwg.mxu0
    %v2345 = vrot.slane %v2201, 4
    %v2347 = vadd.f32 %v470, %v2345
    %v2348 = vxor.u32 %v2347, 2147483648
    %v2349 = vmul.f32 %v2348, 1.442695
    %v2350 = vpow.pop %v2349
    %v2351 = vadd.f32 %v2350, 1.0
    %v2352 = vrcp.pop %v2351
    %v2353 = vmul.f32 1.0, %v2352
    %v2355 = vrot.slane %v2271, 4
    %v2357 = vadd.f32 %v556, %v2355
    %v2358 = vxor.u32 %v2357, 2147483648
    %v2359 = vmul.f32 %v2358, 1.442695
    %v2360 = vpow.pop %v2359
    %v2361 = vadd.f32 %v2360, 1.0
    %v2362 = vrcp.pop %v2361
    %v2363 = vmul.f32 1.0, %v2362
    %v2365 = vrot.slane %v2341, 4
    %v2367 = vmul.f32 %v2353, %v2365
    %v2368 = vadd.f32 %v642, %v2367
    %v2369 = vtanh.pop %v2368
    %v2370 = vsub.f32 1.0, %v2363
    %v2371 = vmul.f32 %v2370, %v2369
    %v2372 = vrot.slane %v2129, 6
    %v2374 = vmul.f32 %v2363, %v2372
    %v2375 = vadd.f32 %v2371, %v2374
    %v2377 = vrot.slane %v2375, 4
    %v2378 = vsel %vm391, %v2377, 0
    %2380 = vmatprep.subr.mxu0 0.0
    %2381 = vmatpush1.msra.mxu0 %v645
    %2382 = vmatprep.subr.mxu0 0.0
    %2383 = vmatpush1.msra.mxu0 %v646
    %2384 = vmatprep.subr.mxu0 0.0
    %2385 = vmatpush1.msra.mxu0 %v647
    %2386 = vmatprep.subr.mxu0 0.0
    %2387 = vmatpush1.msra.mxu0 %v648
    %2388 = vmatprep.subr.mxu0 0.0
    %2389 = vmatpush1.msra.mxu0 0.0
    %2390 = vmatprep.subr.mxu0 0.0
    %2391 = vmatpush1.msra.mxu0 0.0
    %2392 = vmatprep.subr.mxu0 0.0
    %2393 = vmatpush1.msra.mxu0 0.0
    %2394 = vmatprep.subr.mxu0 0.0
    %2395 = vmatpush1.msra.mxu0 0.0
    %2396 = vmatprep.subr.mxu0 0.0
    %2397 = vmatpush1.msra.mxu0 0.0
    %2398 = vmatprep.subr.mxu0 0.0
    %2399 = vmatpush1.msra.mxu0 0.0
    %2400 = vmatprep.subr.mxu0 0.0
    %2401 = vmatpush1.msra.mxu0 0.0
    %2402 = vmatprep.subr.mxu0 0.0
    %2403 = vmatpush1.msra.mxu0 0.0
    %2404 = vmatprep.subr.mxu0 0.0
    %2405 = vmatpush1.msra.mxu0 0.0
    %2406 = vmatprep.subr.mxu0 0.0
    %2407 = vmatpush1.msra.mxu0 0.0
    %2408 = vmatprep.subr.mxu0 0.0
    %2409 = vmatpush1.msra.mxu0 0.0
    %2410 = vmatprep.subr.mxu0 0.0
    %2411 = vmatpush1.msra.mxu0 0.0
    %2412 = vmatprep.subr.mxu0 0.0
    %2413 = vmatpush1.msra.mxu0 0.0
    %2414 = vmatprep.subr.mxu0 0.0
    %2415 = vmatpush1.msra.mxu0 0.0
    %2416 = vmatprep.subr.mxu0 0.0
    %2417 = vmatpush1.msra.mxu0 0.0
    %2418 = vmatprep.subr.mxu0 0.0
    %2419 = vmatpush1.msra.mxu0 0.0
    %2420 = vmatprep.subr.mxu0 0.0
    %2421 = vmatpush1.msra.mxu0 0.0
    %2422 = vmatprep.subr.mxu0 0.0
    %2423 = vmatpush1.msra.mxu0 0.0
    %2424 = vmatprep.subr.mxu0 0.0
    %2425 = vmatpush1.msra.mxu0 0.0
    %2426 = vmatprep.subr.mxu0 0.0
    %2427 = vmatpush1.msra.mxu0 0.0
    %2428 = vmatprep.subr.mxu0 0.0
    %2429 = vmatpush1.msra.mxu0 0.0
    %2430 = vmatprep.subr.mxu0 0.0
    %2431 = vmatpush1.msra.mxu0 0.0
    %2432 = vmatprep.subr.mxu0 0.0
    %2433 = vmatpush1.msra.mxu0 0.0
    %2434 = vmatprep.subr.mxu0 0.0
    %2435 = vmatpush1.msra.mxu0 0.0
    %2436 = vmatprep.subr.mxu0 0.0
    %2437 = vmatpush1.msra.mxu0 0.0
    %2438 = vmatprep.subr.mxu0 0.0
    %2439 = vmatpush1.msra.mxu0 0.0
    %2440 = vmatprep.subr.mxu0 0.0
    %2441 = vmatpush1.msra.mxu0 0.0
    %2442 = vmatprep.subr.mxu0 0.0
    %2443 = vmatpush1.msra.mxu0 0.0
    %2444 = vmatprep.mubr.f32.mxu0 0.0
    %2445 = vmatmul.mubr.f32.gmra.mrb[0].mxu0 %v2378
    %v2446 = vpop.f32.mrb[0].mxu0
    %v2447 = vadd.f32 %v664, %v2446
    %v2448 = vpop.f32.mrb[0].mxu0
    %2449 = vdwg.mxu0
    %2450 = vmatprep.subr.mxu0 0.0
    %2451 = vmatpush1.msra.mxu0 %v649
    %2452 = vmatprep.subr.mxu0 0.0
    %2453 = vmatpush1.msra.mxu0 %v650
    %2454 = vmatprep.subr.mxu0 0.0
    %2455 = vmatpush1.msra.mxu0 %v651
    %2456 = vmatprep.subr.mxu0 0.0
    %2457 = vmatpush1.msra.mxu0 %v652
    %2458 = vmatprep.subr.mxu0 0.0
    %2459 = vmatpush1.msra.mxu0 0.0
    %2460 = vmatprep.subr.mxu0 0.0
    %2461 = vmatpush1.msra.mxu0 0.0
    %2462 = vmatprep.subr.mxu0 0.0
    %2463 = vmatpush1.msra.mxu0 0.0
    %2464 = vmatprep.subr.mxu0 0.0
    %2465 = vmatpush1.msra.mxu0 0.0
    %2466 = vmatprep.subr.mxu0 0.0
    %2467 = vmatpush1.msra.mxu0 0.0
    %2468 = vmatprep.subr.mxu0 0.0
    %2469 = vmatpush1.msra.mxu0 0.0
    %2470 = vmatprep.subr.mxu0 0.0
    %2471 = vmatpush1.msra.mxu0 0.0
    %2472 = vmatprep.subr.mxu0 0.0
    %2473 = vmatpush1.msra.mxu0 0.0
    %2474 = vmatprep.subr.mxu0 0.0
    %2475 = vmatpush1.msra.mxu0 0.0
    %2476 = vmatprep.subr.mxu0 0.0
    %2477 = vmatpush1.msra.mxu0 0.0
    %2478 = vmatprep.subr.mxu0 0.0
    %2479 = vmatpush1.msra.mxu0 0.0
    %2480 = vmatprep.subr.mxu0 0.0
    %2481 = vmatpush1.msra.mxu0 0.0
    %2482 = vmatprep.subr.mxu0 0.0
    %2483 = vmatpush1.msra.mxu0 0.0
    %2484 = vmatprep.subr.mxu0 0.0
    %2485 = vmatpush1.msra.mxu0 0.0
    %2486 = vmatprep.subr.mxu0 0.0
    %2487 = vmatpush1.msra.mxu0 0.0
    %2488 = vmatprep.subr.mxu0 0.0
    %2489 = vmatpush1.msra.mxu0 0.0
    %2490 = vmatprep.subr.mxu0 0.0
    %2491 = vmatpush1.msra.mxu0 0.0
    %2492 = vmatprep.subr.mxu0 0.0
    %2493 = vmatpush1.msra.mxu0 0.0
    %2494 = vmatprep.subr.mxu0 0.0
    %2495 = vmatpush1.msra.mxu0 0.0
    %2496 = vmatprep.subr.mxu0 0.0
    %2497 = vmatpush1.msra.mxu0 0.0
    %2498 = vmatprep.subr.mxu0 0.0
    %2499 = vmatpush1.msra.mxu0 0.0
    %2500 = vmatprep.subr.mxu0 0.0
    %2501 = vmatpush1.msra.mxu0 0.0
    %2502 = vmatprep.subr.mxu0 0.0
    %2503 = vmatpush1.msra.mxu0 0.0
    %2504 = vmatprep.subr.mxu0 0.0
    %2505 = vmatpush1.msra.mxu0 0.0
    %2506 = vmatprep.subr.mxu0 0.0
    %2507 = vmatpush1.msra.mxu0 0.0
    %2508 = vmatprep.subr.mxu0 0.0
    %2509 = vmatpush1.msra.mxu0 0.0
    %2510 = vmatprep.subr.mxu0 0.0
    %2511 = vmatpush1.msra.mxu0 0.0
    %2512 = vmatprep.subr.mxu0 0.0
    %2513 = vmatpush1.msra.mxu0 0.0
    %2514 = vmatprep.mubr.f32.mxu0 0.0
    %2515 = vmatmul.mubr.f32.gmra.mrb[0].mxu0 %v2378
    %v2516 = vpop.f32.mrb[0].mxu0
    %v2517 = vadd.f32 %v743, %v2516
    %v2518 = vpop.f32.mrb[0].mxu0
    %2519 = vdwg.mxu0
    %2520 = vmatprep.subr.mxu0 0.0
    %2521 = vmatpush1.msra.mxu0 %v653
    %2522 = vmatprep.subr.mxu0 0.0
    %2523 = vmatpush1.msra.mxu0 %v654
    %2524 = vmatprep.subr.mxu0 0.0
    %2525 = vmatpush1.msra.mxu0 %v655
    %2526 = vmatprep.subr.mxu0 0.0
    %2527 = vmatpush1.msra.mxu0 %v656
    %2528 = vmatprep.subr.mxu0 0.0
    %2529 = vmatpush1.msra.mxu0 0.0
    %2530 = vmatprep.subr.mxu0 0.0
    %2531 = vmatpush1.msra.mxu0 0.0
    %2532 = vmatprep.subr.mxu0 0.0
    %2533 = vmatpush1.msra.mxu0 0.0
    %2534 = vmatprep.subr.mxu0 0.0
    %2535 = vmatpush1.msra.mxu0 0.0
    %2536 = vmatprep.subr.mxu0 0.0
    %2537 = vmatpush1.msra.mxu0 0.0
    %2538 = vmatprep.subr.mxu0 0.0
    %2539 = vmatpush1.msra.mxu0 0.0
    %2540 = vmatprep.subr.mxu0 0.0
    %2541 = vmatpush1.msra.mxu0 0.0
    %2542 = vmatprep.subr.mxu0 0.0
    %2543 = vmatpush1.msra.mxu0 0.0
    %2544 = vmatprep.subr.mxu0 0.0
    %2545 = vmatpush1.msra.mxu0 0.0
    %2546 = vmatprep.subr.mxu0 0.0
    %2547 = vmatpush1.msra.mxu0 0.0
    %2548 = vmatprep.subr.mxu0 0.0
    %2549 = vmatpush1.msra.mxu0 0.0
    %2550 = vmatprep.subr.mxu0 0.0
    %2551 = vmatpush1.msra.mxu0 0.0
    %2552 = vmatprep.subr.mxu0 0.0
    %2553 = vmatpush1.msra.mxu0 0.0
    %2554 = vmatprep.subr.mxu0 0.0
    %2555 = vmatpush1.msra.mxu0 0.0
    %2556 = vmatprep.subr.mxu0 0.0
    %2557 = vmatpush1.msra.mxu0 0.0
    %2558 = vmatprep.subr.mxu0 0.0
    %2559 = vmatpush1.msra.mxu0 0.0
    %2560 = vmatprep.subr.mxu0 0.0
    %2561 = vmatpush1.msra.mxu0 0.0
    %2562 = vmatprep.subr.mxu0 0.0
    %2563 = vmatpush1.msra.mxu0 0.0
    %2564 = vmatprep.subr.mxu0 0.0
    %2565 = vmatpush1.msra.mxu0 0.0
    %2566 = vmatprep.subr.mxu0 0.0
    %2567 = vmatpush1.msra.mxu0 0.0
    %2568 = vmatprep.subr.mxu0 0.0
    %2569 = vmatpush1.msra.mxu0 0.0
    %2570 = vmatprep.subr.mxu0 0.0
    %2571 = vmatpush1.msra.mxu0 0.0
    %2572 = vmatprep.subr.mxu0 0.0
    %2573 = vmatpush1.msra.mxu0 0.0
    %2574 = vmatprep.subr.mxu0 0.0
    %2575 = vmatpush1.msra.mxu0 0.0
    %2576 = vmatprep.subr.mxu0 0.0
    %2577 = vmatpush1.msra.mxu0 0.0
    %2578 = vmatprep.subr.mxu0 0.0
    %2579 = vmatpush1.msra.mxu0 0.0
    %2580 = vmatprep.subr.mxu0 0.0
    %2581 = vmatpush1.msra.mxu0 0.0
    %2582 = vmatprep.subr.mxu0 0.0
    %2583 = vmatpush1.msra.mxu0 0.0
    %2584 = vmatprep.mubr.f32.mxu0 0.0
    %2585 = vmatmul.mubr.f32.gmra.mrb[0].mxu0 %v2378
    %v2586 = vpop.f32.mrb[0].mxu0
    %v2587 = vadd.f32 %v819, %v2586
    %v2588 = vpop.f32.mrb[0].mxu0
    %2589 = vdwg.mxu0
    %v2591 = vrot.slane %v2447, 2
    %v2593 = vadd.f32 %v470, %v2591
    %v2594 = vxor.u32 %v2593, 2147483648
    %v2595 = vmul.f32 %v2594, 1.442695
    %v2596 = vpow.pop %v2595
    %v2597 = vadd.f32 %v2596, 1.0
    %v2598 = vrcp.pop %v2597
    %v2599 = vmul.f32 1.0, %v2598
    %v2601 = vrot.slane %v2517, 2
    %v2603 = vadd.f32 %v556, %v2601
    %v2604 = vxor.u32 %v2603, 2147483648
    %v2605 = vmul.f32 %v2604, 1.442695
    %v2606 = vpow.pop %v2605
    %v2607 = vadd.f32 %v2606, 1.0
    %v2608 = vrcp.pop %v2607
    %v2609 = vmul.f32 1.0, %v2608
    %v2611 = vrot.slane %v2587, 2
    %v2613 = vmul.f32 %v2599, %v2611
    %v2614 = vadd.f32 %v642, %v2613
    %v2615 = vtanh.pop %v2614
    %v2616 = vsub.f32 1.0, %v2609
    %v2617 = vmul.f32 %v2616, %v2615
    %v2618 = vrot.slane %v2375, 6
    %v2620 = vmul.f32 %v2609, %v2618
    %v2621 = vadd.f32 %v2617, %v2620
    %v2622 = vld [vmem:[%s3] sm:$0xff]
    %v2623 = vld [vmem:[%s3 + $0x8] sm:$0xff]
    %v2624 = vld [vmem:[%s3 + $0x10] sm:$0xff]
    %v2625 = vld [vmem:[%s3 + $0x18] sm:$0xff]
    %v2626 = vld [vmem:[%s31] sm:$0xff]
    %v2627 = vld [vmem:[%s31 + $0x8] sm:$0xff]
    %v2628 = vld [vmem:[%s31 + $0x10] sm:$0xff]
    %v2629 = vld [vmem:[%s31 + $0x18] sm:$0xff]
    %v2630 = vld [vmem:[%s31 + $0x20] sm:$0xff]
    %v2631 = vld [vmem:[%s31 + $0x28] sm:$0xff]
    %v2632 = vld [vmem:[%s31 + $0x30] sm:$0xff]
    %v2633 = vld [vmem:[%s31 + $0x38] sm:$0xff]
    %v2634 = vld [vmem:[%s33] sm:$0x1]
    %v2636 = vlaneseq
    %v2637 = vshrl.u32 %v2636, 7
    %v2638 = vsub.s32 0, %v2637
    %v2639 = vrot.slane %v2634, %v2638
    %vm2641 = vcmask 523264
    %v2643 = vsel %vm2641, %v2622, 0
    %v2646 = vsel %vm2641, %v2623, 0
    %v2649 = vsel %vm2641, %v2624, 0
    %v2652 = vsel %vm2641, %v2625, 0
    %2654 = vmatprep.subr.mxu0 0.0
    %2655 = vmatpush1.msra.mxu0 %v2626
    %2656 = vmatprep.subr.mxu0 0.0
    %2657 = vmatpush1.msra.mxu0 %v2627
    %2658 = vmatprep.subr.mxu0 0.0
    %2659 = vmatpush1.msra.mxu0 %v2628
    %2660 = vmatprep.subr.mxu0 0.0
    %2661 = vmatpush1.msra.mxu0 %v2629
    %2662 = vmatprep.subr.mxu0 0.0
    %2663 = vmatpush1.msra.mxu0 %v2630
    %2664 = vmatprep.subr.mxu0 0.0
    %2665 = vmatpush1.msra.mxu0 %v2631
    %2666 = vmatprep.subr.mxu0 0.0
    %2667 = vmatpush1.msra.mxu0 %v2632
    %2668 = vmatprep.subr.mxu0 0.0
    %2669 = vmatpush1.msra.mxu0 %v2633
    %2670 = vmatprep.subr.mxu0 0.0
    %2671 = vmatpush1.msra.mxu0 0.0
    %2672 = vmatprep.subr.mxu0 0.0
    %2673 = vmatpush1.msra.mxu0 0.0
    %2674 = vmatprep.subr.mxu0 0.0
    %2675 = vmatpush1.msra.mxu0 0.0
    %2676 = vmatprep.subr.mxu0 0.0
    %2677 = vmatpush1.msra.mxu0 0.0
    %2678 = vmatprep.subr.mxu0 0.0
    %2679 = vmatpush1.msra.mxu0 0.0
    %2680 = vmatprep.subr.mxu0 0.0
    %2681 = vmatpush1.msra.mxu0 0.0
    %2682 = vmatprep.subr.mxu0 0.0
    %2683 = vmatpush1.msra.mxu0 0.0
    %2684 = vmatprep.subr.mxu0 0.0
    %2685 = vmatpush1.msra.mxu0 0.0
    %2686 = vmatprep.subr.mxu0 0.0
    %2687 = vmatpush1.msra.mxu0 0.0
    %2688 = vmatprep.subr.mxu0 0.0
    %2689 = vmatpush1.msra.mxu0 0.0
    %2690 = vmatprep.subr.mxu0 0.0
    %2691 = vmatpush1.msra.mxu0 0.0
    %2692 = vmatprep.subr.mxu0 0.0
    %2693 = vmatpush1.msra.mxu0 0.0
    %2694 = vmatprep.subr.mxu0 0.0
    %2695 = vmatpush1.msra.mxu0 0.0
    %2696 = vmatprep.subr.mxu0 0.0
    %2697 = vmatpush1.msra.mxu0 0.0
    %2698 = vmatprep.subr.mxu0 0.0
    %2699 = vmatpush1.msra.mxu0 0.0
    %2700 = vmatprep.subr.mxu0 0.0
    %2701 = vmatpush1.msra.mxu0 0.0
    %2702 = vmatprep.subr.mxu0 0.0
    %2703 = vmatpush1.msra.mxu0 0.0
    %2704 = vmatprep.subr.mxu0 0.0
    %2705 = vmatpush1.msra.mxu0 0.0
    %2706 = vmatprep.subr.mxu0 0.0
    %2707 = vmatpush1.msra.mxu0 0.0
    %2708 = vmatprep.subr.mxu0 0.0
    %2709 = vmatpush1.msra.mxu0 0.0
    %2710 = vmatprep.subr.mxu0 0.0
    %2711 = vmatpush1.msra.mxu0 0.0
    %2712 = vmatprep.subr.mxu0 0.0
    %2713 = vmatpush1.msra.mxu0 0.0
    %2714 = vmatprep.subr.mxu0 0.0
    %2715 = vmatpush1.msra.mxu0 0.0
    %2716 = vmatprep.subr.mxu0 0.0
    %2717 = vmatpush1.msra.mxu0 0.0
    %2718 = vmatprep.mubr.f32.mxu0 0.0
    %2719 = vmatmul.mubr.f32.gmra.mrb[0].mxu0 %v2643
    %v2720 = vpop.f32.mrb[0].mxu0
    %v2721 = vadd.f32 %v2639, %v2720
    %v2722 = vpop.f32.mrb[0].mxu0
    %2723 = vmatprep.mubr.f32.mxu0 0.0
    %2724 = vmatmul.mubr.f32.gmra.mrb[0].mxu0 %v2646
    %v2725 = vpop.f32.mrb[0].mxu0
    %v2726 = vadd.f32 %v2639, %v2725
    %v2727 = vpop.f32.mrb[0].mxu0
    %2728 = vmatprep.mubr.f32.mxu0 0.0
    %2729 = vmatmul.mubr.f32.gmra.mrb[0].mxu0 %v2649
    %v2730 = vpop.f32.mrb[0].mxu0
    %v2731 = vadd.f32 %v2639, %v2730
    %v2732 = vpop.f32.mrb[0].mxu0
    %2733 = vmatprep.mubr.f32.mxu0 0.0
    %2734 = vmatmul.mubr.f32.gmra.mrb[0].mxu0 %v2652
    %v2735 = vpop.f32.mrb[0].mxu0
    %v2736 = vadd.f32 %v2639, %v2735
    %v2737 = vpop.f32.mrb[0].mxu0
    %2738 = vdwg.mxu0
    %v2739 = vmax.f32 %v2721, 0.0
    %v2740 = vmax.f32 %v2726, 0.0
    %v2741 = vmax.f32 %v2731, 0.0
    %v2742 = vmax.f32 %v2736, 0.0
    %v2743 = vld [vmem:[%s37] sm:$0xff]
    %v2744 = vld [vmem:[%s37 + $0x8] sm:$0xff]
    %v2745 = vld [vmem:[%s37 + $0x10] sm:$0xff]
    %v2746 = vld [vmem:[%s37 + $0x18] sm:$0xff]
    %v2747 = vld [vmem:[%s39] sm:$0x1]
    %v2749 = vlaneseq
    %v2750 = vshrl.u32 %v2749, 7
    %v2751 = vsub.s32 0, %v2750
    %v2752 = vrot.slane %v2747, %v2751
    %v2755 = vrot.slane %v2621, 6
    %v2756 = vsel %vm391, %v2755, 0
    %2758 = vmatprep.subr.mxu0 0.0
    %2759 = vmatpush1.msra.mxu0 %v2743
    %2760 = vmatprep.subr.mxu0 0.0
    %2761 = vmatpush1.msra.mxu0 %v2744
    %2762 = vmatprep.subr.mxu0 0.0
    %2763 = vmatpush1.msra.mxu0 %v2745
    %2764 = vmatprep.subr.mxu0 0.0
    %2765 = vmatpush1.msra.mxu0 %v2746
    %2766 = vmatprep.subr.mxu0 0.0
    %2767 = vmatpush1.msra.mxu0 0.0
    %2768 = vmatprep.subr.mxu0 0.0
    %2769 = vmatpush1.msra.mxu0 0.0
    %2770 = vmatprep.subr.mxu0 0.0
    %2771 = vmatpush1.msra.mxu0 0.0
    %2772 = vmatprep.subr.mxu0 0.0
    %2773 = vmatpush1.msra.mxu0 0.0
    %2774 = vmatprep.subr.mxu0 0.0
    %2775 = vmatpush1.msra.mxu0 0.0
    %2776 = vmatprep.subr.mxu0 0.0
    %2777 = vmatpush1.msra.mxu0 0.0
    %2778 = vmatprep.subr.mxu0 0.0
    %2779 = vmatpush1.msra.mxu0 0.0
    %2780 = vmatprep.subr.mxu0 0.0
    %2781 = vmatpush1.msra.mxu0 0.0
    %2782 = vmatprep.subr.mxu0 0.0
    %2783 = vmatpush1.msra.mxu0 0.0
    %2784 = vmatprep.subr.mxu0 0.0
    %2785 = vmatpush1.msra.mxu0 0.0
    %2786 = vmatprep.subr.mxu0 0.0
    %2787 = vmatpush1.msra.mxu0 0.0
    %2788 = vmatprep.subr.mxu0 0.0
    %2789 = vmatpush1.msra.mxu0 0.0
    %2790 = vmatprep.subr.mxu0 0.0
    %2791 = vmatpush1.msra.mxu0 0.0
    %2792 = vmatprep.subr.mxu0 0.0
    %2793 = vmatpush1.msra.mxu0 0.0
    %2794 = vmatprep.subr.mxu0 0.0
    %2795 = vmatpush1.msra.mxu0 0.0
    %2796 = vmatprep.subr.mxu0 0.0
    %2797 = vmatpush1.msra.mxu0 0.0
    %2798 = vmatprep.subr.mxu0 0.0
    %2799 = vmatpush1.msra.mxu0 0.0
    %2800 = vmatprep.subr.mxu0 0.0
    %2801 = vmatpush1.msra.mxu0 0.0
    %2802 = vmatprep.subr.mxu0 0.0
    %2803 = vmatpush1.msra.mxu0 0.0
    %2804 = vmatprep.subr.mxu0 0.0
    %2805 = vmatpush1.msra.mxu0 0.0
    %2806 = vmatprep.subr.mxu0 0.0
    %2807 = vmatpush1.msra.mxu0 0.0
    %2808 = vmatprep.subr.mxu0 0.0
    %2809 = vmatpush1.msra.mxu0 0.0
    %2810 = vmatprep.subr.mxu0 0.0
    %2811 = vmatpush1.msra.mxu0 0.0
    %2812 = vmatprep.subr.mxu0 0.0
    %2813 = vmatpush1.msra.mxu0 0.0
    %2814 = vmatprep.subr.mxu0 0.0
    %2815 = vmatpush1.msra.mxu0 0.0
    %2816 = vmatprep.subr.mxu0 0.0
    %2817 = vmatpush1.msra.mxu0 0.0
    %2818 = vmatprep.subr.mxu0 0.0
    %2819 = vmatpush1.msra.mxu0 0.0
    %2820 = vmatprep.subr.mxu0 0.0
    %2821 = vmatpush1.msra.mxu0 0.0
    %2822 = vmatprep.mubr.f32.mxu0 0.0
    %2823 = vmatmul.mubr.f32.gmra.mrb[0].mxu0 %v2756
    %v2824 = vpop.f32.mrb[0].mxu0
    %v2825 = vadd.f32 %v2752, %v2824
    %v2826 = vpop.f32.mrb[0].mxu0
    %2827 = vdwg.mxu0
    %v2828 = vld [vmem:[%s35] sm:$0xff]
    %v2829 = vld [vmem:[%s35 + $0x8] sm:$0xff]
    %v2830 = vld [vmem:[%s35 + $0x10] sm:$0xff]
    %v2831 = vld [vmem:[%s35 + $0x18] sm:$0xff]
    %v2833 = vsel %vm391, %v2739, 0
    %v2836 = vsel %vm391, %v2740, 0
    %v2839 = vsel %vm391, %v2741, 0
    %v2842 = vsel %vm391, %v2742, 0
    %2844 = vmatprep.subr.mxu0 0.0
    %2845 = vmatpush1.msra.mxu0 %v2828
    %2846 = vmatprep.subr.mxu0 0.0
    %2847 = vmatpush1.msra.mxu0 %v2829
    %2848 = vmatprep.subr.mxu0 0.0
    %2849 = vmatpush1.msra.mxu0 %v2830
    %2850 = vmatprep.subr.mxu0 0.0
    %2851 = vmatpush1.msra.mxu0 %v2831
    %2852 = vmatprep.subr.mxu0 0.0
    %2853 = vmatpush1.msra.mxu0 0.0
    %2854 = vmatprep.subr.mxu0 0.0
    %2855 = vmatpush1.msra.mxu0 0.0
    %2856 = vmatprep.subr.mxu0 0.0
    %2857 = vmatpush1.msra.mxu0 0.0
    %2858 = vmatprep.subr.mxu0 0.0
    %2859 = vmatpush1.msra.mxu0 0.0
    %2860 = vmatprep.subr.mxu0 0.0
    %2861 = vmatpush1.msra.mxu0 0.0
    %2862 = vmatprep.subr.mxu0 0.0
    %2863 = vmatpush1.msra.mxu0 0.0
    %2864 = vmatprep.subr.mxu0 0.0
    %2865 = vmatpush1.msra.mxu0 0.0
    %2866 = vmatprep.subr.mxu0 0.0
    %2867 = vmatpush1.msra.mxu0 0.0
    %2868 = vmatprep.subr.mxu0 0.0
    %2869 = vmatpush1.msra.mxu0 0.0
    %2870 = vmatprep.subr.mxu0 0.0
    %2871 = vmatpush1.msra.mxu0 0.0
    %2872 = vmatprep.subr.mxu0 0.0
    %2873 = vmatpush1.msra.mxu0 0.0
    %2874 = vmatprep.subr.mxu0 0.0
    %2875 = vmatpush1.msra.mxu0 0.0
    %2876 = vmatprep.subr.mxu0 0.0
    %2877 = vmatpush1.msra.mxu0 0.0
    %2878 = vmatprep.subr.mxu0 0.0
    %2879 = vmatpush1.msra.mxu0 0.0
    %2880 = vmatprep.subr.mxu0 0.0
    %2881 = vmatpush1.msra.mxu0 0.0
    %2882 = vmatprep.subr.mxu0 0.0
    %2883 = vmatpush1.msra.mxu0 0.0
    %2884 = vmatprep.subr.mxu0 0.0
    %2885 = vmatpush1.msra.mxu0 0.0
    %2886 = vmatprep.subr.mxu0 0.0
    %2887 = vmatpush1.msra.mxu0 0.0
    %2888 = vmatprep.subr.mxu0 0.0
    %2889 = vmatpush1.msra.mxu0 0.0
    %2890 = vmatprep.subr.mxu0 0.0
    %2891 = vmatpush1.msra.mxu0 0.0
    %2892 = vmatprep.subr.mxu0 0.0
    %2893 = vmatpush1.msra.mxu0 0.0
    %2894 = vmatprep.subr.mxu0 0.0
    %2895 = vmatpush1.msra.mxu0 0.0
    %2896 = vmatprep.subr.mxu0 0.0
    %2897 = vmatpush1.msra.mxu0 0.0
    %2898 = vmatprep.subr.mxu0 0.0
    %2899 = vmatpush1.msra.mxu0 0.0
    %2900 = vmatprep.subr.mxu0 0.0
    %2901 = vmatpush1.msra.mxu0 0.0
    %2902 = vmatprep.subr.mxu0 0.0
    %2903 = vmatpush1.msra.mxu0 0.0
    %2904 = vmatprep.subr.mxu0 0.0
    %2905 = vmatpush1.msra.mxu0 0.0
    %2906 = vmatprep.subr.mxu0 0.0
    %2907 = vmatpush1.msra.mxu0 0.0
    %2908 = vmatprep.mubr.f32.mxu0 0.0
    %2909 = vmatmul.mubr.f32.gmra.mrb[0].mxu0 %v2833
    %v2910 = vpop.f32.mrb[0].mxu0
    %v2911 = vadd.f32 0.0, %v2910
    %v2912 = vpop.f32.mrb[0].mxu0
    %2913 = vmatprep.mubr.f32.mxu0 0.0
    %2914 = vmatmul.mubr.f32.gmra.mrb[0].mxu0 %v2836
    %v2915 = vpop.f32.mrb[0].mxu0
    %v2916 = vadd.f32 0.0, %v2915
    %v2917 = vpop.f32.mrb[0].mxu0
    %2918 = vmatprep.mubr.f32.mxu0 0.0
    %2919 = vmatmul.mubr.f32.gmra.mrb[0].mxu0 %v2839
    %v2920 = vpop.f32.mrb[0].mxu0
    %v2921 = vadd.f32 0.0, %v2920
    %v2922 = vpop.f32.mrb[0].mxu0
    %2923 = vmatprep.mubr.f32.mxu0 0.0
    %2924 = vmatmul.mubr.f32.gmra.mrb[0].mxu0 %v2842
    %v2925 = vpop.f32.mrb[0].mxu0
    %v2926 = vadd.f32 0.0, %v2925
    %v2927 = vpop.f32.mrb[0].mxu0
    %2928 = vdwg.mxu0
    %v2931 = vunpack.c.l.s4 1966171168
    %v2932 = vunpack.c.0.s8 %v2931
    %v2933 = vlaneseq
    %v2934 = vshrl.u32 %v2933, 7
    %v2935 = vsub.s32 %v2932, %v2934
    %v2936 = vrot.slane %v2825, %v2935
    %v2937 = vcombine.high %v2936, %v2936
    %v2939 = vunpack.c.l.s4 1966171168
    %v2940 = vunpack.c.0.s8 %v2939
    %v2941 = vlaneseq
    %v2942 = vshrl.u32 %v2941, 7
    %v2943 = vsub.s32 %v2940, %v2942
    %v2944 = vrot.slane %v2936, %v2943
    %v2946 = vunpack.c.l.s4 1966171168
    %v2947 = vunpack.c.0.s8 %v2946
    %v2948 = vlaneseq
    %v2949 = vshrl.u32 %v2948, 7
    %v2950 = vsub.s32 %v2947, %v2949
    %v2951 = vrot.slane %v2937, %v2950
    %v2952 = vlaneseq
    %v2953 = vshrl.u32 %v2952, 7
    %v2954 = vsub.s32 0, %v2953
    %v2955 = vrot.slane %v2944, %v2954
    %v2956 = vlaneseq
    %v2957 = vshrl.u32 %v2956, 7
    %v2958 = vsub.s32 0, %v2957
    %v2959 = vrot.slane %v2951, %v2958
    %v2962 = vadd.f32 %v2911, %v2955
    %v2963 = vadd.f32 %v2916, %v2955
    %v2964 = vadd.f32 %v2921, %v2959
    %v2965 = vadd.f32 %v2926, %v2959
    %v2966 = vtanh.pop %v2962
    %v2967 = vtanh.pop %v2963
    %v2968 = vtanh.pop %v2964
    %v2969 = vtanh.pop %v2965
    %v2970 = vld [vmem:[%s41] sm:$0xff]
    %v2971 = vld [vmem:[%s41 + $0x8] sm:$0xff]
    %v2972 = vld [vmem:[%s41 + $0x10] sm:$0xff]
    %v2973 = vld [vmem:[%s41 + $0x18] sm:$0xff]
    %2974 = vmatprep.subr.mxu0 0.0
    %2975 = vmatpush1.msra.mxu0 %v2970
    %2976 = vmatprep.subr.mxu0 0.0
    %2977 = vmatpush1.msra.mxu0 %v2971
    %2978 = vmatprep.subr.mxu0 0.0
    %2979 = vmatpush1.msra.mxu0 %v2972
    %2980 = vmatprep.subr.mxu0 0.0
    %2981 = vmatpush1.msra.mxu0 %v2973
    %2982 = vmatprep.subr.mxu0 0.0
    %2983 = vmatpush1.msra.mxu0 0.0
    %2984 = vmatprep.subr.mxu0 0.0
    %2985 = vmatpush1.msra.mxu0 0.0
    %2986 = vmatprep.subr.mxu0 0.0
    %2987 = vmatpush1.msra.mxu0 0.0
    %2988 = vmatprep.subr.mxu0 0.0
    %2989 = vmatpush1.msra.mxu0 0.0
    %2990 = vmatprep.subr.mxu0 0.0
    %2991 = vmatpush1.msra.mxu0 0.0
    %2992 = vmatprep.subr.mxu0 0.0
    %2993 = vmatpush1.msra.mxu0 0.0
    %2994 = vmatprep.subr.mxu0 0.0
    %2995 = vmatpush1.msra.mxu0 0.0
    %2996 = vmatprep.subr.mxu0 0.0
    %2997 = vmatpush1.msra.mxu0 0.0
    %2998 = vmatprep.subr.mxu0 0.0
    %2999 = vmatpush1.msra.mxu0 0.0
    %3000 = vmatprep.subr.mxu0 0.0
    %3001 = vmatpush1.msra.mxu0 0.0
    %3002 = vmatprep.subr.mxu0 0.0
    %3003 = vmatpush1.msra.mxu0 0.0
    %3004 = vmatprep.subr.mxu0 0.0
    %3005 = vmatpush1.msra.mxu0 0.0
    %3006 = vmatprep.subr.mxu0 0.0
    %3007 = vmatpush1.msra.mxu0 0.0
    %3008 = vmatprep.subr.mxu0 0.0
    %3009 = vmatpush1.msra.mxu0 0.0
    %3010 = vmatprep.subr.mxu0 0.0
    %3011 = vmatpush1.msra.mxu0 0.0
    %3012 = vmatprep.subr.mxu0 0.0
    %3013 = vmatpush1.msra.mxu0 0.0
    %3014 = vmatprep.subr.mxu0 0.0
    %3015 = vmatpush1.msra.mxu0 0.0
    %3016 = vmatprep.subr.mxu0 0.0
    %3017 = vmatpush1.msra.mxu0 0.0
    %3018 = vmatprep.subr.mxu0 0.0
    %3019 = vmatpush1.msra.mxu0 0.0
    %3020 = vmatprep.subr.mxu0 0.0
    %3021 = vmatpush1.msra.mxu0 0.0
    %3022 = vmatprep.subr.mxu0 0.0
    %3023 = vmatpush1.msra.mxu0 0.0
    %3024 = vmatprep.subr.mxu0 0.0
    %3025 = vmatpush1.msra.mxu0 0.0
    %3026 = vmatprep.subr.mxu0 0.0
    %3027 = vmatpush1.msra.mxu0 0.0
    %3028 = vmatprep.subr.mxu0 0.0
    %3029 = vmatpush1.msra.mxu0 0.0
    %3030 = vmatprep.subr.mxu0 0.0
    %3031 = vmatpush1.msra.mxu0 0.0
    %3032 = vmatprep.subr.mxu0 0.0
    %3033 = vmatpush1.msra.mxu0 0.0
    %3034 = vmatprep.subr.mxu0 0.0
    %3035 = vmatpush1.msra.mxu0 0.0
    %3036 = vmatprep.subr.mxu0 0.0
    %3037 = vmatpush1.msra.mxu0 0.0
    %3038 = vmatprep.mubr.f32.mxu0 0.0
    %3039 = vmatmul.mubr.f32.gmra.mrb[0].mxu0 %v2756
    %v3040 = vpop.f32.mrb[0].mxu0
    %v3041 = vadd.f32 0.0, %v3040
    %v3042 = vpop.f32.mrb[0].mxu0
    %3043 = vdwg.mxu0
    %v3046 = vunpack.c.l.s4 1966171168
    %v3047 = vunpack.c.0.s8 %v3046
    %v3048 = vlaneseq
    %v3049 = vshrl.u32 %v3048, 7
    %v3050 = vsub.s32 %v3047, %v3049
    %v3051 = vrot.slane %v3041, %v3050
    %v3052 = vcombine.high %v3051, %v3051
    %v3054 = vunpack.c.l.s4 1966171168
    %v3055 = vunpack.c.0.s8 %v3054
    %v3056 = vlaneseq
    %v3057 = vshrl.u32 %v3056, 7
    %v3058 = vsub.s32 %v3055, %v3057
    %v3059 = vrot.slane %v3051, %v3058
    %v3061 = vunpack.c.l.s4 1966171168
    %v3062 = vunpack.c.0.s8 %v3061
    %v3063 = vlaneseq
    %v3064 = vshrl.u32 %v3063, 7
    %v3065 = vsub.s32 %v3062, %v3064
    %v3066 = vrot.slane %v3052, %v3065
    %v3067 = vsel %vm391, %v3059, 0
    %3069 = vmatprep.subr.mxu0 0.0
    %3070 = vmatpush1.xpose.msra.mxu0 %v2833
    %3071 = vmatprep.subr.mxu0 0.0
    %3072 = vmatpush1.xpose.msra.mxu0 %v2836
    %3073 = vmatprep.subr.mxu0 0.0
    %3074 = vmatpush1.xpose.msra.mxu0 0.0
    %3075 = vmatprep.subr.mxu0 0.0
    %3076 = vmatpush1.xpose.msra.mxu0 0.0
    %3077 = vmatprep.subr.mxu0 0.0
    %3078 = vmatpush1.xpose.msra.mxu0 0.0
    %3079 = vmatprep.subr.mxu0 0.0
    %3080 = vmatpush1.xpose.msra.mxu0 0.0
    %3081 = vmatprep.subr.mxu0 0.0
    %3082 = vmatpush1.xpose.msra.mxu0 0.0
    %3083 = vmatprep.subr.mxu0 0.0
    %3084 = vmatpush1.xpose.msra.mxu0 0.0
    %3085 = vmatprep.subr.mxu0 0.0
    %3086 = vmatpush1.xpose.msra.mxu0 0.0
    %3087 = vmatprep.subr.mxu0 0.0
    %3088 = vmatpush1.xpose.msra.mxu0 0.0
    %3089 = vmatprep.subr.mxu0 0.0
    %3090 = vmatpush1.xpose.msra.mxu0 0.0
    %3091 = vmatprep.subr.mxu0 0.0
    %3092 = vmatpush1.xpose.msra.mxu0 0.0
    %3093 = vmatprep.subr.mxu0 0.0
    %3094 = vmatpush1.xpose.msra.mxu0 0.0
    %3095 = vmatprep.subr.mxu0 0.0
    %3096 = vmatpush1.xpose.msra.mxu0 0.0
    %3097 = vmatprep.subr.mxu0 0.0
    %3098 = vmatpush1.xpose.msra.mxu0 0.0
    %3099 = vmatprep.subr.mxu0 0.0
    %3100 = vmatpush1.xpose.msra.mxu0 0.0
    %3101 = vmatprep.subr.mxu0 0.0
    %3102 = vmatpush1.xpose.msra.mxu0 0.0
    %3103 = vmatprep.subr.mxu0 0.0
    %3104 = vmatpush1.xpose.msra.mxu0 0.0
    %3105 = vmatprep.subr.mxu0 0.0
    %3106 = vmatpush1.xpose.msra.mxu0 0.0
    %3107 = vmatprep.subr.mxu0 0.0
    %3108 = vmatpush1.xpose.msra.mxu0 0.0
    %3109 = vmatprep.subr.mxu0 0.0
    %3110 = vmatpush1.xpose.msra.mxu0 0.0
    %3111 = vmatprep.subr.mxu0 0.0
    %3112 = vmatpush1.xpose.msra.mxu0 0.0
    %3113 = vmatprep.subr.mxu0 0.0
    %3114 = vmatpush1.xpose.msra.mxu0 0.0
    %3115 = vmatprep.subr.mxu0 0.0
    %3116 = vmatpush1.xpose.msra.mxu0 0.0
    %3117 = vmatprep.subr.mxu0 0.0
    %3118 = vmatpush1.xpose.msra.mxu0 0.0
    %3119 = vmatprep.subr.mxu0 0.0
    %3120 = vmatpush1.xpose.msra.mxu0 0.0
    %3121 = vmatprep.subr.mxu0 0.0
    %3122 = vmatpush1.xpose.msra.mxu0 0.0
    %3123 = vmatprep.subr.mxu0 0.0
    %3124 = vmatpush1.xpose.msra.mxu0 0.0
    %3125 = vmatprep.subr.mxu0 0.0
    %3126 = vmatpush1.xpose.msra.mxu0 0.0
    %3127 = vmatprep.subr.mxu0 0.0
    %3128 = vmatpush1.xpose.msra.mxu0 0.0
    %3129 = vmatprep.subr.mxu0 0.0
    %3130 = vmatpush1.xpose.msra.mxu0 0.0
    %3131 = vmatprep.subr.mxu0 0.0
    %3132 = vmatpush1.xpose.msra.mxu0 0.0
    %3133 = vmatprep.mubr.f32.mxu0 0.0
    %3134 = vmatmul.mubr.f32.gmra.mrb[0].mxu0 %v3067
    %v3135 = vpop.f32.mrb[0].mxu0
    %v3136 = vadd.f32 0.0, %v3135
    %v3137 = vpop.f32.mrb[0].mxu0
    %3138 = vdwg.mxu0
    %v3139 = vsel %vm391, %v3066, 0
    %3141 = vmatprep.subr.mxu0 0.0
    %3142 = vmatpush1.xpose.msra.mxu0 %v2839
    %3143 = vmatprep.subr.mxu0 0.0
    %3144 = vmatpush1.xpose.msra.mxu0 %v2842
    %3145 = vmatprep.subr.mxu0 0.0
    %3146 = vmatpush1.xpose.msra.mxu0 0.0
    %3147 = vmatprep.subr.mxu0 0.0
    %3148 = vmatpush1.xpose.msra.mxu0 0.0
    %3149 = vmatprep.subr.mxu0 0.0
    %3150 = vmatpush1.xpose.msra.mxu0 0.0
    %3151 = vmatprep.subr.mxu0 0.0
    %3152 = vmatpush1.xpose.msra.mxu0 0.0
    %3153 = vmatprep.subr.mxu0 0.0
    %3154 = vmatpush1.xpose.msra.mxu0 0.0
    %3155 = vmatprep.subr.mxu0 0.0
    %3156 = vmatpush1.xpose.msra.mxu0 0.0
    %3157 = vmatprep.subr.mxu0 0.0
    %3158 = vmatpush1.xpose.msra.mxu0 0.0
    %3159 = vmatprep.subr.mxu0 0.0
    %3160 = vmatpush1.xpose.msra.mxu0 0.0
    %3161 = vmatprep.subr.mxu0 0.0
    %3162 = vmatpush1.xpose.msra.mxu0 0.0
    %3163 = vmatprep.subr.mxu0 0.0
    %3164 = vmatpush1.xpose.msra.mxu0 0.0
    %3165 = vmatprep.subr.mxu0 0.0
    %3166 = vmatpush1.xpose.msra.mxu0 0.0
    %3167 = vmatprep.subr.mxu0 0.0
    %3168 = vmatpush1.xpose.msra.mxu0 0.0
    %3169 = vmatprep.subr.mxu0 0.0
    %3170 = vmatpush1.xpose.msra.mxu0 0.0
    %3171 = vmatprep.subr.mxu0 0.0
    %3172 = vmatpush1.xpose.msra.mxu0 0.0
    %3173 = vmatprep.subr.mxu0 0.0
    %3174 = vmatpush1.xpose.msra.mxu0 0.0
    %3175 = vmatprep.subr.mxu0 0.0
    %3176 = vmatpush1.xpose.msra.mxu0 0.0
    %3177 = vmatprep.subr.mxu0 0.0
    %3178 = vmatpush1.xpose.msra.mxu0 0.0
    %3179 = vmatprep.subr.mxu0 0.0
    %3180 = vmatpush1.xpose.msra.mxu0 0.0
    %3181 = vmatprep.subr.mxu0 0.0
    %3182 = vmatpush1.xpose.msra.mxu0 0.0
    %3183 = vmatprep.subr.mxu0 0.0
    %3184 = vmatpush1.xpose.msra.mxu0 0.0
    %3185 = vmatprep.subr.mxu0 0.0
    %3186 = vmatpush1.xpose.msra.mxu0 0.0
    %3187 = vmatprep.subr.mxu0 0.0
    %3188 = vmatpush1.xpose.msra.mxu0 0.0
    %3189 = vmatprep.subr.mxu0 0.0
    %3190 = vmatpush1.xpose.msra.mxu0 0.0
    %3191 = vmatprep.subr.mxu0 0.0
    %3192 = vmatpush1.xpose.msra.mxu0 0.0
    %3193 = vmatprep.subr.mxu0 0.0
    %3194 = vmatpush1.xpose.msra.mxu0 0.0
    %3195 = vmatprep.subr.mxu0 0.0
    %3196 = vmatpush1.xpose.msra.mxu0 0.0
    %3197 = vmatprep.subr.mxu0 0.0
    %3198 = vmatpush1.xpose.msra.mxu0 0.0
    %3199 = vmatprep.subr.mxu0 0.0
    %3200 = vmatpush1.xpose.msra.mxu0 0.0
    %3201 = vmatprep.subr.mxu0 0.0
    %3202 = vmatpush1.xpose.msra.mxu0 0.0
    %3203 = vmatprep.subr.mxu0 0.0
    %3204 = vmatpush1.xpose.msra.mxu0 0.0
    %3205 = vmatprep.mubr.f32.mxu0 0.0
    %3206 = vmatmul.mubr.f32.gmra.mrb[0].mxu0 %v3139
    %v3207 = vpop.f32.mrb[0].mxu0
    %v3208 = vadd.f32 0.0, %v3207
    %v3209 = vpop.f32.mrb[0].mxu0
    %3210 = vdwg.mxu0
    %vm3211 = vcmask 122880
    %v3212 = vsel %vm3211, %v3136, -inf
    %3213 = vmax.xlane.f32.xlu0 %v3212
    %v3214 = vpop.xlane.xlu0 %3213
    %v3215 = vsel %vm3211, %v3208, -inf
    %3216 = vmax.xlane.f32.xlu0 %v3215
    %v3217 = vpop.xlane.xlu0 %3216
    %v3218 = vsub.f32 %v3136, %v3214
    %v3219 = vsub.f32 %v3208, %v3217
    %v3220 = vmul.f32 %v3218, 1.442695
    %v3221 = vpow.pop %v3220
    %v3222 = vmul.f32 %v3219, 1.442695
    %v3223 = vpow.pop %v3222
    %v3224 = vsel %vm3211, %v3221, 0.0
    %3225 = vadd.xlane.f32.xlu0 %v3224
    %v3226 = vpop.xlane.xlu0 %3225
    %v3227 = vsel %vm3211, %v3223, 0.0
    %3228 = vadd.xlane.f32.xlu0 %v3227
    %v3229 = vpop.xlane.xlu0 %3228
    %v3230 = vrcp.pop %v3226
    %v3231 = vrcp.pop %v3229
    %v3232 = vmul.f32 %v3221, %v3230
    %v3233 = vmul.f32 %v3223, %v3231
    %vm3234 = vcmask 130048
    %v3236 = vsel %vm3234, %v3232, 0
    %3238 = vmatprep.subr.mxu0 0.0
    %3239 = vmatpush1.msra.mxu0 %v2739
    %3240 = vmatprep.subr.mxu0 0.0
    %3241 = vmatpush1.msra.mxu0 %v2740
    %3242 = vmatprep.subr.mxu0 0.0
    %3243 = vmatpush1.msra.mxu0 0.0
    %3244 = vmatprep.subr.mxu0 0.0
    %3245 = vmatpush1.msra.mxu0 0.0
    %3246 = vmatprep.subr.mxu0 0.0
    %3247 = vmatpush1.msra.mxu0 0.0
    %3248 = vmatprep.subr.mxu0 0.0
    %3249 = vmatpush1.msra.mxu0 0.0
    %3250 = vmatprep.subr.mxu0 0.0
    %3251 = vmatpush1.msra.mxu0 0.0
    %3252 = vmatprep.subr.mxu0 0.0
    %3253 = vmatpush1.msra.mxu0 0.0
    %3254 = vmatprep.subr.mxu0 0.0
    %3255 = vmatpush1.msra.mxu0 0.0
    %3256 = vmatprep.subr.mxu0 0.0
    %3257 = vmatpush1.msra.mxu0 0.0
    %3258 = vmatprep.subr.mxu0 0.0
    %3259 = vmatpush1.msra.mxu0 0.0
    %3260 = vmatprep.subr.mxu0 0.0
    %3261 = vmatpush1.msra.mxu0 0.0
    %3262 = vmatprep.subr.mxu0 0.0
    %3263 = vmatpush1.msra.mxu0 0.0
    %3264 = vmatprep.subr.mxu0 0.0
    %3265 = vmatpush1.msra.mxu0 0.0
    %3266 = vmatprep.subr.mxu0 0.0
    %3267 = vmatpush1.msra.mxu0 0.0
    %3268 = vmatprep.subr.mxu0 0.0
    %3269 = vmatpush1.msra.mxu0 0.0
    %3270 = vmatprep.subr.mxu0 0.0
    %3271 = vmatpush1.msra.mxu0 0.0
    %3272 = vmatprep.subr.mxu0 0.0
    %3273 = vmatpush1.msra.mxu0 0.0
    %3274 = vmatprep.subr.mxu0 0.0
    %3275 = vmatpush1.msra.mxu0 0.0
    %3276 = vmatprep.subr.mxu0 0.0
    %3277 = vmatpush1.msra.mxu0 0.0
    %3278 = vmatprep.subr.mxu0 0.0
    %3279 = vmatpush1.msra.mxu0 0.0
    %3280 = vmatprep.subr.mxu0 0.0
    %3281 = vmatpush1.msra.mxu0 0.0
    %3282 = vmatprep.subr.mxu0 0.0
    %3283 = vmatpush1.msra.mxu0 0.0
    %3284 = vmatprep.subr.mxu0 0.0
    %3285 = vmatpush1.msra.mxu0 0.0
    %3286 = vmatprep.subr.mxu0 0.0
    %3287 = vmatpush1.msra.mxu0 0.0
    %3288 = vmatprep.subr.mxu0 0.0
    %3289 = vmatpush1.msra.mxu0 0.0
    %3290 = vmatprep.subr.mxu0 0.0
    %3291 = vmatpush1.msra.mxu0 0.0
    %3292 = vmatprep.subr.mxu0 0.0
    %3293 = vmatpush1.msra.mxu0 0.0
    %3294 = vmatprep.subr.mxu0 0.0
    %3295 = vmatpush1.msra.mxu0 0.0
    %3296 = vmatprep.subr.mxu0 0.0
    %3297 = vmatpush1.msra.mxu0 0.0
    %3298 = vmatprep.subr.mxu0 0.0
    %3299 = vmatpush1.msra.mxu0 0.0
    %3300 = vmatprep.subr.mxu0 0.0
    %3301 = vmatpush1.msra.mxu0 0.0
    %3302 = vmatprep.mubr.f32.mxu0 0.0
    %3303 = vmatmul.mubr.f32.gmra.mrb[0].mxu0 %v3236
    %v3304 = vpop.f32.mrb[0].mxu0
    %v3305 = vadd.f32 0.0, %v3304
    %v3306 = vpop.f32.mrb[0].mxu0
    %3307 = vdwg.mxu0
    %v3309 = vsel %vm3234, %v3233, 0
    %3311 = vmatprep.subr.mxu0 0.0
    %3312 = vmatpush1.msra.mxu0 %v2741
    %3313 = vmatprep.subr.mxu0 0.0
    %3314 = vmatpush1.msra.mxu0 %v2742
    %3315 = vmatprep.subr.mxu0 0.0
    %3316 = vmatpush1.msra.mxu0 0.0
    %3317 = vmatprep.subr.mxu0 0.0
    %3318 = vmatpush1.msra.mxu0 0.0
    %3319 = vmatprep.subr.mxu0 0.0
    %3320 = vmatpush1.msra.mxu0 0.0
    %3321 = vmatprep.subr.mxu0 0.0
    %3322 = vmatpush1.msra.mxu0 0.0
    %3323 = vmatprep.subr.mxu0 0.0
    %3324 = vmatpush1.msra.mxu0 0.0
    %3325 = vmatprep.subr.mxu0 0.0
    %3326 = vmatpush1.msra.mxu0 0.0
    %3327 = vmatprep.subr.mxu0 0.0
    %3328 = vmatpush1.msra.mxu0 0.0
    %3329 = vmatprep.subr.mxu0 0.0
    %3330 = vmatpush1.msra.mxu0 0.0
    %3331 = vmatprep.subr.mxu0 0.0
    %3332 = vmatpush1.msra.mxu0 0.0
    %3333 = vmatprep.subr.mxu0 0.0
    %3334 = vmatpush1.msra.mxu0 0.0
    %3335 = vmatprep.subr.mxu0 0.0
    %3336 = vmatpush1.msra.mxu0 0.0
    %3337 = vmatprep.subr.mxu0 0.0
    %3338 = vmatpush1.msra.mxu0 0.0
    %3339 = vmatprep.subr.mxu0 0.0
    %3340 = vmatpush1.msra.mxu0 0.0
    %3341 = vmatprep.subr.mxu0 0.0
    %3342 = vmatpush1.msra.mxu0 0.0
    %3343 = vmatprep.subr.mxu0 0.0
    %3344 = vmatpush1.msra.mxu0 0.0
    %3345 = vmatprep.subr.mxu0 0.0
    %3346 = vmatpush1.msra.mxu0 0.0
    %3347 = vmatprep.subr.mxu0 0.0
    %3348 = vmatpush1.msra.mxu0 0.0
    %3349 = vmatprep.subr.mxu0 0.0
    %3350 = vmatpush1.msra.mxu0 0.0
    %3351 = vmatprep.subr.mxu0 0.0
    %3352 = vmatpush1.msra.mxu0 0.0
    %3353 = vmatprep.subr.mxu0 0.0
    %3354 = vmatpush1.msra.mxu0 0.0
    %3355 = vmatprep.subr.mxu0 0.0
    %3356 = vmatpush1.msra.mxu0 0.0
    %3357 = vmatprep.subr.mxu0 0.0
    %3358 = vmatpush1.msra.mxu0 0.0
    %3359 = vmatprep.subr.mxu0 0.0
    %3360 = vmatpush1.msra.mxu0 0.0
    %3361 = vmatprep.subr.mxu0 0.0
    %3362 = vmatpush1.msra.mxu0 0.0
    %3363 = vmatprep.subr.mxu0 0.0
    %3364 = vmatpush1.msra.mxu0 0.0
    %3365 = vmatprep.subr.mxu0 0.0
    %3366 = vmatpush1.msra.mxu0 0.0
    %3367 = vmatprep.subr.mxu0 0.0
    %3368 = vmatpush1.msra.mxu0 0.0
    %3369 = vmatprep.subr.mxu0 0.0
    %3370 = vmatpush1.msra.mxu0 0.0
    %3371 = vmatprep.subr.mxu0 0.0
    %3372 = vmatpush1.msra.mxu0 0.0
    %3373 = vmatprep.subr.mxu0 0.0
    %3374 = vmatpush1.msra.mxu0 0.0
    %3375 = vmatprep.mubr.f32.mxu0 0.0
    %3376 = vmatmul.mubr.f32.gmra.mrb[0].mxu0 %v3309
    %v3377 = vpop.f32.mrb[0].mxu0
    %v3378 = vadd.f32 0.0, %v3377
    %v3379 = vpop.f32.mrb[0].mxu0
    %3380 = vdwg.mxu0
    %v3381 = vld [vmem:[#allocation12] sm:$0xff]
    %v3382 = vld [vmem:[#allocation12 + $0x8] sm:$0xff]
    %v3383 = vld [vmem:[#allocation12 + $0x10] sm:$0xff]
    %v3384 = vld [vmem:[#allocation12 + $0x18] sm:$0xff]
    %v3385 = vld [vmem:[#allocation13] sm:$0xff]
    %v3386 = vld [vmem:[#allocation13 + $0x8] sm:$0xff]
    %v3387 = vld [vmem:[#allocation13 + $0x10] sm:$0xff]
    %v3388 = vld [vmem:[#allocation13 + $0x18] sm:$0xff]
    %3389 = vmatprep.subr.mxu0 0.0
    %3390 = vmatpush1.msra.mxu0 %v3385
    %3391 = vmatprep.subr.mxu0 0.0
    %3392 = vmatpush1.msra.mxu0 %v3386
    %3393 = vmatprep.subr.mxu0 0.0
    %3394 = vmatpush1.msra.mxu0 %v3387
    %3395 = vmatprep.subr.mxu0 0.0
    %3396 = vmatpush1.msra.mxu0 %v3388
    %3397 = vmatprep.subr.mxu0 0.0
    %3398 = vmatpush1.msra.mxu0 0.0
    %3399 = vmatprep.subr.mxu0 0.0
    %3400 = vmatpush1.msra.mxu0 0.0
    %3401 = vmatprep.subr.mxu0 0.0
    %3402 = vmatpush1.msra.mxu0 0.0
    %3403 = vmatprep.subr.mxu0 0.0
    %3404 = vmatpush1.msra.mxu0 0.0
    %3405 = vmatprep.subr.mxu0 0.0
    %3406 = vmatpush1.msra.mxu0 0.0
    %3407 = vmatprep.subr.mxu0 0.0
    %3408 = vmatpush1.msra.mxu0 0.0
    %3409 = vmatprep.subr.mxu0 0.0
    %3410 = vmatpush1.msra.mxu0 0.0
    %3411 = vmatprep.subr.mxu0 0.0
    %3412 = vmatpush1.msra.mxu0 0.0
    %3413 = vmatprep.subr.mxu0 0.0
    %3414 = vmatpush1.msra.mxu0 0.0
    %3415 = vmatprep.subr.mxu0 0.0
    %3416 = vmatpush1.msra.mxu0 0.0
    %3417 = vmatprep.subr.mxu0 0.0
    %3418 = vmatpush1.msra.mxu0 0.0
    %3419 = vmatprep.subr.mxu0 0.0
    %3420 = vmatpush1.msra.mxu0 0.0
    %3421 = vmatprep.subr.mxu0 0.0
    %3422 = vmatpush1.msra.mxu0 0.0
    %3423 = vmatprep.subr.mxu0 0.0
    %3424 = vmatpush1.msra.mxu0 0.0
    %3425 = vmatprep.subr.mxu0 0.0
    %3426 = vmatpush1.msra.mxu0 0.0
    %3427 = vmatprep.subr.mxu0 0.0
    %3428 = vmatpush1.msra.mxu0 0.0
    %3429 = vmatprep.subr.mxu0 0.0
    %3430 = vmatpush1.msra.mxu0 0.0
    %3431 = vmatprep.subr.mxu0 0.0
    %3432 = vmatpush1.msra.mxu0 0.0
    %3433 = vmatprep.subr.mxu0 0.0
    %3434 = vmatpush1.msra.mxu0 0.0
    %3435 = vmatprep.subr.mxu0 0.0
    %3436 = vmatpush1.msra.mxu0 0.0
    %3437 = vmatprep.subr.mxu0 0.0
    %3438 = vmatpush1.msra.mxu0 0.0
    %3439 = vmatprep.subr.mxu0 0.0
    %3440 = vmatpush1.msra.mxu0 0.0
    %3441 = vmatprep.subr.mxu0 0.0
    %3442 = vmatpush1.msra.mxu0 0.0
    %3443 = vmatprep.subr.mxu0 0.0
    %3444 = vmatpush1.msra.mxu0 0.0
    %3445 = vmatprep.subr.mxu0 0.0
    %3446 = vmatpush1.msra.mxu0 0.0
    %3447 = vmatprep.subr.mxu0 0.0
    %3448 = vmatpush1.msra.mxu0 0.0
    %3449 = vmatprep.subr.mxu0 0.0
    %3450 = vmatpush1.msra.mxu0 0.0
    %3451 = vmatprep.subr.mxu0 0.0
    %3452 = vmatpush1.msra.mxu0 0.0
    %3453 = vmatprep.mubr.f32.mxu0 0.0
    %3454 = vmatmul.mubr.f32.gmra.mrb[0].mxu0 %v2756
    %v3455 = vpop.f32.mrb[0].mxu0
    %v3456 = vadd.f32 0.0, %v3455
    %v3457 = vpop.f32.mrb[0].mxu0
    %3458 = vdwg.mxu0
    %v3461 = vunpack.c.l.s4 1966171168
    %v3462 = vunpack.c.0.s8 %v3461
    %v3463 = vlaneseq
    %v3464 = vshrl.u32 %v3463, 7
    %v3465 = vsub.s32 %v3462, %v3464
    %v3466 = vrot.slane %v3456, %v3465
    %v3467 = vcombine.high %v3466, %v3466
    %v3469 = vunpack.c.l.s4 1966171168
    %v3470 = vunpack.c.0.s8 %v3469
    %v3471 = vlaneseq
    %v3472 = vshrl.u32 %v3471, 7
    %v3473 = vsub.s32 %v3470, %v3472
    %v3474 = vrot.slane %v3466, %v3473
    %v3476 = vunpack.c.l.s4 1966171168
    %v3477 = vunpack.c.0.s8 %v3476
    %v3478 = vlaneseq
    %v3479 = vshrl.u32 %v3478, 7
    %v3480 = vsub.s32 %v3477, %v3479
    %v3481 = vrot.slane %v3467, %v3480
    %v3482 = vsel %vm391, %v3474, 0
    %v3485 = vsel %vm391, %v2966, 0
    %v3488 = vsel %vm391, %v2967, 0
    %3490 = vmatprep.subr.mxu0 0.0
    %3491 = vmatpush1.xpose.msra.mxu0 %v3485
    %3492 = vmatprep.subr.mxu0 0.0
    %3493 = vmatpush1.xpose.msra.mxu0 %v3488
    %3494 = vmatprep.subr.mxu0 0.0
    %3495 = vmatpush1.xpose.msra.mxu0 0.0
    %3496 = vmatprep.subr.mxu0 0.0
    %3497 = vmatpush1.xpose.msra.mxu0 0.0
    %3498 = vmatprep.subr.mxu0 0.0
    %3499 = vmatpush1.xpose.msra.mxu0 0.0
    %3500 = vmatprep.subr.mxu0 0.0
    %3501 = vmatpush1.xpose.msra.mxu0 0.0
    %3502 = vmatprep.subr.mxu0 0.0
    %3503 = vmatpush1.xpose.msra.mxu0 0.0
    %3504 = vmatprep.subr.mxu0 0.0
    %3505 = vmatpush1.xpose.msra.mxu0 0.0
    %3506 = vmatprep.subr.mxu0 0.0
    %3507 = vmatpush1.xpose.msra.mxu0 0.0
    %3508 = vmatprep.subr.mxu0 0.0
    %3509 = vmatpush1.xpose.msra.mxu0 0.0
    %3510 = vmatprep.subr.mxu0 0.0
    %3511 = vmatpush1.xpose.msra.mxu0 0.0
    %3512 = vmatprep.subr.mxu0 0.0
    %3513 = vmatpush1.xpose.msra.mxu0 0.0
    %3514 = vmatprep.subr.mxu0 0.0
    %3515 = vmatpush1.xpose.msra.mxu0 0.0
    %3516 = vmatprep.subr.mxu0 0.0
    %3517 = vmatpush1.xpose.msra.mxu0 0.0
    %3518 = vmatprep.subr.mxu0 0.0
    %3519 = vmatpush1.xpose.msra.mxu0 0.0
    %3520 = vmatprep.subr.mxu0 0.0
    %3521 = vmatpush1.xpose.msra.mxu0 0.0
    %3522 = vmatprep.subr.mxu0 0.0
    %3523 = vmatpush1.xpose.msra.mxu0 0.0
    %3524 = vmatprep.subr.mxu0 0.0
    %3525 = vmatpush1.xpose.msra.mxu0 0.0
    %3526 = vmatprep.subr.mxu0 0.0
    %3527 = vmatpush1.xpose.msra.mxu0 0.0
    %3528 = vmatprep.subr.mxu0 0.0
    %3529 = vmatpush1.xpose.msra.mxu0 0.0
    %3530 = vmatprep.subr.mxu0 0.0
    %3531 = vmatpush1.xpose.msra.mxu0 0.0
    %3532 = vmatprep.subr.mxu0 0.0
    %3533 = vmatpush1.xpose.msra.mxu0 0.0
    %3534 = vmatprep.subr.mxu0 0.0
    %3535 = vmatpush1.xpose.msra.mxu0 0.0
    %3536 = vmatprep.subr.mxu0 0.0
    %3537 = vmatpush1.xpose.msra.mxu0 0.0
    %3538 = vmatprep.subr.mxu0 0.0
    %3539 = vmatpush1.xpose.msra.mxu0 0.0
    %3540 = vmatprep.subr.mxu0 0.0
    %3541 = vmatpush1.xpose.msra.mxu0 0.0
    %3542 = vmatprep.subr.mxu0 0.0
    %3543 = vmatpush1.xpose.msra.mxu0 0.0
    %3544 = vmatprep.subr.mxu0 0.0
    %3545 = vmatpush1.xpose.msra.mxu0 0.0
    %3546 = vmatprep.subr.mxu0 0.0
    %3547 = vmatpush1.xpose.msra.mxu0 0.0
    %3548 = vmatprep.subr.mxu0 0.0
    %3549 = vmatpush1.xpose.msra.mxu0 0.0
    %3550 = vmatprep.subr.mxu0 0.0
    %3551 = vmatpush1.xpose.msra.mxu0 0.0
    %3552 = vmatprep.subr.mxu0 0.0
    %3553 = vmatpush1.xpose.msra.mxu0 0.0
    %3554 = vmatprep.mubr.f32.mxu0 0.0
    %3555 = vmatmul.mubr.f32.gmra.mrb[0].mxu0 %v3482
    %v3556 = vpop.f32.mrb[0].mxu0
    %v3557 = vadd.f32 0.0, %v3556
    %v3558 = vpop.f32.mrb[0].mxu0
    %3559 = vdwg.mxu0
    %v3560 = vsel %vm391, %v3481, 0
    %v3563 = vsel %vm391, %v2968, 0
    %v3566 = vsel %vm391, %v2969, 0
    %3568 = vmatprep.subr.mxu0 0.0
    %3569 = vmatpush1.xpose.msra.mxu0 %v3563
    %3570 = vmatprep.subr.mxu0 0.0
    %3571 = vmatpush1.xpose.msra.mxu0 %v3566
    %3572 = vmatprep.subr.mxu0 0.0
    %3573 = vmatpush1.xpose.msra.mxu0 0.0
    %3574 = vmatprep.subr.mxu0 0.0
    %3575 = vmatpush1.xpose.msra.mxu0 0.0
    %3576 = vmatprep.subr.mxu0 0.0
    %3577 = vmatpush1.xpose.msra.mxu0 0.0
    %3578 = vmatprep.subr.mxu0 0.0
    %3579 = vmatpush1.xpose.msra.mxu0 0.0
    %3580 = vmatprep.subr.mxu0 0.0
    %3581 = vmatpush1.xpose.msra.mxu0 0.0
    %3582 = vmatprep.subr.mxu0 0.0
    %3583 = vmatpush1.xpose.msra.mxu0 0.0
    %3584 = vmatprep.subr.mxu0 0.0
    %3585 = vmatpush1.xpose.msra.mxu0 0.0
    %3586 = vmatprep.subr.mxu0 0.0
    %3587 = vmatpush1.xpose.msra.mxu0 0.0
    %3588 = vmatprep.subr.mxu0 0.0
    %3589 = vmatpush1.xpose.msra.mxu0 0.0
    %3590 = vmatprep.subr.mxu0 0.0
    %3591 = vmatpush1.xpose.msra.mxu0 0.0
    %3592 = vmatprep.subr.mxu0 0.0
    %3593 = vmatpush1.xpose.msra.mxu0 0.0
    %3594 = vmatprep.subr.mxu0 0.0
    %3595 = vmatpush1.xpose.msra.mxu0 0.0
    %3596 = vmatprep.subr.mxu0 0.0
    %3597 = vmatpush1.xpose.msra.mxu0 0.0
    %3598 = vmatprep.subr.mxu0 0.0
    %3599 = vmatpush1.xpose.msra.mxu0 0.0
    %3600 = vmatprep.subr.mxu0 0.0
    %3601 = vmatpush1.xpose.msra.mxu0 0.0
    %3602 = vmatprep.subr.mxu0 0.0
    %3603 = vmatpush1.xpose.msra.mxu0 0.0
    %3604 = vmatprep.subr.mxu0 0.0
    %3605 = vmatpush1.xpose.msra.mxu0 0.0
    %3606 = vmatprep.subr.mxu0 0.0
    %3607 = vmatpush1.xpose.msra.mxu0 0.0
    %3608 = vmatprep.subr.mxu0 0.0
    %3609 = vmatpush1.xpose.msra.mxu0 0.0
    %3610 = vmatprep.subr.mxu0 0.0
    %3611 = vmatpush1.xpose.msra.mxu0 0.0
    %3612 = vmatprep.subr.mxu0 0.0
    %3613 = vmatpush1.xpose.msra.mxu0 0.0
    %3614 = vmatprep.subr.mxu0 0.0
    %3615 = vmatpush1.xpose.msra.mxu0 0.0
    %3616 = vmatprep.subr.mxu0 0.0
    %3617 = vmatpush1.xpose.msra.mxu0 0.0
    %3618 = vmatprep.subr.mxu0 0.0
    %3619 = vmatpush1.xpose.msra.mxu0 0.0
    %3620 = vmatprep.subr.mxu0 0.0
    %3621 = vmatpush1.xpose.msra.mxu0 0.0
    %3622 = vmatprep.subr.mxu0 0.0
    %3623 = vmatpush1.xpose.msra.mxu0 0.0
    %3624 = vmatprep.subr.mxu0 0.0
    %3625 = vmatpush1.xpose.msra.mxu0 0.0
    %3626 = vmatprep.subr.mxu0 0.0
    %3627 = vmatpush1.xpose.msra.mxu0 0.0
    %3628 = vmatprep.subr.mxu0 0.0
    %3629 = vmatpush1.xpose.msra.mxu0 0.0
    %3630 = vmatprep.subr.mxu0 0.0
    %3631 = vmatpush1.xpose.msra.mxu0 0.0
    %3632 = vmatprep.mubr.f32.mxu0 0.0
    %3633 = vmatmul.mubr.f32.gmra.mrb[0].mxu0 %v3560
    %v3634 = vpop.f32.mrb[0].mxu0
    %v3635 = vadd.f32 0.0, %v3634
    %v3636 = vpop.f32.mrb[0].mxu0
    %3637 = vdwg.mxu0
    %v3638 = vsel %vm3211, %v3557, -inf
    %3639 = vmax.xlane.f32.xlu0 %v3638
    %v3640 = vpop.xlane.xlu0 %3639
    %v3641 = vsel %vm3211, %v3635, -inf
    %3642 = vmax.xlane.f32.xlu0 %v3641
    %v3643 = vpop.xlane.xlu0 %3642
    %v3644 = vsub.f32 %v3557, %v3640
    %v3645 = vsub.f32 %v3635, %v3643
    %v3646 = vmul.f32 %v3644, 1.442695
    %v3647 = vpow.pop %v3646
    %v3648 = vmul.f32 %v3645, 1.442695
    %v3649 = vpow.pop %v3648
    %v3650 = vsel %vm3211, %v3647, 0.0
    %3651 = vadd.xlane.f32.xlu0 %v3650
    %v3652 = vpop.xlane.xlu0 %3651
    %v3653 = vsel %vm3211, %v3649, 0.0
    %3654 = vadd.xlane.f32.xlu0 %v3653
    %v3655 = vpop.xlane.xlu0 %3654
    %v3656 = vrcp.pop %v3652
    %v3657 = vrcp.pop %v3655
    %v3658 = vmul.f32 %v3647, %v3656
    %v3659 = vmul.f32 %v3649, %v3657
    %v3661 = vsel %vm3234, %v3658, 0
    %3663 = vmatprep.subr.mxu0 0.0
    %3664 = vmatpush1.msra.mxu0 %v2966
    %3665 = vmatprep.subr.mxu0 0.0
    %3666 = vmatpush1.msra.mxu0 %v2967
    %3667 = vmatprep.subr.mxu0 0.0
    %3668 = vmatpush1.msra.mxu0 0.0
    %3669 = vmatprep.subr.mxu0 0.0
    %3670 = vmatpush1.msra.mxu0 0.0
    %3671 = vmatprep.subr.mxu0 0.0
    %3672 = vmatpush1.msra.mxu0 0.0
    %3673 = vmatprep.subr.mxu0 0.0
    %3674 = vmatpush1.msra.mxu0 0.0
    %3675 = vmatprep.subr.mxu0 0.0
    %3676 = vmatpush1.msra.mxu0 0.0
    %3677 = vmatprep.subr.mxu0 0.0
    %3678 = vmatpush1.msra.mxu0 0.0
    %3679 = vmatprep.subr.mxu0 0.0
    %3680 = vmatpush1.msra.mxu0 0.0
    %3681 = vmatprep.subr.mxu0 0.0
    %3682 = vmatpush1.msra.mxu0 0.0
    %3683 = vmatprep.subr.mxu0 0.0
    %3684 = vmatpush1.msra.mxu0 0.0
    %3685 = vmatprep.subr.mxu0 0.0
    %3686 = vmatpush1.msra.mxu0 0.0
    %3687 = vmatprep.subr.mxu0 0.0
    %3688 = vmatpush1.msra.mxu0 0.0
    %3689 = vmatprep.subr.mxu0 0.0
    %3690 = vmatpush1.msra.mxu0 0.0
    %3691 = vmatprep.subr.mxu0 0.0
    %3692 = vmatpush1.msra.mxu0 0.0
    %3693 = vmatprep.subr.mxu0 0.0
    %3694 = vmatpush1.msra.mxu0 0.0
    %3695 = vmatprep.subr.mxu0 0.0
    %3696 = vmatpush1.msra.mxu0 0.0
    %3697 = vmatprep.subr.mxu0 0.0
    %3698 = vmatpush1.msra.mxu0 0.0
    %3699 = vmatprep.subr.mxu0 0.0
    %3700 = vmatpush1.msra.mxu0 0.0
    %3701 = vmatprep.subr.mxu0 0.0
    %3702 = vmatpush1.msra.mxu0 0.0
    %3703 = vmatprep.subr.mxu0 0.0
    %3704 = vmatpush1.msra.mxu0 0.0
    %3705 = vmatprep.subr.mxu0 0.0
    %3706 = vmatpush1.msra.mxu0 0.0
    %3707 = vmatprep.subr.mxu0 0.0
    %3708 = vmatpush1.msra.mxu0 0.0
    %3709 = vmatprep.subr.mxu0 0.0
    %3710 = vmatpush1.msra.mxu0 0.0
    %3711 = vmatprep.subr.mxu0 0.0
    %3712 = vmatpush1.msra.mxu0 0.0
    %3713 = vmatprep.subr.mxu0 0.0
    %3714 = vmatpush1.msra.mxu0 0.0
    %3715 = vmatprep.subr.mxu0 0.0
    %3716 = vmatpush1.msra.mxu0 0.0
    %3717 = vmatprep.subr.mxu0 0.0
    %3718 = vmatpush1.msra.mxu0 0.0
    %3719 = vmatprep.subr.mxu0 0.0
    %3720 = vmatpush1.msra.mxu0 0.0
    %3721 = vmatprep.subr.mxu0 0.0
    %3722 = vmatpush1.msra.mxu0 0.0
    %3723 = vmatprep.subr.mxu0 0.0
    %3724 = vmatpush1.msra.mxu0 0.0
    %3725 = vmatprep.subr.mxu0 0.0
    %3726 = vmatpush1.msra.mxu0 0.0
    %3727 = vmatprep.mubr.f32.mxu0 0.0
    %3728 = vmatmul.mubr.f32.gmra.mrb[0].mxu0 %v3661
    %v3729 = vpop.f32.mrb[0].mxu0
    %v3730 = vadd.f32 0.0, %v3729
    %v3731 = vpop.f32.mrb[0].mxu0
    %3732 = vdwg.mxu0
    %v3734 = vsel %vm3234, %v3659, 0
    %3736 = vmatprep.subr.mxu0 0.0
    %3737 = vmatpush1.msra.mxu0 %v2968
    %3738 = vmatprep.subr.mxu0 0.0
    %3739 = vmatpush1.msra.mxu0 %v2969
    %3740 = vmatprep.subr.mxu0 0.0
    %3741 = vmatpush1.msra.mxu0 0.0
    %3742 = vmatprep.subr.mxu0 0.0
    %3743 = vmatpush1.msra.mxu0 0.0
    %3744 = vmatprep.subr.mxu0 0.0
    %3745 = vmatpush1.msra.mxu0 0.0
    %3746 = vmatprep.subr.mxu0 0.0
    %3747 = vmatpush1.msra.mxu0 0.0
    %3748 = vmatprep.subr.mxu0 0.0
    %3749 = vmatpush1.msra.mxu0 0.0
    %3750 = vmatprep.subr.mxu0 0.0
    %3751 = vmatpush1.msra.mxu0 0.0
    %3752 = vmatprep.subr.mxu0 0.0
    %3753 = vmatpush1.msra.mxu0 0.0
    %3754 = vmatprep.subr.mxu0 0.0
    %3755 = vmatpush1.msra.mxu0 0.0
    %3756 = vmatprep.subr.mxu0 0.0
    %3757 = vmatpush1.msra.mxu0 0.0
    %3758 = vmatprep.subr.mxu0 0.0
    %3759 = vmatpush1.msra.mxu0 0.0
    %3760 = vmatprep.subr.mxu0 0.0
    %3761 = vmatpush1.msra.mxu0 0.0
    %3762 = vmatprep.subr.mxu0 0.0
    %3763 = vmatpush1.msra.mxu0 0.0
    %3764 = vmatprep.subr.mxu0 0.0
    %3765 = vmatpush1.msra.mxu0 0.0
    %3766 = vmatprep.subr.mxu0 0.0
    %3767 = vmatpush1.msra.mxu0 0.0
    %3768 = vmatprep.subr.mxu0 0.0
    %3769 = vmatpush1.msra.mxu0 0.0
    %3770 = vmatprep.subr.mxu0 0.0
    %3771 = vmatpush1.msra.mxu0 0.0
    %3772 = vmatprep.subr.mxu0 0.0
    %3773 = vmatpush1.msra.mxu0 0.0
    %3774 = vmatprep.subr.mxu0 0.0
    %3775 = vmatpush1.msra.mxu0 0.0
    %3776 = vmatprep.subr.mxu0 0.0
    %3777 = vmatpush1.msra.mxu0 0.0
    %3778 = vmatprep.subr.mxu0 0.0
    %3779 = vmatpush1.msra.mxu0 0.0
    %3780 = vmatprep.subr.mxu0 0.0
    %3781 = vmatpush1.msra.mxu0 0.0
    %3782 = vmatprep.subr.mxu0 0.0
    %3783 = vmatpush1.msra.mxu0 0.0
    %3784 = vmatprep.subr.mxu0 0.0
    %3785 = vmatpush1.msra.mxu0 0.0
    %3786 = vmatprep.subr.mxu0 0.0
    %3787 = vmatpush1.msra.mxu0 0.0
    %3788 = vmatprep.subr.mxu0 0.0
    %3789 = vmatpush1.msra.mxu0 0.0
    %3790 = vmatprep.subr.mxu0 0.0
    %3791 = vmatpush1.msra.mxu0 0.0
    %3792 = vmatprep.subr.mxu0 0.0
    %3793 = vmatpush1.msra.mxu0 0.0
    %3794 = vmatprep.subr.mxu0 0.0
    %3795 = vmatpush1.msra.mxu0 0.0
    %3796 = vmatprep.subr.mxu0 0.0
    %3797 = vmatpush1.msra.mxu0 0.0
    %3798 = vmatprep.subr.mxu0 0.0
    %3799 = vmatpush1.msra.mxu0 0.0
    %3800 = vmatprep.mubr.f32.mxu0 0.0
    %3801 = vmatmul.mubr.f32.gmra.mrb[0].mxu0 %v3734
    %v3802 = vpop.f32.mrb[0].mxu0
    %v3803 = vadd.f32 0.0, %v3802
    %v3804 = vpop.f32.mrb[0].mxu0
    %3805 = vdwg.mxu0
    %v3806 = vld [vmem:[#allocation15] sm:$0xff]
    %v3807 = vld [vmem:[#allocation15 + $0x8] sm:$0xff]
    %v3808 = vld [vmem:[#allocation15 + $0x10] sm:$0xff]
    %v3809 = vld [vmem:[#allocation15 + $0x18] sm:$0xff]
    %v3812 = vrot.slane %v3803, 7
    %vm3813 = vcmask 1041409
    %v3814 = vsel %vm3813, %v3812, %v3730
    %v3815 = vsel %vm391, %v3814, 0
    %3817 = vmatprep.subr.mxu0 0.0
    %3818 = vmatpush1.msra.mxu0 %v3806
    %3819 = vmatprep.subr.mxu0 0.0
    %3820 = vmatpush1.msra.mxu0 %v3807
    %3821 = vmatprep.subr.mxu0 0.0
    %3822 = vmatpush1.msra.mxu0 %v3808
    %3823 = vmatprep.subr.mxu0 0.0
    %3824 = vmatpush1.msra.mxu0 %v3809
    %3825 = vmatprep.subr.mxu0 0.0
    %3826 = vmatpush1.msra.mxu0 0.0
    %3827 = vmatprep.subr.mxu0 0.0
    %3828 = vmatpush1.msra.mxu0 0.0
    %3829 = vmatprep.subr.mxu0 0.0
    %3830 = vmatpush1.msra.mxu0 0.0
    %3831 = vmatprep.subr.mxu0 0.0
    %3832 = vmatpush1.msra.mxu0 0.0
    %3833 = vmatprep.subr.mxu0 0.0
    %3834 = vmatpush1.msra.mxu0 0.0
    %3835 = vmatprep.subr.mxu0 0.0
    %3836 = vmatpush1.msra.mxu0 0.0
    %3837 = vmatprep.subr.mxu0 0.0
    %3838 = vmatpush1.msra.mxu0 0.0
    %3839 = vmatprep.subr.mxu0 0.0
    %3840 = vmatpush1.msra.mxu0 0.0
    %3841 = vmatprep.subr.mxu0 0.0
    %3842 = vmatpush1.msra.mxu0 0.0
    %3843 = vmatprep.subr.mxu0 0.0
    %3844 = vmatpush1.msra.mxu0 0.0
    %3845 = vmatprep.subr.mxu0 0.0
    %3846 = vmatpush1.msra.mxu0 0.0
    %3847 = vmatprep.subr.mxu0 0.0
    %3848 = vmatpush1.msra.mxu0 0.0
    %3849 = vmatprep.subr.mxu0 0.0
    %3850 = vmatpush1.msra.mxu0 0.0
    %3851 = vmatprep.subr.mxu0 0.0
    %3852 = vmatpush1.msra.mxu0 0.0
    %3853 = vmatprep.subr.mxu0 0.0
    %3854 = vmatpush1.msra.mxu0 0.0
    %3855 = vmatprep.subr.mxu0 0.0
    %3856 = vmatpush1.msra.mxu0 0.0
    %3857 = vmatprep.subr.mxu0 0.0
    %3858 = vmatpush1.msra.mxu0 0.0
    %3859 = vmatprep.subr.mxu0 0.0
    %3860 = vmatpush1.msra.mxu0 0.0
    %3861 = vmatprep.subr.mxu0 0.0
    %3862 = vmatpush1.msra.mxu0 0.0
    %3863 = vmatprep.subr.mxu0 0.0
    %3864 = vmatpush1.msra.mxu0 0.0
    %3865 = vmatprep.subr.mxu0 0.0
    %3866 = vmatpush1.msra.mxu0 0.0
    %3867 = vmatprep.subr.mxu0 0.0
    %3868 = vmatpush1.msra.mxu0 0.0
    %3869 = vmatprep.subr.mxu0 0.0
    %3870 = vmatpush1.msra.mxu0 0.0
    %3871 = vmatprep.subr.mxu0 0.0
    %3872 = vmatpush1.msra.mxu0 0.0
    %3873 = vmatprep.subr.mxu0 0.0
    %3874 = vmatpush1.msra.mxu0 0.0
    %3875 = vmatprep.subr.mxu0 0.0
    %3876 = vmatpush1.msra.mxu0 0.0
    %3877 = vmatprep.subr.mxu0 0.0
    %3878 = vmatpush1.msra.mxu0 0.0
    %3879 = vmatprep.subr.mxu0 0.0
    %3880 = vmatpush1.msra.mxu0 0.0
    %3881 = vmatprep.mubr.f32.mxu0 0.0
    %3882 = vmatmul.mubr.f32.gmra.mrb[0].mxu0 %v3815
    %v3883 = vpop.f32.mrb[0].mxu0
    %v3884 = vadd.f32 0.0, %v3883
    %v3885 = vpop.f32.mrb[0].mxu0
    %3886 = vdwg.mxu0
    %v3889 = vrot.slane %v3378, 7
    %v3890 = vsel %vm3813, %v3889, %v3305
    %v3892 = vsel %vm391, %v3890, 0
    %3894 = vmatprep.subr.mxu0 0.0
    %3895 = vmatpush1.msra.mxu0 %v3381
    %3896 = vmatprep.subr.mxu0 0.0
    %3897 = vmatpush1.msra.mxu0 %v3382
    %3898 = vmatprep.subr.mxu0 0.0
    %3899 = vmatpush1.msra.mxu0 %v3383
    %3900 = vmatprep.subr.mxu0 0.0
    %3901 = vmatpush1.msra.mxu0 %v3384
    %3902 = vmatprep.subr.mxu0 0.0
    %3903 = vmatpush1.msra.mxu0 0.0
    %3904 = vmatprep.subr.mxu0 0.0
    %3905 = vmatpush1.msra.mxu0 0.0
    %3906 = vmatprep.subr.mxu0 0.0
    %3907 = vmatpush1.msra.mxu0 0.0
    %3908 = vmatprep.subr.mxu0 0.0
    %3909 = vmatpush1.msra.mxu0 0.0
    %3910 = vmatprep.subr.mxu0 0.0
    %3911 = vmatpush1.msra.mxu0 0.0
    %3912 = vmatprep.subr.mxu0 0.0
    %3913 = vmatpush1.msra.mxu0 0.0
    %3914 = vmatprep.subr.mxu0 0.0
    %3915 = vmatpush1.msra.mxu0 0.0
    %3916 = vmatprep.subr.mxu0 0.0
    %3917 = vmatpush1.msra.mxu0 0.0
    %3918 = vmatprep.subr.mxu0 0.0
    %3919 = vmatpush1.msra.mxu0 0.0
    %3920 = vmatprep.subr.mxu0 0.0
    %3921 = vmatpush1.msra.mxu0 0.0
    %3922 = vmatprep.subr.mxu0 0.0
    %3923 = vmatpush1.msra.mxu0 0.0
    %3924 = vmatprep.subr.mxu0 0.0
    %3925 = vmatpush1.msra.mxu0 0.0
    %3926 = vmatprep.subr.mxu0 0.0
    %3927 = vmatpush1.msra.mxu0 0.0
    %3928 = vmatprep.subr.mxu0 0.0
    %3929 = vmatpush1.msra.mxu0 0.0
    %3930 = vmatprep.subr.mxu0 0.0
    %3931 = vmatpush1.msra.mxu0 0.0
    %3932 = vmatprep.subr.mxu0 0.0
    %3933 = vmatpush1.msra.mxu0 0.0
    %3934 = vmatprep.subr.mxu0 0.0
    %3935 = vmatpush1.msra.mxu0 0.0
    %3936 = vmatprep.subr.mxu0 0.0
    %3937 = vmatpush1.msra.mxu0 0.0
    %3938 = vmatprep.subr.mxu0 0.0
    %3939 = vmatpush1.msra.mxu0 0.0
    %3940 = vmatprep.subr.mxu0 0.0
    %3941 = vmatpush1.msra.mxu0 0.0
    %3942 = vmatprep.subr.mxu0 0.0
    %3943 = vmatpush1.msra.mxu0 0.0
    %3944 = vmatprep.subr.mxu0 0.0
    %3945 = vmatpush1.msra.mxu0 0.0
    %3946 = vmatprep.subr.mxu0 0.0
    %3947 = vmatpush1.msra.mxu0 0.0
    %3948 = vmatprep.subr.mxu0 0.0
    %3949 = vmatpush1.msra.mxu0 0.0
    %3950 = vmatprep.subr.mxu0 0.0
    %3951 = vmatpush1.msra.mxu0 0.0
    %3952 = vmatprep.subr.mxu0 0.0
    %3953 = vmatpush1.msra.mxu0 0.0
    %3954 = vmatprep.subr.mxu0 0.0
    %3955 = vmatpush1.msra.mxu0 0.0
    %3956 = vmatprep.subr.mxu0 0.0
    %3957 = vmatpush1.msra.mxu0 0.0
    %3958 = vmatprep.mubr.f32.mxu0 0.0
    %3959 = vmatmul.mubr.f32.gmra.mrb[0].mxu0 %v3892
    %v3960 = vpop.f32.mrb[0].mxu0
    %v3961 = vadd.f32 %v2755, %v3960
    %v3962 = vpop.f32.mrb[0].mxu0
    %3963 = vdwg.mxu0
    %v3964 = vadd.f32 %v3961, %v3884
    %v3965 = vld [vmem:[#allocation16] sm:$0xff]
    %v3966 = vld [vmem:[#allocation16 + $0x8] sm:$0xff]
    %v3967 = vld [vmem:[#allocation16 + $0x10] sm:$0xff]
    %v3968 = vld [vmem:[#allocation16 + $0x18] sm:$0xff]
    %v3969 = vld [vmem:[#allocation18] sm:$0xff]
    %v3970 = vld [vmem:[#allocation18 + $0x8] sm:$0xff]
    %v3971 = vld [vmem:[#allocation18 + $0x10] sm:$0xff]
    %v3972 = vld [vmem:[#allocation18 + $0x18] sm:$0xff]
    %3973 = vmatprep.subr.mxu0 0.0
    %3974 = vmatpush1.msra.mxu0 %v3969
    %3975 = vmatprep.subr.mxu0 0.0
    %3976 = vmatpush1.msra.mxu0 %v3970
    %3977 = vmatprep.subr.mxu0 0.0
    %3978 = vmatpush1.msra.mxu0 %v3971
    %3979 = vmatprep.subr.mxu0 0.0
    %3980 = vmatpush1.msra.mxu0 %v3972
    %3981 = vmatprep.subr.mxu0 0.0
    %3982 = vmatpush1.msra.mxu0 0.0
    %3983 = vmatprep.subr.mxu0 0.0
    %3984 = vmatpush1.msra.mxu0 0.0
    %3985 = vmatprep.subr.mxu0 0.0
    %3986 = vmatpush1.msra.mxu0 0.0
    %3987 = vmatprep.subr.mxu0 0.0
    %3988 = vmatpush1.msra.mxu0 0.0
    %3989 = vmatprep.subr.mxu0 0.0
    %3990 = vmatpush1.msra.mxu0 0.0
    %3991 = vmatprep.subr.mxu0 0.0
    %3992 = vmatpush1.msra.mxu0 0.0
    %3993 = vmatprep.subr.mxu0 0.0
    %3994 = vmatpush1.msra.mxu0 0.0
    %3995 = vmatprep.subr.mxu0 0.0
    %3996 = vmatpush1.msra.mxu0 0.0
    %3997 = vmatprep.subr.mxu0 0.0
    %3998 = vmatpush1.msra.mxu0 0.0
    %3999 = vmatprep.subr.mxu0 0.0
    %4000 = vmatpush1.msra.mxu0 0.0
    %4001 = vmatprep.subr.mxu0 0.0
    %4002 = vmatpush1.msra.mxu0 0.0
    %4003 = vmatprep.subr.mxu0 0.0
    %4004 = vmatpush1.msra.mxu0 0.0
    %4005 = vmatprep.subr.mxu0 0.0
    %4006 = vmatpush1.msra.mxu0 0.0
    %4007 = vmatprep.subr.mxu0 0.0
    %4008 = vmatpush1.msra.mxu0 0.0
    %4009 = vmatprep.subr.mxu0 0.0
    %4010 = vmatpush1.msra.mxu0 0.0
    %4011 = vmatprep.subr.mxu0 0.0
    %4012 = vmatpush1.msra.mxu0 0.0
    %4013 = vmatprep.subr.mxu0 0.0
    %4014 = vmatpush1.msra.mxu0 0.0
    %4015 = vmatprep.subr.mxu0 0.0
    %4016 = vmatpush1.msra.mxu0 0.0
    %4017 = vmatprep.subr.mxu0 0.0
    %4018 = vmatpush1.msra.mxu0 0.0
    %4019 = vmatprep.subr.mxu0 0.0
    %4020 = vmatpush1.msra.mxu0 0.0
    %4021 = vmatprep.subr.mxu0 0.0
    %4022 = vmatpush1.msra.mxu0 0.0
    %4023 = vmatprep.subr.mxu0 0.0
    %4024 = vmatpush1.msra.mxu0 0.0
    %4025 = vmatprep.subr.mxu0 0.0
    %4026 = vmatpush1.msra.mxu0 0.0
    %4027 = vmatprep.subr.mxu0 0.0
    %4028 = vmatpush1.msra.mxu0 0.0
    %4029 = vmatprep.subr.mxu0 0.0
    %4030 = vmatpush1.msra.mxu0 0.0
    %4031 = vmatprep.subr.mxu0 0.0
    %4032 = vmatpush1.msra.mxu0 0.0
    %4033 = vmatprep.subr.mxu0 0.0
    %4034 = vmatpush1.msra.mxu0 0.0
    %4035 = vmatprep.subr.mxu0 0.0
    %4036 = vmatpush1.msra.mxu0 0.0
    %4037 = vmatprep.mubr.f32.mxu0 0.0
    %4038 = vmatmul.mubr.f32.gmra.mrb[0].mxu0 %v2756
    %v4039 = vpop.f32.mrb[0].mxu0
    %v4040 = vadd.f32 0.0, %v4039
    %v4041 = vpop.f32.mrb[0].mxu0
    %4042 = vdwg.mxu0
    %v4044 = vsel %vm391, %v3964, 0
    %4046 = vmatprep.subr.mxu0 0.0
    %4047 = vmatpush1.msra.mxu0 %v3965
    %4048 = vmatprep.subr.mxu0 0.0
    %4049 = vmatpush1.msra.mxu0 %v3966
    %4050 = vmatprep.subr.mxu0 0.0
    %4051 = vmatpush1.msra.mxu0 %v3967
    %4052 = vmatprep.subr.mxu0 0.0
    %4053 = vmatpush1.msra.mxu0 %v3968
    %4054 = vmatprep.subr.mxu0 0.0
    %4055 = vmatpush1.msra.mxu0 0.0
    %4056 = vmatprep.subr.mxu0 0.0
    %4057 = vmatpush1.msra.mxu0 0.0
    %4058 = vmatprep.subr.mxu0 0.0
    %4059 = vmatpush1.msra.mxu0 0.0
    %4060 = vmatprep.subr.mxu0 0.0
    %4061 = vmatpush1.msra.mxu0 0.0
    %4062 = vmatprep.subr.mxu0 0.0
    %4063 = vmatpush1.msra.mxu0 0.0
    %4064 = vmatprep.subr.mxu0 0.0
    %4065 = vmatpush1.msra.mxu0 0.0
    %4066 = vmatprep.subr.mxu0 0.0
    %4067 = vmatpush1.msra.mxu0 0.0
    %4068 = vmatprep.subr.mxu0 0.0
    %4069 = vmatpush1.msra.mxu0 0.0
    %4070 = vmatprep.subr.mxu0 0.0
    %4071 = vmatpush1.msra.mxu0 0.0
    %4072 = vmatprep.subr.mxu0 0.0
    %4073 = vmatpush1.msra.mxu0 0.0
    %4074 = vmatprep.subr.mxu0 0.0
    %4075 = vmatpush1.msra.mxu0 0.0
    %4076 = vmatprep.subr.mxu0 0.0
    %4077 = vmatpush1.msra.mxu0 0.0
    %4078 = vmatprep.subr.mxu0 0.0
    %4079 = vmatpush1.msra.mxu0 0.0
    %4080 = vmatprep.subr.mxu0 0.0
    %4081 = vmatpush1.msra.mxu0 0.0
    %4082 = vmatprep.subr.mxu0 0.0
    %4083 = vmatpush1.msra.mxu0 0.0
    %4084 = vmatprep.subr.mxu0 0.0
    %4085 = vmatpush1.msra.mxu0 0.0
    %4086 = vmatprep.subr.mxu0 0.0
    %4087 = vmatpush1.msra.mxu0 0.0
    %4088 = vmatprep.subr.mxu0 0.0
    %4089 = vmatpush1.msra.mxu0 0.0
    %4090 = vmatprep.subr.mxu0 0.0
    %4091 = vmatpush1.msra.mxu0 0.0
    %4092 = vmatprep.subr.mxu0 0.0
    %4093 = vmatpush1.msra.mxu0 0.0
    %4094 = vmatprep.subr.mxu0 0.0
    %4095 = vmatpush1.msra.mxu0 0.0
    %4096 = vmatprep.subr.mxu0 0.0
    %4097 = vmatpush1.msra.mxu0 0.0
    %4098 = vmatprep.subr.mxu0 0.0
    %4099 = vmatpush1.msra.mxu0 0.0
    %4100 = vmatprep.subr.mxu0 0.0
    %4101 = vmatpush1.msra.mxu0 0.0
    %4102 = vmatprep.subr.mxu0 0.0
    %4103 = vmatpush1.msra.mxu0 0.0
    %4104 = vmatprep.subr.mxu0 0.0
    %4105 = vmatpush1.msra.mxu0 0.0
    %4106 = vmatprep.subr.mxu0 0.0
    %4107 = vmatpush1.msra.mxu0 0.0
    %4108 = vmatprep.subr.mxu0 0.0
    %4109 = vmatpush1.msra.mxu0 0.0
    %4110 = vmatprep.mubr.f32.mxu0 0.0
    %4111 = vmatmul.mubr.f32.gmra.mrb[0].mxu0 %v4044
    %v4112 = vpop.f32.mrb[0].mxu0
    %v4113 = vadd.f32 %v4040, %v4112
    %v4114 = vpop.f32.mrb[0].mxu0
    %4115 = vdwg.mxu0
    %v4116 = vld [vmem:[#allocation19] sm:$0x1]
    %v4118 = vlaneseq
    %v4119 = vshrl.u32 %v4118, 7
    %v4120 = vsub.s32 0, %v4119
    %v4121 = vrot.slane %v4116, %v4120
    %v4123 = vadd.f32 %v4113, %v4121
    %v4124 = vmax.f32 %v4123, 0.0
    %v4125 = vld [vmem:[%s55] sm:$0xff]
    %v4126 = vld [vmem:[%s55 + $0x8] sm:$0xff]
    %v4127 = vld [vmem:[%s55 + $0x10] sm:$0xff]
    %v4128 = vld [vmem:[%s55 + $0x18] sm:$0xff]
    %v4129 = vld [vmem:[%s57] sm:$0x1]
    %v4131 = vlaneseq
    %v4132 = vshrl.u32 %v4131, 7
    %v4133 = vsub.s32 0, %v4132
    %v4134 = vrot.slane %v4129, %v4133
    %v4137 = vsel %vm391, %v4124, 0
    %4139 = vmatprep.subr.mxu0 0.0
    %4140 = vmatpush1.msra.mxu0 %v4125
    %4141 = vmatprep.subr.mxu0 0.0
    %4142 = vmatpush1.msra.mxu0 %v4126
    %4143 = vmatprep.subr.mxu0 0.0
    %4144 = vmatpush1.msra.mxu0 %v4127
    %4145 = vmatprep.subr.mxu0 0.0
    %4146 = vmatpush1.msra.mxu0 %v4128
    %4147 = vmatprep.subr.mxu0 0.0
    %4148 = vmatpush1.msra.mxu0 0.0
    %4149 = vmatprep.subr.mxu0 0.0
    %4150 = vmatpush1.msra.mxu0 0.0
    %4151 = vmatprep.subr.mxu0 0.0
    %4152 = vmatpush1.msra.mxu0 0.0
    %4153 = vmatprep.subr.mxu0 0.0
    %4154 = vmatpush1.msra.mxu0 0.0
    %4155 = vmatprep.subr.mxu0 0.0
    %4156 = vmatpush1.msra.mxu0 0.0
    %4157 = vmatprep.subr.mxu0 0.0
    %4158 = vmatpush1.msra.mxu0 0.0
    %4159 = vmatprep.subr.mxu0 0.0
    %4160 = vmatpush1.msra.mxu0 0.0
    %4161 = vmatprep.subr.mxu0 0.0
    %4162 = vmatpush1.msra.mxu0 0.0
    %4163 = vmatprep.subr.mxu0 0.0
    %4164 = vmatpush1.msra.mxu0 0.0
    %4165 = vmatprep.subr.mxu0 0.0
    %4166 = vmatpush1.msra.mxu0 0.0
    %4167 = vmatprep.subr.mxu0 0.0
    %4168 = vmatpush1.msra.mxu0 0.0
    %4169 = vmatprep.subr.mxu0 0.0
    %4170 = vmatpush1.msra.mxu0 0.0
    %4171 = vmatprep.subr.mxu0 0.0
    %4172 = vmatpush1.msra.mxu0 0.0
    %4173 = vmatprep.subr.mxu0 0.0
    %4174 = vmatpush1.msra.mxu0 0.0
    %4175 = vmatprep.subr.mxu0 0.0
    %4176 = vmatpush1.msra.mxu0 0.0
    %4177 = vmatprep.subr.mxu0 0.0
    %4178 = vmatpush1.msra.mxu0 0.0
    %4179 = vmatprep.subr.mxu0 0.0
    %4180 = vmatpush1.msra.mxu0 0.0
    %4181 = vmatprep.subr.mxu0 0.0
    %4182 = vmatpush1.msra.mxu0 0.0
    %4183 = vmatprep.subr.mxu0 0.0
    %4184 = vmatpush1.msra.mxu0 0.0
    %4185 = vmatprep.subr.mxu0 0.0
    %4186 = vmatpush1.msra.mxu0 0.0
    %4187 = vmatprep.subr.mxu0 0.0
    %4188 = vmatpush1.msra.mxu0 0.0
    %4189 = vmatprep.subr.mxu0 0.0
    %4190 = vmatpush1.msra.mxu0 0.0
    %4191 = vmatprep.subr.mxu0 0.0
    %4192 = vmatpush1.msra.mxu0 0.0
    %4193 = vmatprep.subr.mxu0 0.0
    %4194 = vmatpush1.msra.mxu0 0.0
    %4195 = vmatprep.subr.mxu0 0.0
    %4196 = vmatpush1.msra.mxu0 0.0
    %4197 = vmatprep.subr.mxu0 0.0
    %4198 = vmatpush1.msra.mxu0 0.0
    %4199 = vmatprep.subr.mxu0 0.0
    %4200 = vmatpush1.msra.mxu0 0.0
    %4201 = vmatprep.subr.mxu0 0.0
    %4202 = vmatpush1.msra.mxu0 0.0
    %4203 = vmatprep.mubr.f32.mxu0 0.0
    %4204 = vmatmul.mubr.f32.gmra.mrb[0].mxu0 %v4137
    %v4205 = vpop.f32.mrb[0].mxu0
    %v4206 = vadd.f32 %v4134, %v4205
    %v4207 = vpop.f32.mrb[0].mxu0
    %4208 = vdwg.mxu0
    %4209 = vst [vmem:[%s59] sm:$0x3] %v4206
    // Predicated region
    $region166: #{base_model_forward.1} parent=1 // pred_check
      _
    $region167: #{base_model_forward.1} parent=1 // pred_check_branch
      %4211 = sbr.rel (0) target = $region169
    $region168: #{base_model_forward.1} parent=1 // pred_region
      _
    $region169: #{base_model_forward.1} parent=1 // pred_fallthru
      _
    // Predicated region
    $region170: #{base_model_forward.1} parent=1 // pred_check
      _
    $region171: #{base_model_forward.1} parent=1 // pred_check_branch
      %4213 = sbr.rel (0) target = $region173
    $region172: #{base_model_forward.1} parent=1 // pred_region
      _
    $region173: #{base_model_forward.1} parent=1 // pred_fallthru
      _
    %4214 = vsyncpa [#allocation3], 1
    %4215 = vsyncpa [#allocation5], 1
    %4216 = vsyncpa [#allocation8], 1
    %4217 = vsyncpa [#allocation11], 1
    %4218 = vsyncpa [#allocation14], 1
    %4219 = vsyncpa [#allocation17], 1
    %4220 = vsyncpa [#allocation20], 1

</llo_original>
